<compile_context>
chip_gen: v7x
topology: tpu7x:2x2x1
jax: 0.10.0
libtpu: 0.0.40
codegen_flags: <defaults>
</compile_context>

<pallas_src>
import functools

import jax
import jax.numpy as jnp
from jax import lax
from jax.experimental import pallas as pl
from jax.experimental.pallas import tpu as pltpu


def _inception_kernel(channels,
                      x_ref, w23_ref, b23_ref,
                      w1t_ref, b1t_ref,
                      w2bt_ref, b2bt_ref,
                      w3bt_ref, b3bt_ref,
                      w4t_ref, b4t_ref,
                      out_ref):
    c1, c2_0, c2_1, c3_0, c3_1, c4 = channels
    NB, H, W, Cin = x_ref.shape
    HW = H * W
    M = NB * HW

    relu = lambda v: jnp.maximum(v, 0.0)

    x = x_ref[...]                         # (NB, H, W, Cin) bf16
    xf = x.reshape(M, Cin)                 # layout-preserving (W mult. of 8)

    def store(pt, off, c):
        # pt: (c, NB*HW) channel-major slab -> output rows [off, off+c).
        for b in range(NB):
            out_ref[b, off:off + c, :] = (
                pt[:, b * HW:(b + 1) * HW].astype(out_ref.dtype))

    def matmul_t(wt, act, bias):
        # (c, K) x (M, K)^T -> (c, M); same A@B^T form as flash-attn q@k^T.
        acc = lax.dot_general(wt, act, (((1,), (1,)), ((), ())),
                              preferred_element_type=jnp.float32)
        return relu(acc + bias)

    # ---- path 1: 1x1 conv, output-transposed -> direct lane-dense store ----
    p1t = matmul_t(w1t_ref[...], xf, b1t_ref[...])            # (c1, M)
    store(p1t, 0, c1)

    # ---- fused 1x1 convs feeding paths 2 and 3 (one MXU matmul) ------------
    y = relu(jnp.dot(xf, w23_ref[...],
                     preferred_element_type=jnp.float32) + b23_ref[...])
    p2a = y[:, :c2_0].reshape(NB, H, W, c2_0)                 # f32
    p3a = y[:, c2_0:].reshape(NB, H, W, c3_0)                 # f32

    # ---- kxk conv as register-resident im2col + a single matmul ------------
    def conv_kxk(a, wt, bias, k, pad):
        cin_p = a.shape[-1]
        zw = jnp.zeros((NB, H, pad, cin_p), a.dtype)
        ap = jnp.concatenate([zw, a, zw], axis=2)             # pad W
        zh = jnp.zeros((NB, pad, W + 2 * pad, cin_p), a.dtype)
        ap = jnp.concatenate([zh, ap, zh], axis=1)            # pad H
        cols = jnp.concatenate(
            [ap[:, ky:ky + H, kx:kx + W, :]
             for ky in range(k) for kx in range(k)], axis=-1)  # (NB,H,W,k*k*ci)
        cols = cols.reshape(M, k * k * cin_p).astype(jnp.bfloat16)
        return matmul_t(wt, cols, bias)                        # (cout, M)

    p2t = conv_kxk(p2a, w2bt_ref[...], b2bt_ref[...], 3, 1)    # (c2_1, M)
    store(p2t, c1, c2_1)
    p3t = conv_kxk(p3a, w3bt_ref[...], b3bt_ref[...], 5, 2)    # (c3_1, M)
    store(p3t, c1 + c2_1, c3_1)

    # ---- path 4: 3x3 maxpool (stride 1, -inf pad 1) then 1x1 conv ----------
    xf32 = x.astype(jnp.float32)
    zw = jnp.full((NB, H, 1, Cin), -jnp.inf, jnp.float32)
    xp = jnp.concatenate([zw, xf32, zw], axis=2)
    zh = jnp.full((NB, 1, W + 2, Cin), -jnp.inf, jnp.float32)
    xp = jnp.concatenate([zh, xp, zh], axis=1)                 # (NB,H+2,W+2,Ci)
    m = xp[:, 0:H, 0:W, :]
    for ky in range(3):
        for kx in range(3):
            if ky == 0 and kx == 0:
                continue
            m = jnp.maximum(m, xp[:, ky:ky + H, kx:kx + W, :])
    mf = m.reshape(M, Cin).astype(jnp.bfloat16)
    p4t = matmul_t(w4t_ref[...], mf, b4t_ref[...])             # (c4, M)
    store(p4t, c1 + c2_1 + c3_1, c4)


def inception_pallas(x_nchw, params, *, batch_block=1):
    """Inception forward. x_nchw: (N, Cin, H, W) f32 -> (N, c_out, H, W) f32."""
    (w1, b1, w2a, b2a, w2b, b2b, w3a, b3a, w3b, b3b, w4, b4) = params
    N, Cin, H, W = x_nchw.shape
    c1, c2_0, c2_1 = w1.shape[1], w2a.shape[1], w2b.shape[-1]
    c3_0, c3_1, c4 = w3a.shape[1], w3b.shape[-1], w4.shape[1]
    c_out = c1 + c2_1 + c3_1 + c4
    HW = H * W

    NB = batch_block          # images per grid step; 1 keeps per-core batch
    assert N % NB == 0        # parallelism on v7x's 2 TensorCores.

    bf16, f32 = jnp.bfloat16, jnp.float32

    # NHWC activations (channels on lanes inside the kernel), bf16 for the MXU.
    x = jnp.transpose(x_nchw, (0, 2, 3, 1)).astype(bf16)

    # Fuse the 1x1 convs feeding the two spatial paths into one weight matrix.
    w23 = jnp.concatenate([w2a, w3a], axis=1).astype(bf16)       # (Cin, c2_0+c3_0)
    b23 = jnp.concatenate([b2a, b3a], axis=1).astype(f32)        # (1, c2_0+c3_0)
    # Paths 1 / 4 1x1 convs: pre-transposed so the kernel's A@B^T matmul emits
    # channel-major (c, H*W) slabs (no in-kernel transpose needed).
    w1t = jnp.transpose(w1).astype(bf16)                         # (c1, Cin)
    b1t = jnp.reshape(b1, (c1, 1)).astype(f32)
    w4t = jnp.transpose(w4).astype(bf16)                         # (c4, Cin)
    b4t = jnp.reshape(b4, (c4, 1)).astype(f32)
    # Spatial conv weights in im2col layout, pre-transposed likewise.
    w2bt = jnp.transpose(w2b.reshape(9 * c2_0, c2_1)).astype(bf16)   # (c2_1, 9*c2_0)
    b2bt = jnp.reshape(b2b, (c2_1, 1)).astype(f32)
    w3bt = jnp.transpose(w3b.reshape(25 * c3_0, c3_1)).astype(bf16)  # (c3_1, 25*c3_0)
    b3bt = jnp.reshape(b3b, (c3_1, 1)).astype(f32)

    weight_args = (w23, b23, w1t, b1t, w2bt, b2bt, w3bt, b3bt, w4t, b4t)

    def full_spec(a):
        nd = a.ndim
        return pl.BlockSpec(a.shape, lambda b, _nd=nd: (0,) * _nd)

    in_specs = [pl.BlockSpec((NB, H, W, Cin), lambda b: (b, 0, 0, 0))]
    in_specs += [full_spec(a) for a in weight_args]

    kernel = functools.partial(
        _inception_kernel, (c1, c2_0, c2_1, c3_0, c3_1, c4))

    flops = 2 * N * HW * (Cin * (c1 + c2_0 + c3_0 + c4)
                          + 9 * c2_0 * c2_1 + 25 * c3_0 * c3_1)
    bytes_accessed = int(
        x.size * x.dtype.itemsize
        + sum(a.size * a.dtype.itemsize for a in weight_args)
        + N * c_out * HW * 4)

    # NOTE: at real Inception sizes (H=W=28, Cin up to 832) tile H with a 2-row
    # halo and set vmem_limit_bytes explicitly (v7x has only 64 MiB VMEM).
    out = pl.pallas_call(
        kernel,
        out_shape=jax.ShapeDtypeStruct((N, c_out, HW), f32),
        grid_spec=pltpu.PrefetchScalarGridSpec(
            num_scalar_prefetch=0,
            grid=(N // NB,),
            in_specs=in_specs,
            out_specs=pl.BlockSpec((NB, c_out, HW), lambda b: (b, 0, 0)),
        ),
        compiler_params=pltpu.CompilerParams(
            dimension_semantics=("parallel",)),
        cost_estimate=pl.CostEstimate(
            flops=flops, transcendentals=0, bytes_accessed=bytes_accessed),
    )(x, *weight_args)

    # lane-dense (N, c_out, H*W) is already channel-major -> NCHW via reshape.
    return out.reshape(N, c_out, H, W)


def inception_ref(x_nchw, params):
    """Pure-JAX f32 reference (lax conv / reduce_window), same math as PyTorch."""
    (w1, b1, w2a, b2a, w2b, b2b, w3a, b3a, w3b, b3b, w4, b4) = params
    x = jnp.transpose(x_nchw, (0, 2, 3, 1)).astype(jnp.float32)
    dn = ('NHWC', 'HWIO', 'NHWC')

    def conv(inp, w, pad):
        return lax.conv_general_dilated(inp, w, (1, 1),
                                        [(pad, pad), (pad, pad)],
                                        dimension_numbers=dn)

    relu = lambda v: jnp.maximum(v, 0.0)
    cin = x.shape[-1]

    p1 = relu(conv(x, w1.reshape(1, 1, cin, -1), 0) + b1)
    p2 = relu(conv(x, w2a.reshape(1, 1, cin, -1), 0) + b2a)
    p2 = relu(conv(p2, w2b, 1) + b2b)
    p3 = relu(conv(x, w3a.reshape(1, 1, cin, -1), 0) + b3a)
    p3 = relu(conv(p3, w3b, 2) + b3b)
    mp = lax.reduce_window(x, -jnp.inf, lax.max, (1, 3, 3, 1), (1, 1, 1, 1),
                           [(0, 0), (1, 1), (1, 1), (0, 0)])
    p4 = relu(conv(mp, w4.reshape(1, 1, cin, -1), 0) + b4)
    out = jnp.concatenate([p1, p2, p3, p4], axis=-1)
    return jnp.transpose(out, (0, 3, 1, 2))


if __name__ == "__main__":
    key = jax.random.PRNGKey(0)
    in_c, c1, c2, c3, c4 = 4, 4, (4, 8), (2, 4), 4
    N, H, W = 2, 16, 16

    keys = jax.random.split(key, 13)
    rnd = lambda k, s: (jax.random.normal(k, s, jnp.float32) * 0.1)

    params = (
        rnd(keys[0], (in_c, c1)),            rnd(keys[1], (1, c1)),
        rnd(keys[2], (in_c, c2[0])),         rnd(keys[3], (1, c2[0])),
        rnd(keys[4], (3, 3, c2[0], c2[1])),  rnd(keys[5], (1, c2[1])),
        rnd(keys[6], (in_c, c3[0])),         rnd(keys[7], (1, c3[0])),
        rnd(keys[8], (5, 5, c3[0], c3[1])),  rnd(keys[9], (1, c3[1])),
        rnd(keys[10], (in_c, c4)),           rnd(keys[11], (1, c4)),
    )
    x = jax.random.normal(keys[12], (N, in_c, H, W), jnp.float32)

    out = jax.block_until_ready(inception_pallas(x, params))
    ref = inception_ref(x, params)

    assert out.shape == (N, c1 + c2[1] + c3[1] + c4, H, W), out.shape
    # Tolerance sized for bf16 matmul operands with f32 accumulation.
    if not jnp.allclose(out, ref, atol=2e-2, rtol=2e-2):
        err = float(jnp.max(jnp.abs(out - ref)))
        raise AssertionError(f"Pallas output mismatch, max abs err {err}")
    print("KERNEL_OK")
</pallas_src>

<mosaic_0001>
module attributes {stable_mosaic.version = 11 : i64} {
  func.func @_inception_kernel(%arg0: i32, %arg1: memref<1x16x16x4xbf16, #tpu.memory_space<vmem>>, %arg2: memref<4x6xbf16, #tpu.memory_space<vmem>>, %arg3: memref<1x6xf32, #tpu.memory_space<vmem>>, %arg4: memref<4x4xbf16, #tpu.memory_space<vmem>>, %arg5: memref<4x1xf32, #tpu.memory_space<vmem>>, %arg6: memref<8x36xbf16, #tpu.memory_space<vmem>>, %arg7: memref<8x1xf32, #tpu.memory_space<vmem>>, %arg8: memref<4x50xbf16, #tpu.memory_space<vmem>>, %arg9: memref<4x1xf32, #tpu.memory_space<vmem>>, %arg10: memref<4x4xbf16, #tpu.memory_space<vmem>>, %arg11: memref<4x1xf32, #tpu.memory_space<vmem>>, %arg12: memref<1x20x256xf32, #tpu.memory_space<vmem>>) attributes {dimension_semantics = [#tpu.dimension_semantics<parallel>], iteration_bounds = array<i64: 2>, scalar_prefetch = 0 : i64, scratch_operands = 0 : i64, tpu.core_type = #tpu.core_type<tc>, window_params = [{transform_indices = @transform_0, window_bounds = array<i64: 1, 16, 16, 4>}, {pipeline_mode = #tpu.pipeline_mode<synchronous>, transform_indices = @transform_1, window_bounds = array<i64: 4, 6>}, {pipeline_mode = #tpu.pipeline_mode<synchronous>, transform_indices = @transform_2, window_bounds = array<i64: 1, 6>}, {pipeline_mode = #tpu.pipeline_mode<synchronous>, transform_indices = @transform_3, window_bounds = array<i64: 4, 4>}, {pipeline_mode = #tpu.pipeline_mode<synchronous>, transform_indices = @transform_4, window_bounds = array<i64: 4, 1>}, {pipeline_mode = #tpu.pipeline_mode<synchronous>, transform_indices = @transform_5, window_bounds = array<i64: 8, 36>}, {pipeline_mode = #tpu.pipeline_mode<synchronous>, transform_indices = @transform_6, window_bounds = array<i64: 8, 1>}, {pipeline_mode = #tpu.pipeline_mode<synchronous>, transform_indices = @transform_7, window_bounds = array<i64: 4, 50>}, {pipeline_mode = #tpu.pipeline_mode<synchronous>, transform_indices = @transform_8, window_bounds = array<i64: 4, 1>}, {pipeline_mode = #tpu.pipeline_mode<synchronous>, transform_indices = @transform_9, window_bounds = array<i64: 4, 4>}, {pipeline_mode = #tpu.pipeline_mode<synchronous>, transform_indices = @transform_10, window_bounds = array<i64: 4, 1>}, {transform_indices = @transform_11, window_bounds = array<i64: 1, 20, 256>}]} {
    %c0 = arith.constant 0 : index
    %c0_0 = arith.constant 0 : index
    %c0_1 = arith.constant 0 : index
    %c0_2 = arith.constant 0 : index
    %0 = vector.load %arg1[%c0, %c0_0, %c0_1, %c0_2] : memref<1x16x16x4xbf16, #tpu.memory_space<vmem>>, vector<1x16x16x4xbf16>
    %1 = vector.shape_cast %0 : vector<1x16x16x4xbf16> to vector<256x4xbf16>
    %c0_3 = arith.constant 0 : index
    %c0_4 = arith.constant 0 : index
    %2 = vector.load %arg4[%c0_3, %c0_4] : memref<4x4xbf16, #tpu.memory_space<vmem>>, vector<4x4xbf16>
    %c0_5 = arith.constant 0 : index
    %c0_6 = arith.constant 0 : index
    %3 = vector.load %arg5[%c0_5, %c0_6] : memref<4x1xf32, #tpu.memory_space<vmem>>, vector<4x1xf32>
    %cst = arith.constant dense<0.000000e+00> : vector<4x256xf32>
    %4 = tpu.matmul %2, %1, %cst {dimension_numbers = #tpu.dot_dimension_numbers<[1], [1], [0], [0], [0, 0, 1, 0], [], []>} : vector<4x4xbf16>, vector<256x4xbf16>, vector<4x256xf32> -> vector<4x256xf32>
    %5 = vector.broadcast %3 : vector<4x1xf32> to vector<4x256xf32>
    %6 = arith.addf %4, %5 : vector<4x256xf32>
    %cst_7 = arith.constant 0.000000e+00 : f32
    %7 = vector.broadcast %cst_7 : f32 to vector<4x256xf32>
    %8 = arith.maximumf %6, %7 : vector<4x256xf32>
    %c0_8 = arith.constant 0 : index
    %c0_9 = arith.constant 0 : index
    %c0_10 = arith.constant 0 : index
    %9 = vector.load %arg12[%c0_8, %c0_9, %c0_10] : memref<1x20x256xf32, #tpu.memory_space<vmem>>, vector<1x4x256xf32>
    %10 = vector.shape_cast %9 : vector<1x4x256xf32> to vector<4x256xf32>
    %11 = vector.shape_cast %8 : vector<4x256xf32> to vector<1x4x256xf32>
    tpu.vector_store %arg12[%c0_8, %c0_9, %c0_10], %11 {strides = array<i32>} : memref<1x20x256xf32, #tpu.memory_space<vmem>>, vector<1x4x256xf32>,
    %c0_11 = arith.constant 0 : index
    %c0_12 = arith.constant 0 : index
    %12 = vector.load %arg2[%c0_11, %c0_12] : memref<4x6xbf16, #tpu.memory_space<vmem>>, vector<4x6xbf16>
    %cst_13 = arith.constant dense<0.000000e+00> : vector<256x6xf32>
    %13 = tpu.matmul %1, %12, %cst_13 {dimension_numbers = #tpu.dot_dimension_numbers<[1], [0], [0], [1], [0, 0, 1, 1], [], []>} : vector<256x4xbf16>, vector<4x6xbf16>, vector<256x6xf32> -> vector<256x6xf32>
    %c0_14 = arith.constant 0 : index
    %c0_15 = arith.constant 0 : index
    %14 = vector.load %arg3[%c0_14, %c0_15] : memref<1x6xf32, #tpu.memory_space<vmem>>, vector<1x6xf32>
    %15 = vector.broadcast %14 : vector<1x6xf32> to vector<256x6xf32>
    %16 = arith.addf %13, %15 : vector<256x6xf32>
    %cst_16 = arith.constant 0.000000e+00 : f32
    %17 = vector.broadcast %cst_16 : f32 to vector<256x6xf32>
    %18 = arith.maximumf %16, %17 : vector<256x6xf32>
    %19 = vector.extract_strided_slice %18 {offsets = [0, 0], sizes = [256, 4], strides = [1, 1]} : vector<256x6xf32> to vector<256x4xf32>
    %20 = vector.shape_cast %19 : vector<256x4xf32> to vector<1x16x16x4xf32>
    %21 = vector.extract_strided_slice %18 {offsets = [0, 4], sizes = [256, 2], strides = [1, 1]} : vector<256x6xf32> to vector<256x2xf32>
    %22 = vector.shape_cast %21 : vector<256x2xf32> to vector<1x16x16x2xf32>
    %c0_17 = arith.constant 0 : index
    %c0_18 = arith.constant 0 : index
    %23 = vector.load %arg6[%c0_17, %c0_18] : memref<8x36xbf16, #tpu.memory_space<vmem>>, vector<8x36xbf16>
    %c0_19 = arith.constant 0 : index
    %c0_20 = arith.constant 0 : index
    %24 = vector.load %arg7[%c0_19, %c0_20] : memref<8x1xf32, #tpu.memory_space<vmem>>, vector<8x1xf32>
    %cst_21 = arith.constant 0.000000e+00 : f32
    %25 = vector.broadcast %cst_21 : f32 to vector<1x16x1x4xf32>
    %26 = tpu.concatenate %25, %20, %25 in 2 : vector<1x16x1x4xf32>, vector<1x16x16x4xf32>, vector<1x16x1x4xf32> -> vector<1x16x18x4xf32>
    %cst_22 = arith.constant 0.000000e+00 : f32
    %27 = vector.broadcast %cst_22 : f32 to vector<1x1x18x4xf32>
    %28 = tpu.concatenate %27, %26, %27 in 1 : vector<1x1x18x4xf32>, vector<1x16x18x4xf32>, vector<1x1x18x4xf32> -> vector<1x18x18x4xf32>
    %29 = vector.extract_strided_slice %28 {offsets = [0, 0, 0, 0], sizes = [1, 16, 16, 4], strides = [1, 1, 1, 1]} : vector<1x18x18x4xf32> to vector<1x16x16x4xf32>
    %30 = vector.extract_strided_slice %28 {offsets = [0, 0, 1, 0], sizes = [1, 16, 16, 4], strides = [1, 1, 1, 1]} : vector<1x18x18x4xf32> to vector<1x16x16x4xf32>
    %31 = vector.extract_strided_slice %28 {offsets = [0, 0, 2, 0], sizes = [1, 16, 16, 4], strides = [1, 1, 1, 1]} : vector<1x18x18x4xf32> to vector<1x16x16x4xf32>
    %32 = vector.extract_strided_slice %28 {offsets = [0, 1, 0, 0], sizes = [1, 16, 16, 4], strides = [1, 1, 1, 1]} : vector<1x18x18x4xf32> to vector<1x16x16x4xf32>
    %33 = vector.extract_strided_slice %28 {offsets = [0, 1, 1, 0], sizes = [1, 16, 16, 4], strides = [1, 1, 1, 1]} : vector<1x18x18x4xf32> to vector<1x16x16x4xf32>
    %34 = vector.extract_strided_slice %28 {offsets = [0, 1, 2, 0], sizes = [1, 16, 16, 4], strides = [1, 1, 1, 1]} : vector<1x18x18x4xf32> to vector<1x16x16x4xf32>
    %35 = vector.extract_strided_slice %28 {offsets = [0, 2, 0, 0], sizes = [1, 16, 16, 4], strides = [1, 1, 1, 1]} : vector<1x18x18x4xf32> to vector<1x16x16x4xf32>
    %36 = vector.extract_strided_slice %28 {offsets = [0, 2, 1, 0], sizes = [1, 16, 16, 4], strides = [1, 1, 1, 1]} : vector<1x18x18x4xf32> to vector<1x16x16x4xf32>
    %37 = vector.extract_strided_slice %28 {offsets = [0, 2, 2, 0], sizes = [1, 16, 16, 4], strides = [1, 1, 1, 1]} : vector<1x18x18x4xf32> to vector<1x16x16x4xf32>
    %38 = tpu.concatenate %29, %30, %31, %32, %33, %34, %35, %36, %37 in 3 : vector<1x16x16x4xf32>, vector<1x16x16x4xf32>, vector<1x16x16x4xf32>, vector<1x16x16x4xf32>, vector<1x16x16x4xf32>, vector<1x16x16x4xf32>, vector<1x16x16x4xf32>, vector<1x16x16x4xf32>, vector<1x16x16x4xf32> -> vector<1x16x16x36xf32>
    %39 = vector.shape_cast %38 : vector<1x16x16x36xf32> to vector<256x36xf32>
    %40 = arith.truncf %39 : vector<256x36xf32> to vector<256x36xbf16>
    %cst_23 = arith.constant dense<0.000000e+00> : vector<8x256xf32>
    %41 = tpu.matmul %23, %40, %cst_23 {dimension_numbers = #tpu.dot_dimension_numbers<[1], [1], [0], [0], [0, 0, 1, 0], [], []>} : vector<8x36xbf16>, vector<256x36xbf16>, vector<8x256xf32> -> vector<8x256xf32>
    %42 = vector.broadcast %24 : vector<8x1xf32> to vector<8x256xf32>
    %43 = arith.addf %41, %42 : vector<8x256xf32>
    %cst_24 = arith.constant 0.000000e+00 : f32
    %44 = vector.broadcast %cst_24 : f32 to vector<8x256xf32>
    %45 = arith.maximumf %43, %44 : vector<8x256xf32>
    %c0_25 = arith.constant 0 : index
    %c4 = arith.constant 4 : index
    %c0_26 = arith.constant 0 : index
    %46 = vector.load %arg12[%c0_25, %c4, %c0_26] : memref<1x20x256xf32, #tpu.memory_space<vmem>>, vector<1x8x256xf32>
    %47 = vector.shape_cast %46 : vector<1x8x256xf32> to vector<8x256xf32>
    %48 = vector.shape_cast %45 : vector<8x256xf32> to vector<1x8x256xf32>
    tpu.vector_store %arg12[%c0_25, %c4, %c0_26], %48 {strides = array<i32>} : memref<1x20x256xf32, #tpu.memory_space<vmem>>, vector<1x8x256xf32>,
    %c0_27 = arith.constant 0 : index
    %c0_28 = arith.constant 0 : index
    %49 = vector.load %arg8[%c0_27, %c0_28] : memref<4x50xbf16, #tpu.memory_space<vmem>>, vector<4x50xbf16>
    %c0_29 = arith.constant 0 : index
    %c0_30 = arith.constant 0 : index
    %50 = vector.load %arg9[%c0_29, %c0_30] : memref<4x1xf32, #tpu.memory_space<vmem>>, vector<4x1xf32>
    %cst_31 = arith.constant 0.000000e+00 : f32
    %51 = vector.broadcast %cst_31 : f32 to vector<1x16x2x2xf32>
    %52 = tpu.concatenate %51, %22, %51 in 2 : vector<1x16x2x2xf32>, vector<1x16x16x2xf32>, vector<1x16x2x2xf32> -> vector<1x16x20x2xf32>
    %cst_32 = arith.constant 0.000000e+00 : f32
    %53 = vector.broadcast %cst_32 : f32 to vector<1x2x20x2xf32>
    %54 = tpu.concatenate %53, %52, %53 in 1 : vector<1x2x20x2xf32>, vector<1x16x20x2xf32>, vector<1x2x20x2xf32> -> vector<1x20x20x2xf32>
    %55 = vector.extract_strided_slice %54 {offsets = [0, 0, 0, 0], sizes = [1, 16, 16, 2], strides = [1, 1, 1, 1]} : vector<1x20x20x2xf32> to vector<1x16x16x2xf32>
    %56 = vector.extract_strided_slice %54 {offsets = [0, 0, 1, 0], sizes = [1, 16, 16, 2], strides = [1, 1, 1, 1]} : vector<1x20x20x2xf32> to vector<1x16x16x2xf32>
    %57 = vector.extract_strided_slice %54 {offsets = [0, 0, 2, 0], sizes = [1, 16, 16, 2], strides = [1, 1, 1, 1]} : vector<1x20x20x2xf32> to vector<1x16x16x2xf32>
    %58 = vector.extract_strided_slice %54 {offsets = [0, 0, 3, 0], sizes = [1, 16, 16, 2], strides = [1, 1, 1, 1]} : vector<1x20x20x2xf32> to vector<1x16x16x2xf32>
    %59 = vector.extract_strided_slice %54 {offsets = [0, 0, 4, 0], sizes = [1, 16, 16, 2], strides = [1, 1, 1, 1]} : vector<1x20x20x2xf32> to vector<1x16x16x2xf32>
    %60 = vector.extract_strided_slice %54 {offsets = [0, 1, 0, 0], sizes = [1, 16, 16, 2], strides = [1, 1, 1, 1]} : vector<1x20x20x2xf32> to vector<1x16x16x2xf32>
    %61 = vector.extract_strided_slice %54 {offsets = [0, 1, 1, 0], sizes = [1, 16, 16, 2], strides = [1, 1, 1, 1]} : vector<1x20x20x2xf32> to vector<1x16x16x2xf32>
    %62 = vector.extract_strided_slice %54 {offsets = [0, 1, 2, 0], sizes = [1, 16, 16, 2], strides = [1, 1, 1, 1]} : vector<1x20x20x2xf32> to vector<1x16x16x2xf32>
    %63 = vector.extract_strided_slice %54 {offsets = [0, 1, 3, 0], sizes = [1, 16, 16, 2], strides = [1, 1, 1, 1]} : vector<1x20x20x2xf32> to vector<1x16x16x2xf32>
    %64 = vector.extract_strided_slice %54 {offsets = [0, 1, 4, 0], sizes = [1, 16, 16, 2], strides = [1, 1, 1, 1]} : vector<1x20x20x2xf32> to vector<1x16x16x2xf32>
    %65 = vector.extract_strided_slice %54 {offsets = [0, 2, 0, 0], sizes = [1, 16, 16, 2], strides = [1, 1, 1, 1]} : vector<1x20x20x2xf32> to vector<1x16x16x2xf32>
    %66 = vector.extract_strided_slice %54 {offsets = [0, 2, 1, 0], sizes = [1, 16, 16, 2], strides = [1, 1, 1, 1]} : vector<1x20x20x2xf32> to vector<1x16x16x2xf32>
    %67 = vector.extract_strided_slice %54 {offsets = [0, 2, 2, 0], sizes = [1, 16, 16, 2], strides = [1, 1, 1, 1]} : vector<1x20x20x2xf32> to vector<1x16x16x2xf32>
    %68 = vector.extract_strided_slice %54 {offsets = [0, 2, 3, 0], sizes = [1, 16, 16, 2], strides = [1, 1, 1, 1]} : vector<1x20x20x2xf32> to vector<1x16x16x2xf32>
    %69 = vector.extract_strided_slice %54 {offsets = [0, 2, 4, 0], sizes = [1, 16, 16, 2], strides = [1, 1, 1, 1]} : vector<1x20x20x2xf32> to vector<1x16x16x2xf32>
    %70 = vector.extract_strided_slice %54 {offsets = [0, 3, 0, 0], sizes = [1, 16, 16, 2], strides = [1, 1, 1, 1]} : vector<1x20x20x2xf32> to vector<1x16x16x2xf32>
    %71 = vector.extract_strided_slice %54 {offsets = [0, 3, 1, 0], sizes = [1, 16, 16, 2], strides = [1, 1, 1, 1]} : vector<1x20x20x2xf32> to vector<1x16x16x2xf32>
    %72 = vector.extract_strided_slice %54 {offsets = [0, 3, 2, 0], sizes = [1, 16, 16, 2], strides = [1, 1, 1, 1]} : vector<1x20x20x2xf32> to vector<1x16x16x2xf32>
    %73 = vector.extract_strided_slice %54 {offsets = [0, 3, 3, 0], sizes = [1, 16, 16, 2], strides = [1, 1, 1, 1]} : vector<1x20x20x2xf32> to vector<1x16x16x2xf32>
    %74 = vector.extract_strided_slice %54 {offsets = [0, 3, 4, 0], sizes = [1, 16, 16, 2], strides = [1, 1, 1, 1]} : vector<1x20x20x2xf32> to vector<1x16x16x2xf32>
    %75 = vector.extract_strided_slice %54 {offsets = [0, 4, 0, 0], sizes = [1, 16, 16, 2], strides = [1, 1, 1, 1]} : vector<1x20x20x2xf32> to vector<1x16x16x2xf32>
    %76 = vector.extract_strided_slice %54 {offsets = [0, 4, 1, 0], sizes = [1, 16, 16, 2], strides = [1, 1, 1, 1]} : vector<1x20x20x2xf32> to vector<1x16x16x2xf32>
    %77 = vector.extract_strided_slice %54 {offsets = [0, 4, 2, 0], sizes = [1, 16, 16, 2], strides = [1, 1, 1, 1]} : vector<1x20x20x2xf32> to vector<1x16x16x2xf32>
    %78 = vector.extract_strided_slice %54 {offsets = [0, 4, 3, 0], sizes = [1, 16, 16, 2], strides = [1, 1, 1, 1]} : vector<1x20x20x2xf32> to vector<1x16x16x2xf32>
    %79 = vector.extract_strided_slice %54 {offsets = [0, 4, 4, 0], sizes = [1, 16, 16, 2], strides = [1, 1, 1, 1]} : vector<1x20x20x2xf32> to vector<1x16x16x2xf32>
    %80 = tpu.concatenate %55, %56, %57, %58, %59, %60, %61, %62, %63, %64, %65, %66, %67, %68, %69, %70 in 3 : vector<1x16x16x2xf32>, vector<1x16x16x2xf32>, vector<1x16x16x2xf32>, vector<1x16x16x2xf32>, vector<1x16x16x2xf32>, vector<1x16x16x2xf32>, vector<1x16x16x2xf32>, vector<1x16x16x2xf32>, vector<1x16x16x2xf32>, vector<1x16x16x2xf32>, vector<1x16x16x2xf32>, vector<1x16x16x2xf32>, vector<1x16x16x2xf32>, vector<1x16x16x2xf32>, vector<1x16x16x2xf32>, vector<1x16x16x2xf32> -> vector<1x16x16x32xf32>
    %81 = tpu.concatenate %71, %72, %73, %74, %75, %76, %77, %78, %79 in 3 : vector<1x16x16x2xf32>, vector<1x16x16x2xf32>, vector<1x16x16x2xf32>, vector<1x16x16x2xf32>, vector<1x16x16x2xf32>, vector<1x16x16x2xf32>, vector<1x16x16x2xf32>, vector<1x16x16x2xf32>, vector<1x16x16x2xf32> -> vector<1x16x16x18xf32>
    %82 = tpu.concatenate %80, %81 in 3 : vector<1x16x16x32xf32>, vector<1x16x16x18xf32> -> vector<1x16x16x50xf32>
    %83 = vector.shape_cast %82 : vector<1x16x16x50xf32> to vector<256x50xf32>
    %84 = arith.truncf %83 : vector<256x50xf32> to vector<256x50xbf16>
    %cst_33 = arith.constant dense<0.000000e+00> : vector<4x256xf32>
    %85 = tpu.matmul %49, %84, %cst_33 {dimension_numbers = #tpu.dot_dimension_numbers<[1], [1], [0], [0], [0, 0, 1, 0], [], []>} : vector<4x50xbf16>, vector<256x50xbf16>, vector<4x256xf32> -> vector<4x256xf32>
    %86 = vector.broadcast %50 : vector<4x1xf32> to vector<4x256xf32>
    %87 = arith.addf %85, %86 : vector<4x256xf32>
    %cst_34 = arith.constant 0.000000e+00 : f32
    %88 = vector.broadcast %cst_34 : f32 to vector<4x256xf32>
    %89 = arith.maximumf %87, %88 : vector<4x256xf32>
    %c0_35 = arith.constant 0 : index
    %c12 = arith.constant 12 : index
    %c0_36 = arith.constant 0 : index
    %90 = vector.load %arg12[%c0_35, %c12, %c0_36] : memref<1x20x256xf32, #tpu.memory_space<vmem>>, vector<1x4x256xf32>
    %91 = vector.shape_cast %90 : vector<1x4x256xf32> to vector<4x256xf32>
    %92 = vector.shape_cast %89 : vector<4x256xf32> to vector<1x4x256xf32>
    tpu.vector_store %arg12[%c0_35, %c12, %c0_36], %92 {strides = array<i32>} : memref<1x20x256xf32, #tpu.memory_space<vmem>>, vector<1x4x256xf32>,
    %93 = arith.extf %0 : vector<1x16x16x4xbf16> to vector<1x16x16x4xf32>
    %cst_37 = arith.constant 0xFF800000 : f32
    %94 = vector.broadcast %cst_37 : f32 to vector<1x16x1x4xf32>
    %95 = tpu.concatenate %94, %93, %94 in 2 : vector<1x16x1x4xf32>, vector<1x16x16x4xf32>, vector<1x16x1x4xf32> -> vector<1x16x18x4xf32>
    %cst_38 = arith.constant 0xFF800000 : f32
    %96 = vector.broadcast %cst_38 : f32 to vector<1x1x18x4xf32>
    %97 = tpu.concatenate %96, %95, %96 in 1 : vector<1x1x18x4xf32>, vector<1x16x18x4xf32>, vector<1x1x18x4xf32> -> vector<1x18x18x4xf32>
    %98 = vector.extract_strided_slice %97 {offsets = [0, 0, 0, 0], sizes = [1, 16, 16, 4], strides = [1, 1, 1, 1]} : vector<1x18x18x4xf32> to vector<1x16x16x4xf32>
    %99 = vector.extract_strided_slice %97 {offsets = [0, 0, 1, 0], sizes = [1, 16, 16, 4], strides = [1, 1, 1, 1]} : vector<1x18x18x4xf32> to vector<1x16x16x4xf32>
    %100 = arith.maximumf %98, %99 : vector<1x16x16x4xf32>
    %101 = vector.extract_strided_slice %97 {offsets = [0, 0, 2, 0], sizes = [1, 16, 16, 4], strides = [1, 1, 1, 1]} : vector<1x18x18x4xf32> to vector<1x16x16x4xf32>
    %102 = arith.maximumf %100, %101 : vector<1x16x16x4xf32>
    %103 = vector.extract_strided_slice %97 {offsets = [0, 1, 0, 0], sizes = [1, 16, 16, 4], strides = [1, 1, 1, 1]} : vector<1x18x18x4xf32> to vector<1x16x16x4xf32>
    %104 = arith.maximumf %102, %103 : vector<1x16x16x4xf32>
    %105 = vector.extract_strided_slice %97 {offsets = [0, 1, 1, 0], sizes = [1, 16, 16, 4], strides = [1, 1, 1, 1]} : vector<1x18x18x4xf32> to vector<1x16x16x4xf32>
    %106 = arith.maximumf %104, %105 : vector<1x16x16x4xf32>
    %107 = vector.extract_strided_slice %97 {offsets = [0, 1, 2, 0], sizes = [1, 16, 16, 4], strides = [1, 1, 1, 1]} : vector<1x18x18x4xf32> to vector<1x16x16x4xf32>
    %108 = arith.maximumf %106, %107 : vector<1x16x16x4xf32>
    %109 = vector.extract_strided_slice %97 {offsets = [0, 2, 0, 0], sizes = [1, 16, 16, 4], strides = [1, 1, 1, 1]} : vector<1x18x18x4xf32> to vector<1x16x16x4xf32>
    %110 = arith.maximumf %108, %109 : vector<1x16x16x4xf32>
    %111 = vector.extract_strided_slice %97 {offsets = [0, 2, 1, 0], sizes = [1, 16, 16, 4], strides = [1, 1, 1, 1]} : vector<1x18x18x4xf32> to vector<1x16x16x4xf32>
    %112 = arith.maximumf %110, %111 : vector<1x16x16x4xf32>
    %113 = vector.extract_strided_slice %97 {offsets = [0, 2, 2, 0], sizes = [1, 16, 16, 4], strides = [1, 1, 1, 1]} : vector<1x18x18x4xf32> to vector<1x16x16x4xf32>
    %114 = arith.maximumf %112, %113 : vector<1x16x16x4xf32>
    %115 = vector.shape_cast %114 : vector<1x16x16x4xf32> to vector<256x4xf32>
    %116 = arith.truncf %115 : vector<256x4xf32> to vector<256x4xbf16>
    %c0_39 = arith.constant 0 : index
    %c0_40 = arith.constant 0 : index
    %117 = vector.load %arg10[%c0_39, %c0_40] : memref<4x4xbf16, #tpu.memory_space<vmem>>, vector<4x4xbf16>
    %c0_41 = arith.constant 0 : index
    %c0_42 = arith.constant 0 : index
    %118 = vector.load %arg11[%c0_41, %c0_42] : memref<4x1xf32, #tpu.memory_space<vmem>>, vector<4x1xf32>
    %cst_43 = arith.constant dense<0.000000e+00> : vector<4x256xf32>
    %119 = tpu.matmul %117, %116, %cst_43 {dimension_numbers = #tpu.dot_dimension_numbers<[1], [1], [0], [0], [0, 0, 1, 0], [], []>} : vector<4x4xbf16>, vector<256x4xbf16>, vector<4x256xf32> -> vector<4x256xf32>
    %120 = vector.broadcast %118 : vector<4x1xf32> to vector<4x256xf32>
    %121 = arith.addf %119, %120 : vector<4x256xf32>
    %cst_44 = arith.constant 0.000000e+00 : f32
    %122 = vector.broadcast %cst_44 : f32 to vector<4x256xf32>
    %123 = arith.maximumf %121, %122 : vector<4x256xf32>
    %c0_45 = arith.constant 0 : index
    %c16 = arith.constant 16 : index
    %c0_46 = arith.constant 0 : index
    %124 = vector.load %arg12[%c0_45, %c16, %c0_46] : memref<1x20x256xf32, #tpu.memory_space<vmem>>, vector<1x4x256xf32>
    %125 = vector.shape_cast %124 : vector<1x4x256xf32> to vector<4x256xf32>
    %126 = vector.shape_cast %123 : vector<4x256xf32> to vector<1x4x256xf32>
    tpu.vector_store %arg12[%c0_45, %c16, %c0_46], %126 {strides = array<i32>} : memref<1x20x256xf32, #tpu.memory_space<vmem>>, vector<1x4x256xf32>,
    return
  }
  func.func @transform_0(%arg0: i32) -> (i32, i32, i32, i32) {
    %c0_i32 = arith.constant 0 : i32
    %c0_i32_0 = arith.constant 0 : i32
    %c0_i32_1 = arith.constant 0 : i32
    %c0_i32_2 = arith.constant 0 : i32
    return %arg0, %c0_i32, %c0_i32_0, %c0_i32_1 : i32, i32, i32, i32
  }
  func.func @transform_1(%arg0: i32) -> (i32, i32) {
    %c0_i32 = arith.constant 0 : i32
    %c0_i32_0 = arith.constant 0 : i32
    %c0_i32_1 = arith.constant 0 : i32
    return %c0_i32, %c0_i32_0 : i32, i32
  }
  func.func @transform_2(%arg0: i32) -> (i32, i32) {
    %c0_i32 = arith.constant 0 : i32
    %c0_i32_0 = arith.constant 0 : i32
    %c0_i32_1 = arith.constant 0 : i32
    return %c0_i32, %c0_i32_0 : i32, i32
  }
  func.func @transform_3(%arg0: i32) -> (i32, i32) {
    %c0_i32 = arith.constant 0 : i32
    %c0_i32_0 = arith.constant 0 : i32
    %c0_i32_1 = arith.constant 0 : i32
    return %c0_i32, %c0_i32_0 : i32, i32
  }
  func.func @transform_4(%arg0: i32) -> (i32, i32) {
    %c0_i32 = arith.constant 0 : i32
    %c0_i32_0 = arith.constant 0 : i32
    %c0_i32_1 = arith.constant 0 : i32
    return %c0_i32, %c0_i32_0 : i32, i32
  }
  func.func @transform_5(%arg0: i32) -> (i32, i32) {
    %c0_i32 = arith.constant 0 : i32
    %c0_i32_0 = arith.constant 0 : i32
    %c0_i32_1 = arith.constant 0 : i32
    return %c0_i32, %c0_i32_0 : i32, i32
  }
  func.func @transform_6(%arg0: i32) -> (i32, i32) {
    %c0_i32 = arith.constant 0 : i32
    %c0_i32_0 = arith.constant 0 : i32
    %c0_i32_1 = arith.constant 0 : i32
    return %c0_i32, %c0_i32_0 : i32, i32
  }
  func.func @transform_7(%arg0: i32) -> (i32, i32) {
    %c0_i32 = arith.constant 0 : i32
    %c0_i32_0 = arith.constant 0 : i32
    %c0_i32_1 = arith.constant 0 : i32
    return %c0_i32, %c0_i32_0 : i32, i32
  }
  func.func @transform_8(%arg0: i32) -> (i32, i32) {
    %c0_i32 = arith.constant 0 : i32
    %c0_i32_0 = arith.constant 0 : i32
    %c0_i32_1 = arith.constant 0 : i32
    return %c0_i32, %c0_i32_0 : i32, i32
  }
  func.func @transform_9(%arg0: i32) -> (i32, i32) {
    %c0_i32 = arith.constant 0 : i32
    %c0_i32_0 = arith.constant 0 : i32
    %c0_i32_1 = arith.constant 0 : i32
    return %c0_i32, %c0_i32_0 : i32, i32
  }
  func.func @transform_10(%arg0: i32) -> (i32, i32) {
    %c0_i32 = arith.constant 0 : i32
    %c0_i32_0 = arith.constant 0 : i32
    %c0_i32_1 = arith.constant 0 : i32
    return %c0_i32, %c0_i32_0 : i32, i32
  }
  func.func @transform_11(%arg0: i32) -> (i32, i32, i32) {
    %c0_i32 = arith.constant 0 : i32
    %c0_i32_0 = arith.constant 0 : i32
    %c0_i32_1 = arith.constant 0 : i32
    return %arg0, %c0_i32, %c0_i32_0 : i32, i32, i32
  }
}

</mosaic_0001>

<llo_original>
// kernel: tpu_custom_call.1
$region0: #{tpu_custom_call.1}
  #allocation0 [shape = 'u32[]', space=smem, size = 0x4, offset = 0x4, fixed_abs, tag = 'smem constant byte address 0x4 - core index']
  #allocation1 [shape = 'u32[144,128]{1,0:T(1,128)}', space=vmem, size = 0x12000, scoped, tag = 'internal scratch']
  %s0 = inlined_call_operand.vmem [shape: bf16[2,16,16,4], index: 0, kind: input, shape index: {}]
  %s1 = inlined_call_operand.vmem [shape: bf16[4,6], index: 1, kind: input, shape index: {}]
  %s2 = inlined_call_operand.vmem [shape: f32[1,6], index: 2, kind: input, shape index: {}]
  %s3 = inlined_call_operand.vmem [shape: bf16[4,4], index: 3, kind: input, shape index: {}]
  %s4 = inlined_call_operand.vmem [shape: f32[4,1], index: 4, kind: input, shape index: {}]
  %s5 = inlined_call_operand.vmem [shape: bf16[8,36], index: 5, kind: input, shape index: {}]
  %s6 = inlined_call_operand.vmem [shape: f32[8,1], index: 6, kind: input, shape index: {}]
  %s7 = inlined_call_operand.vmem [shape: bf16[4,50], index: 7, kind: input, shape index: {}]
  %s8 = inlined_call_operand.vmem [shape: f32[4,1], index: 8, kind: input, shape index: {}]
  %s9 = inlined_call_operand.vmem [shape: bf16[4,4], index: 9, kind: input, shape index: {}]
  %s10 = inlined_call_operand.vmem [shape: f32[4,1], index: 10, kind: input, shape index: {}]
  %s11 = inlined_call_operand.vmem [shape: f32[2,20,256], index: 11, kind: output, shape index: {}]
  %s12 = sld [smem:[#allocation0]]
  $region77: #{tpu_custom_call.1} parent=0
    _
  %s14 = ssub.s32 1, %s12
  %s15 = scalar_select 0, %s14, %s12
  loop: start=0, step=1, limit=4
  $region2: #{tpu_custom_call.1} parent=0 // loop_pre_header
    _
  $region3: #{tpu_custom_call.1} parent=0 // loop_header
    %s17 = sphi 0, %s21
    %p18 = scmp.ge.s32.totalorder %s17, 4
    %s27 = sphi 0, %s29
    %s30 = sphi 0, %s27
    %s31 = sphi 0, %s30
    %s47 = sphi 0, %s31
    %s51 = sphi 0, %s51
    %s53 = sphi 0, %s51
    %s54 = sphi 0, %s53
    %s68 = sphi 0, %s54
    %s72 = sphi 0, %s72
    %s74 = sphi 0, %s72
    %s75 = sphi 0, %s74
    %s89 = sphi 0, %s75
    %s93 = sphi 0, %s93
    %s95 = sphi 0, %s93
    %s96 = sphi 0, %s95
    %s110 = sphi 0, %s96
    %s114 = sphi 0, %s114
    %s116 = sphi 0, %s114
    %s117 = sphi 0, %s116
    %s131 = sphi 0, %s117
    %s135 = sphi 0, %s135
    %s137 = sphi 0, %s135
    %s138 = sphi 0, %s137
    %s152 = sphi 0, %s138
    %s156 = sphi 0, %s156
    %s158 = sphi 0, %s156
    %s159 = sphi 0, %s158
    %s173 = sphi 0, %s159
    %s177 = sphi 0, %s177
    %s179 = sphi 0, %s177
    %s180 = sphi 0, %s179
    %s194 = sphi 0, %s180
    %s198 = sphi 0, %s198
    %s200 = sphi 0, %s198
    %s201 = sphi 0, %s200
    %s215 = sphi 0, %s201
    %s219 = sphi 0, %s219
    %s221 = sphi 0, %s219
    %s222 = sphi 0, %s221
    %s236 = sphi 0, %s222
    %s240 = sphi 0, %s240
    %s242 = sphi 0, %s240
    %s243 = sphi 0, %s242
    %s257 = sphi 0, %s243
    %s263 = sphi 0, %s265
    %s266 = sphi 0, %s263
    %s267 = sphi 0, %s266
    %s283 = sphi 0, %s267
  $region4: #{tpu_custom_call.1} parent=0 // loop_header_branch
    %20 = sbr.rel (%p18) target = $region8
  $region5: #{tpu_custom_call.1} parent=0 // loop_body
    %s22 = ssub.s32 %s17, 1
    %s23 = ssub.s32 %s17, 2
    %s24 = sadd.s32 %s17, 1
    %s25 = ssub.s32 %s17, %s24
    %p26 = scmp.eq.s32.totalorder %s25, 0
    %s28 = sadd.s32 %s27, 1
    %s29 = scalar_select %p26, %s27, %s28
    %p32 = pneg %p26
    %p33 = scmp.eq.s32.totalorder %s17, 1
    %p34 = por %p32, %p33
    %p35 = scmp.ne.s32.totalorder %s27, %s30
    %p36 = scmp.eq.s32.totalorder %s17, 0
    %p37 = por %p35, %p36
    %p38 = scmp.ne.s32.totalorder %s27, %s30
    %p39 = scmp.eq.s32.totalorder %s22, 1
    %p40 = por %p38, %p39
    %p41 = scmp.ne.s32.totalorder %s30, %s31
    %p42 = scmp.eq.s32.totalorder %s22, 0
    %p43 = por %p41, %p42
    %p44 = scmp.ne.s32.totalorder %s30, %s31
    %p45 = scmp.eq.s32.totalorder %s23, 1
    %p46 = por %p44, %p45
    %p48 = scmp.ne.s32.totalorder %s31, %s47
    %p49 = scmp.eq.s32.totalorder %s23, 0
    %p50 = por %p48, %p49
    %s52 = sadd.s32 %s51, 1
    %p55 = scmp.eq.s32.totalorder %s17, 1
    %p56 = scmp.ne.s32.totalorder %s51, %s53
    %p57 = scmp.eq.s32.totalorder %s17, 0
    %p58 = por %p56, %p57
    %p59 = scmp.ne.s32.totalorder %s51, %s53
    %p60 = scmp.eq.s32.totalorder %s22, 1
    %p61 = por %p59, %p60
    %p62 = scmp.ne.s32.totalorder %s53, %s54
    %p63 = scmp.eq.s32.totalorder %s22, 0
    %p64 = por %p62, %p63
    %p65 = scmp.ne.s32.totalorder %s53, %s54
    %p66 = scmp.eq.s32.totalorder %s23, 1
    %p67 = por %p65, %p66
    %p69 = scmp.ne.s32.totalorder %s54, %s68
    %p70 = scmp.eq.s32.totalorder %s23, 0
    %p71 = por %p69, %p70
    %s73 = sadd.s32 %s72, 1
    %p76 = scmp.eq.s32.totalorder %s17, 1
    %p77 = scmp.ne.s32.totalorder %s72, %s74
    %p78 = scmp.eq.s32.totalorder %s17, 0
    %p79 = por %p77, %p78
    %p80 = scmp.ne.s32.totalorder %s72, %s74
    %p81 = scmp.eq.s32.totalorder %s22, 1
    %p82 = por %p80, %p81
    %p83 = scmp.ne.s32.totalorder %s74, %s75
    %p84 = scmp.eq.s32.totalorder %s22, 0
    %p85 = por %p83, %p84
    %p86 = scmp.ne.s32.totalorder %s74, %s75
    %p87 = scmp.eq.s32.totalorder %s23, 1
    %p88 = por %p86, %p87
    %p90 = scmp.ne.s32.totalorder %s75, %s89
    %p91 = scmp.eq.s32.totalorder %s23, 0
    %p92 = por %p90, %p91
    %s94 = sadd.s32 %s93, 1
    %p97 = scmp.eq.s32.totalorder %s17, 1
    %p98 = scmp.ne.s32.totalorder %s93, %s95
    %p99 = scmp.eq.s32.totalorder %s17, 0
    %p100 = por %p98, %p99
    %p101 = scmp.ne.s32.totalorder %s93, %s95
    %p102 = scmp.eq.s32.totalorder %s22, 1
    %p103 = por %p101, %p102
    %p104 = scmp.ne.s32.totalorder %s95, %s96
    %p105 = scmp.eq.s32.totalorder %s22, 0
    %p106 = por %p104, %p105
    %p107 = scmp.ne.s32.totalorder %s95, %s96
    %p108 = scmp.eq.s32.totalorder %s23, 1
    %p109 = por %p107, %p108
    %p111 = scmp.ne.s32.totalorder %s96, %s110
    %p112 = scmp.eq.s32.totalorder %s23, 0
    %p113 = por %p111, %p112
    %s115 = sadd.s32 %s114, 1
    %p118 = scmp.eq.s32.totalorder %s17, 1
    %p119 = scmp.ne.s32.totalorder %s114, %s116
    %p120 = scmp.eq.s32.totalorder %s17, 0
    %p121 = por %p119, %p120
    %p122 = scmp.ne.s32.totalorder %s114, %s116
    %p123 = scmp.eq.s32.totalorder %s22, 1
    %p124 = por %p122, %p123
    %p125 = scmp.ne.s32.totalorder %s116, %s117
    %p126 = scmp.eq.s32.totalorder %s22, 0
    %p127 = por %p125, %p126
    %p128 = scmp.ne.s32.totalorder %s116, %s117
    %p129 = scmp.eq.s32.totalorder %s23, 1
    %p130 = por %p128, %p129
    %p132 = scmp.ne.s32.totalorder %s117, %s131
    %p133 = scmp.eq.s32.totalorder %s23, 0
    %p134 = por %p132, %p133
    %s136 = sadd.s32 %s135, 1
    %p139 = scmp.eq.s32.totalorder %s17, 1
    %p140 = scmp.ne.s32.totalorder %s135, %s137
    %p141 = scmp.eq.s32.totalorder %s17, 0
    %p142 = por %p140, %p141
    %p143 = scmp.ne.s32.totalorder %s135, %s137
    %p144 = scmp.eq.s32.totalorder %s22, 1
    %p145 = por %p143, %p144
    %p146 = scmp.ne.s32.totalorder %s137, %s138
    %p147 = scmp.eq.s32.totalorder %s22, 0
    %p148 = por %p146, %p147
    %p149 = scmp.ne.s32.totalorder %s137, %s138
    %p150 = scmp.eq.s32.totalorder %s23, 1
    %p151 = por %p149, %p150
    %p153 = scmp.ne.s32.totalorder %s138, %s152
    %p154 = scmp.eq.s32.totalorder %s23, 0
    %p155 = por %p153, %p154
    %s157 = sadd.s32 %s156, 1
    %p160 = scmp.eq.s32.totalorder %s17, 1
    %p161 = scmp.ne.s32.totalorder %s156, %s158
    %p162 = scmp.eq.s32.totalorder %s17, 0
    %p163 = por %p161, %p162
    %p164 = scmp.ne.s32.totalorder %s156, %s158
    %p165 = scmp.eq.s32.totalorder %s22, 1
    %p166 = por %p164, %p165
    %p167 = scmp.ne.s32.totalorder %s158, %s159
    %p168 = scmp.eq.s32.totalorder %s22, 0
    %p169 = por %p167, %p168
    %p170 = scmp.ne.s32.totalorder %s158, %s159
    %p171 = scmp.eq.s32.totalorder %s23, 1
    %p172 = por %p170, %p171
    %p174 = scmp.ne.s32.totalorder %s159, %s173
    %p175 = scmp.eq.s32.totalorder %s23, 0
    %p176 = por %p174, %p175
    %s178 = sadd.s32 %s177, 1
    %p181 = scmp.eq.s32.totalorder %s17, 1
    %p182 = scmp.ne.s32.totalorder %s177, %s179
    %p183 = scmp.eq.s32.totalorder %s17, 0
    %p184 = por %p182, %p183
    %p185 = scmp.ne.s32.totalorder %s177, %s179
    %p186 = scmp.eq.s32.totalorder %s22, 1
    %p187 = por %p185, %p186
    %p188 = scmp.ne.s32.totalorder %s179, %s180
    %p189 = scmp.eq.s32.totalorder %s22, 0
    %p190 = por %p188, %p189
    %p191 = scmp.ne.s32.totalorder %s179, %s180
    %p192 = scmp.eq.s32.totalorder %s23, 1
    %p193 = por %p191, %p192
    %p195 = scmp.ne.s32.totalorder %s180, %s194
    %p196 = scmp.eq.s32.totalorder %s23, 0
    %p197 = por %p195, %p196
    %s199 = sadd.s32 %s198, 1
    %p202 = scmp.eq.s32.totalorder %s17, 1
    %p203 = scmp.ne.s32.totalorder %s198, %s200
    %p204 = scmp.eq.s32.totalorder %s17, 0
    %p205 = por %p203, %p204
    %p206 = scmp.ne.s32.totalorder %s198, %s200
    %p207 = scmp.eq.s32.totalorder %s22, 1
    %p208 = por %p206, %p207
    %p209 = scmp.ne.s32.totalorder %s200, %s201
    %p210 = scmp.eq.s32.totalorder %s22, 0
    %p211 = por %p209, %p210
    %p212 = scmp.ne.s32.totalorder %s200, %s201
    %p213 = scmp.eq.s32.totalorder %s23, 1
    %p214 = por %p212, %p213
    %p216 = scmp.ne.s32.totalorder %s201, %s215
    %p217 = scmp.eq.s32.totalorder %s23, 0
    %p218 = por %p216, %p217
    %s220 = sadd.s32 %s219, 1
    %p223 = scmp.eq.s32.totalorder %s17, 1
    %p224 = scmp.ne.s32.totalorder %s219, %s221
    %p225 = scmp.eq.s32.totalorder %s17, 0
    %p226 = por %p224, %p225
    %p227 = scmp.ne.s32.totalorder %s219, %s221
    %p228 = scmp.eq.s32.totalorder %s22, 1
    %p229 = por %p227, %p228
    %p230 = scmp.ne.s32.totalorder %s221, %s222
    %p231 = scmp.eq.s32.totalorder %s22, 0
    %p232 = por %p230, %p231
    %p233 = scmp.ne.s32.totalorder %s221, %s222
    %p234 = scmp.eq.s32.totalorder %s23, 1
    %p235 = por %p233, %p234
    %p237 = scmp.ne.s32.totalorder %s222, %s236
    %p238 = scmp.eq.s32.totalorder %s23, 0
    %p239 = por %p237, %p238
    %s241 = sadd.s32 %s240, 1
    %p244 = scmp.eq.s32.totalorder %s17, 1
    %p245 = scmp.ne.s32.totalorder %s240, %s242
    %p246 = scmp.eq.s32.totalorder %s17, 0
    %p247 = por %p245, %p246
    %p248 = scmp.ne.s32.totalorder %s240, %s242
    %p249 = scmp.eq.s32.totalorder %s22, 1
    %p250 = por %p248, %p249
    %p251 = scmp.ne.s32.totalorder %s242, %s243
    %p252 = scmp.eq.s32.totalorder %s22, 0
    %p253 = por %p251, %p252
    %p254 = scmp.ne.s32.totalorder %s242, %s243
    %p255 = scmp.eq.s32.totalorder %s23, 1
    %p256 = por %p254, %p255
    %p258 = scmp.ne.s32.totalorder %s243, %s257
    %p259 = scmp.eq.s32.totalorder %s23, 0
    %p260 = por %p258, %p259
    %s261 = ssub.s32 %s17, %s24
    %p262 = scmp.eq.s32.totalorder %s261, 0
    %s264 = sadd.s32 %s263, 1
    %s265 = scalar_select %p262, %s263, %s264
    %p268 = pneg %p262
    %p269 = scmp.eq.s32.totalorder %s17, 1
    %p270 = por %p268, %p269
    %p271 = scmp.ne.s32.totalorder %s263, %s266
    %p272 = scmp.eq.s32.totalorder %s17, 0
    %p273 = por %p271, %p272
    %p274 = scmp.ne.s32.totalorder %s263, %s266
    %p275 = scmp.eq.s32.totalorder %s22, 1
    %p276 = por %p274, %p275
    %p277 = scmp.ne.s32.totalorder %s266, %s267
    %p278 = scmp.eq.s32.totalorder %s22, 0
    %p279 = por %p277, %p278
    %p280 = scmp.ne.s32.totalorder %s266, %s267
    %p281 = scmp.eq.s32.totalorder %s23, 1
    %p282 = por %p280, %p281
    %p284 = scmp.ne.s32.totalorder %s267, %s283
    %p285 = scmp.eq.s32.totalorder %s23, 0
    %p286 = por %p284, %p285
    %p287 = scmp.le.s32.totalorder 1, %s17
    %p288 = scmp.lt.s32.totalorder %s17, 3
    %p289 = pnand %p287, %p288
    %p290 = pneg %p289
    // Predicated region
    $region9: #{tpu_custom_call.1} parent=5 // pred_check
      _
    $region10: #{tpu_custom_call.1} parent=5 // pred_check_branch
      %292 = sbr.rel (%p289) target = $region12
    $region11: #{tpu_custom_call.1} parent=5 // pred_region
      %s293 = ssub.s32 %s17, 1
      // Predicated region
      $region13: #{tpu_custom_call.1} parent=11 // pred_check
        %p294 = pneg %p64
      $region14: #{tpu_custom_call.1} parent=11 // pred_check_branch
        %296 = sbr.rel (%p294) target = $region16
      $region15: #{tpu_custom_call.1} parent=11 // pred_region
        _
      $region16: #{tpu_custom_call.1} parent=11 // pred_fallthru
        _
      // Predicated region
      $region17: #{tpu_custom_call.1} parent=11 // pred_check
        %p297 = pneg %p85
      $region18: #{tpu_custom_call.1} parent=11 // pred_check_branch
        %299 = sbr.rel (%p297) target = $region20
      $region19: #{tpu_custom_call.1} parent=11 // pred_region
        _
      $region20: #{tpu_custom_call.1} parent=11 // pred_fallthru
        _
      // Predicated region
      $region21: #{tpu_custom_call.1} parent=11 // pred_check
        %p300 = pneg %p106
      $region22: #{tpu_custom_call.1} parent=11 // pred_check_branch
        %302 = sbr.rel (%p300) target = $region24
      $region23: #{tpu_custom_call.1} parent=11 // pred_region
        _
      $region24: #{tpu_custom_call.1} parent=11 // pred_fallthru
        _
      // Predicated region
      $region25: #{tpu_custom_call.1} parent=11 // pred_check
        %p303 = pneg %p127
      $region26: #{tpu_custom_call.1} parent=11 // pred_check_branch
        %305 = sbr.rel (%p303) target = $region28
      $region27: #{tpu_custom_call.1} parent=11 // pred_region
        _
      $region28: #{tpu_custom_call.1} parent=11 // pred_fallthru
        _
      // Predicated region
      $region29: #{tpu_custom_call.1} parent=11 // pred_check
        %p306 = pneg %p148
      $region30: #{tpu_custom_call.1} parent=11 // pred_check_branch
        %308 = sbr.rel (%p306) target = $region32
      $region31: #{tpu_custom_call.1} parent=11 // pred_region
        _
      $region32: #{tpu_custom_call.1} parent=11 // pred_fallthru
        _
      // Predicated region
      $region33: #{tpu_custom_call.1} parent=11 // pred_check
        %p309 = pneg %p169
      $region34: #{tpu_custom_call.1} parent=11 // pred_check_branch
        %311 = sbr.rel (%p309) target = $region36
      $region35: #{tpu_custom_call.1} parent=11 // pred_region
        _
      $region36: #{tpu_custom_call.1} parent=11 // pred_fallthru
        _
      // Predicated region
      $region37: #{tpu_custom_call.1} parent=11 // pred_check
        %p312 = pneg %p190
      $region38: #{tpu_custom_call.1} parent=11 // pred_check_branch
        %314 = sbr.rel (%p312) target = $region40
      $region39: #{tpu_custom_call.1} parent=11 // pred_region
        _
      $region40: #{tpu_custom_call.1} parent=11 // pred_fallthru
        _
      // Predicated region
      $region41: #{tpu_custom_call.1} parent=11 // pred_check
        %p315 = pneg %p211
      $region42: #{tpu_custom_call.1} parent=11 // pred_check_branch
        %317 = sbr.rel (%p315) target = $region44
      $region43: #{tpu_custom_call.1} parent=11 // pred_region
        _
      $region44: #{tpu_custom_call.1} parent=11 // pred_fallthru
        _
      // Predicated region
      $region45: #{tpu_custom_call.1} parent=11 // pred_check
        %p318 = pneg %p232
      $region46: #{tpu_custom_call.1} parent=11 // pred_check_branch
        %320 = sbr.rel (%p318) target = $region48
      $region47: #{tpu_custom_call.1} parent=11 // pred_region
        _
      $region48: #{tpu_custom_call.1} parent=11 // pred_fallthru
        _
      // Predicated region
      $region49: #{tpu_custom_call.1} parent=11 // pred_check
        %p321 = pneg %p253
      $region50: #{tpu_custom_call.1} parent=11 // pred_check_branch
        %323 = sbr.rel (%p321) target = $region52
      $region51: #{tpu_custom_call.1} parent=11 // pred_region
        _
      $region52: #{tpu_custom_call.1} parent=11 // pred_fallthru
        _
    $region12: #{tpu_custom_call.1} parent=5 // pred_fallthru
      _
    %p324 = scmp.lt.s32.totalorder %s17, 2
    // Predicated region
    $region53: #{tpu_custom_call.1} parent=5 // pred_check
      %p325 = pneg %p324
    $region54: #{tpu_custom_call.1} parent=5 // pred_check_branch
      %327 = sbr.rel (%p325) target = $region56
    $region55: #{tpu_custom_call.1} parent=5 // pred_region
      // Predicated region
      $region57: #{tpu_custom_call.1} parent=55 // pred_check
        %p328 = pneg %p37
      $region58: #{tpu_custom_call.1} parent=55 // pred_check_branch
        %330 = sbr.rel (%p328) target = $region60
      $region59: #{tpu_custom_call.1} parent=55 // pred_region
        %p331 = scmp.lt.s32.totalorder %s17, 1
        %s332 = scalar_select %p331, %s17, 1
        %s333 = smul.addr %s332, 32
        %s334 = smul.addr %s333, 4
        %s335 = scalar_lea.vmem %s0, %s334
      $region60: #{tpu_custom_call.1} parent=55 // pred_fallthru
        _
    $region56: #{tpu_custom_call.1} parent=5 // pred_fallthru
      _
    %p336 = scmp.le.s32.totalorder 1, %s17
    %p337 = scmp.lt.s32.totalorder %s17, 3
    %p338 = pnand %p336, %p337
    %p339 = pneg %p338
    // Predicated region
    $region61: #{tpu_custom_call.1} parent=5 // pred_check
      _
    $region62: #{tpu_custom_call.1} parent=5 // pred_check_branch
      %341 = sbr.rel (%p338) target = $region64
    $region63: #{tpu_custom_call.1} parent=5 // pred_region
      %s342 = ssub.s32 %s17, 1
      %p343 = scmp.lt.s32.totalorder %s22, 1
      %s344 = scalar_select %p343, %s22, 1
      %s345 = smul.addr %s344, 32
      %s346 = smul.addr %s345, 4
      %s347 = scalar_lea.vmem %s0, %s346
      %p348 = pneg %p43
      %p349 = pneg %p40
      %p350 = pneg %p64
      %p351 = pneg %p61
      %p352 = pneg %p85
      %p353 = pneg %p82
      %p354 = pneg %p106
      %p355 = pneg %p103
      %p356 = pneg %p127
      %p357 = pneg %p124
      %p358 = pneg %p148
      %p359 = pneg %p145
      %p360 = pneg %p169
      %p361 = pneg %p166
      %p362 = pneg %p190
      %p363 = pneg %p187
      %p364 = pneg %p211
      %p365 = pneg %p208
      %p366 = pneg %p232
      %p367 = pneg %p229
      %p368 = pneg %p253
      %p369 = pneg %p250
      %p370 = pneg %p279
      %p371 = pneg %p276
      %p372 = scmp.lt.s32.totalorder %s22, 1
      %s373 = scalar_select %p372, %s22, 1
      %s374 = smul.addr %s373, 6
      %s375 = smul.addr %s374, 8
      %s376 = scalar_lea.vmem %s11, %s375
      %p377 = scmp.lt.s32.totalorder %s22, 1
      %s378 = scalar_select %p377, %s22, 1
      %s379 = smul.addr %s378, 32
      %s380 = smul.addr %s379, 4
      %s381 = scalar_lea.vmem %s0, %s380
      %p382 = scmp.lt.s32.totalorder %s22, 1
      %s383 = scalar_select %p382, %s22, 1
      %s384 = smul.addr %s383, 6
      %s385 = smul.addr %s384, 8
      %s386 = scalar_lea.vmem %s11, %s385
      %v388 = vld [vmem:[%s381] sm:$0xf]
      %v389 = vld [vmem:[%s381 + $0x4] sm:$0xf]
      %v390 = vld [vmem:[%s381 + $0x8] sm:$0xf]
      %v391 = vld [vmem:[%s381 + $0xc] sm:$0xf]
      %v392 = vld [vmem:[%s381 + $0x10] sm:$0xf]
      %v393 = vld [vmem:[%s381 + $0x14] sm:$0xf]
      %v394 = vld [vmem:[%s381 + $0x18] sm:$0xf]
      %v395 = vld [vmem:[%s381 + $0x1c] sm:$0xf]
      %v396 = vld [vmem:[%s381 + $0x20] sm:$0xf]
      %v397 = vld [vmem:[%s381 + $0x24] sm:$0xf]
      %v398 = vld [vmem:[%s381 + $0x28] sm:$0xf]
      %v399 = vld [vmem:[%s381 + $0x2c] sm:$0xf]
      %v400 = vld [vmem:[%s381 + $0x30] sm:$0xf]
      %v401 = vld [vmem:[%s381 + $0x34] sm:$0xf]
      %v402 = vld [vmem:[%s381 + $0x38] sm:$0xf]
      %v403 = vld [vmem:[%s381 + $0x3c] sm:$0xf]
      %v404 = vld [vmem:[%s381 + $0x40] sm:$0xf]
      %v405 = vld [vmem:[%s381 + $0x44] sm:$0xf]
      %v406 = vld [vmem:[%s381 + $0x48] sm:$0xf]
      %v407 = vld [vmem:[%s381 + $0x4c] sm:$0xf]
      %v408 = vld [vmem:[%s381 + $0x50] sm:$0xf]
      %v409 = vld [vmem:[%s381 + $0x54] sm:$0xf]
      %v410 = vld [vmem:[%s381 + $0x58] sm:$0xf]
      %v411 = vld [vmem:[%s381 + $0x5c] sm:$0xf]
      %v412 = vld [vmem:[%s381 + $0x60] sm:$0xf]
      %v413 = vld [vmem:[%s381 + $0x64] sm:$0xf]
      %v414 = vld [vmem:[%s381 + $0x68] sm:$0xf]
      %v415 = vld [vmem:[%s381 + $0x6c] sm:$0xf]
      %v416 = vld [vmem:[%s381 + $0x70] sm:$0xf]
      %v417 = vld [vmem:[%s381 + $0x74] sm:$0xf]
      %v418 = vld [vmem:[%s381 + $0x78] sm:$0xf]
      %v419 = vld [vmem:[%s381 + $0x7c] sm:$0xf]
      %v420 = vld [vmem:[%s3] sm:$0x3]
      %v421 = vld [vmem:[%s4] sm:$0xf]
      %423 = vset.pattern.permute.xlu0 0
      %424 = vperm.xlu0 %423, %v421
      %v425 = vpop.permute.xlu0 %424
      %v459 = vunpack.c.l.b16 %v388
      %v460 = vunpack.c.l.b16 %v389
      %v461 = vunpack.c.l.b16 %v390
      %v462 = vunpack.c.l.b16 %v391
      %v463 = vunpack.c.l.b16 %v392
      %v464 = vunpack.c.l.b16 %v393
      %v465 = vunpack.c.l.b16 %v394
      %v466 = vunpack.c.l.b16 %v395
      %v467 = vunpack.c.l.b16 %v396
      %v468 = vunpack.c.l.b16 %v397
      %v469 = vunpack.c.l.b16 %v398
      %v470 = vunpack.c.l.b16 %v399
      %v471 = vunpack.c.l.b16 %v400
      %v472 = vunpack.c.l.b16 %v401
      %v473 = vunpack.c.l.b16 %v402
      %v474 = vunpack.c.l.b16 %v403
      %v475 = vunpack.c.l.b16 %v404
      %v476 = vunpack.c.l.b16 %v405
      %v477 = vunpack.c.l.b16 %v406
      %v478 = vunpack.c.l.b16 %v407
      %v479 = vunpack.c.l.b16 %v408
      %v480 = vunpack.c.l.b16 %v409
      %v481 = vunpack.c.l.b16 %v410
      %v482 = vunpack.c.l.b16 %v411
      %v483 = vunpack.c.l.b16 %v412
      %v484 = vunpack.c.l.b16 %v413
      %v485 = vunpack.c.l.b16 %v414
      %v486 = vunpack.c.l.b16 %v415
      %v487 = vunpack.c.l.b16 %v416
      %v488 = vunpack.c.l.b16 %v417
      %v489 = vunpack.c.l.b16 %v418
      %v490 = vunpack.c.l.b16 %v419
      %v491 = vpack.c.b16 %v460, %v459
      %v492 = vpack.c.b16 %v462, %v461
      %v493 = vpack.c.b16 %v464, %v463
      %v494 = vpack.c.b16 %v466, %v465
      %v495 = vpack.c.b16 %v468, %v467
      %v496 = vpack.c.b16 %v470, %v469
      %v497 = vpack.c.b16 %v472, %v471
      %v498 = vpack.c.b16 %v474, %v473
      %v499 = vpack.c.b16 %v476, %v475
      %v500 = vpack.c.b16 %v478, %v477
      %v501 = vpack.c.b16 %v480, %v479
      %v502 = vpack.c.b16 %v482, %v481
      %v503 = vpack.c.b16 %v484, %v483
      %v504 = vpack.c.b16 %v486, %v485
      %v505 = vpack.c.b16 %v488, %v487
      %v506 = vpack.c.b16 %v490, %v489
      %vm507 = vcmask 31744
      %v509 = vsel %vm507, %v420, 0
      %v512 = vsel %vm507, %v491, 0
      %v515 = vsel %vm507, %v492, 0
      %v518 = vsel %vm507, %v493, 0
      %v521 = vsel %vm507, %v494, 0
      %v524 = vsel %vm507, %v495, 0
      %v527 = vsel %vm507, %v496, 0
      %v530 = vsel %vm507, %v497, 0
      %v533 = vsel %vm507, %v498, 0
      %v536 = vsel %vm507, %v499, 0
      %v539 = vsel %vm507, %v500, 0
      %v542 = vsel %vm507, %v501, 0
      %v545 = vsel %vm507, %v502, 0
      %v548 = vsel %vm507, %v503, 0
      %v551 = vsel %vm507, %v504, 0
      %v554 = vsel %vm507, %v505, 0
      %v557 = vsel %vm507, %v506, 0
      %559 = vmatprep.subr.bf16.mxu0 0
      %560 = vmatpush1.bf16.xpose.msra.mxu0 %v512
      %561 = vmatprep.subr.bf16.mxu0 0
      %562 = vmatpush1.bf16.xpose.msra.mxu0 %v515
      %563 = vmatprep.subr.bf16.mxu0 0
      %564 = vmatpush1.bf16.xpose.msra.mxu0 %v518
      %565 = vmatprep.subr.bf16.mxu0 0
      %566 = vmatpush1.bf16.xpose.msra.mxu0 %v521
      %567 = vmatprep.subr.bf16.mxu0 0
      %568 = vmatpush1.bf16.xpose.msra.mxu0 %v524
      %569 = vmatprep.subr.bf16.mxu0 0
      %570 = vmatpush1.bf16.xpose.msra.mxu0 %v527
      %571 = vmatprep.subr.bf16.mxu0 0
      %572 = vmatpush1.bf16.xpose.msra.mxu0 %v530
      %573 = vmatprep.subr.bf16.mxu0 0
      %574 = vmatpush1.bf16.xpose.msra.mxu0 %v533
      %575 = vmatprep.subr.bf16.mxu0 0
      %576 = vmatpush1.bf16.xpose.msra.mxu0 %v536
      %577 = vmatprep.subr.bf16.mxu0 0
      %578 = vmatpush1.bf16.xpose.msra.mxu0 %v539
      %579 = vmatprep.subr.bf16.mxu0 0
      %580 = vmatpush1.bf16.xpose.msra.mxu0 %v542
      %581 = vmatprep.subr.bf16.mxu0 0
      %582 = vmatpush1.bf16.xpose.msra.mxu0 %v545
      %583 = vmatprep.subr.bf16.mxu0 0
      %584 = vmatpush1.bf16.xpose.msra.mxu0 %v548
      %585 = vmatprep.subr.bf16.mxu0 0
      %586 = vmatpush1.bf16.xpose.msra.mxu0 %v551
      %587 = vmatprep.subr.bf16.mxu0 0
      %588 = vmatpush1.bf16.xpose.msra.mxu0 %v554
      %589 = vmatprep.subr.bf16.mxu0 0
      %590 = vmatpush1.bf16.xpose.msra.mxu0 %v557
      %591 = vmatprep.mubr.bf16.mxu0 0
      %592 = vmatmul.mubr.bf16.gmra.mrb[0].mxu0 %v509
      %v593 = vpop.f32.mrb[0].mxu0
      %v594 = vadd.f32 %v425, %v593
      %v595 = vpop.f32.mrb[0].mxu0
      %v596 = vadd.f32 %v425, %v595
      %v597 = vpop.f32.mrb[0].mxu0
      %v598 = vpop.f32.mrb[0].mxu0
      %599 = vdwg.mxu0
      %v600 = vmax.f32 %v594, 0.0
      %v601 = vmax.f32 %v596, 0.0
      %602 = vst [vmem:[%s386] sm:$0xf] %v600
      %603 = vst [vmem:[%s386 + $0x8] sm:$0xf] %v601
      %v604 = vld [vmem:[%s1] sm:$0x3]
      %v605 = vld [vmem:[%s2] sm:$0x1]
      %v607 = vlaneseq
      %v608 = vshrl.u32 %v607, 7
      %v609 = vsub.s32 0, %v608
      %v610 = vrot.slane %v605, %v609
      %vm612 = vcmask 1041408
      %v614 = vsel %vm612, %v604, 0
      %616 = vmatprep.subr.bf16.mxu0 0
      %617 = vmatpush1.bf16.msra.mxu0 %v614
      %618 = vmatprep.subr.bf16.mxu0 0
      %619 = vmatpush1.bf16.msra.mxu0 0
      %620 = vmatprep.subr.bf16.mxu0 0
      %621 = vmatpush1.bf16.msra.mxu0 0
      %622 = vmatprep.subr.bf16.mxu0 0
      %623 = vmatpush1.bf16.msra.mxu0 0
      %624 = vmatprep.subr.bf16.mxu0 0
      %625 = vmatpush1.bf16.msra.mxu0 0
      %626 = vmatprep.subr.bf16.mxu0 0
      %627 = vmatpush1.bf16.msra.mxu0 0
      %628 = vmatprep.subr.bf16.mxu0 0
      %629 = vmatpush1.bf16.msra.mxu0 0
      %630 = vmatprep.subr.bf16.mxu0 0
      %631 = vmatpush1.bf16.msra.mxu0 0
      %632 = vmatprep.subr.bf16.mxu0 0
      %633 = vmatpush1.bf16.msra.mxu0 0
      %634 = vmatprep.subr.bf16.mxu0 0
      %635 = vmatpush1.bf16.msra.mxu0 0
      %636 = vmatprep.subr.bf16.mxu0 0
      %637 = vmatpush1.bf16.msra.mxu0 0
      %638 = vmatprep.subr.bf16.mxu0 0
      %639 = vmatpush1.bf16.msra.mxu0 0
      %640 = vmatprep.subr.bf16.mxu0 0
      %641 = vmatpush1.bf16.msra.mxu0 0
      %642 = vmatprep.subr.bf16.mxu0 0
      %643 = vmatpush1.bf16.msra.mxu0 0
      %644 = vmatprep.subr.bf16.mxu0 0
      %645 = vmatpush1.bf16.msra.mxu0 0
      %646 = vmatprep.subr.bf16.mxu0 0
      %647 = vmatpush1.bf16.msra.mxu0 0
      %648 = vmatprep.mubr.bf16.mxu0 0
      %649 = vmatmul.mubr.bf16.gmra.mrb[0].mxu0 %v512
      %v650 = vpop.f32.mrb[0].mxu0
      %v651 = vadd.f32 %v610, %v650
      %v652 = vpop.f32.mrb[0].mxu0
      %v653 = vpop.f32.mrb[0].mxu0
      %v654 = vadd.f32 %v610, %v653
      %v655 = vpop.f32.mrb[0].mxu0
      %656 = vmatprep.mubr.bf16.mxu0 0
      %657 = vmatmul.mubr.bf16.gmra.mrb[0].mxu0 %v515
      %v658 = vpop.f32.mrb[0].mxu0
      %v659 = vadd.f32 %v610, %v658
      %v660 = vpop.f32.mrb[0].mxu0
      %v661 = vpop.f32.mrb[0].mxu0
      %v662 = vadd.f32 %v610, %v661
      %v663 = vpop.f32.mrb[0].mxu0
      %664 = vmatprep.mubr.bf16.mxu0 0
      %665 = vmatmul.mubr.bf16.gmra.mrb[0].mxu0 %v518
      %v666 = vpop.f32.mrb[0].mxu0
      %v667 = vadd.f32 %v610, %v666
      %v668 = vpop.f32.mrb[0].mxu0
      %v669 = vpop.f32.mrb[0].mxu0
      %v670 = vadd.f32 %v610, %v669
      %v671 = vpop.f32.mrb[0].mxu0
      %672 = vmatprep.mubr.bf16.mxu0 0
      %673 = vmatmul.mubr.bf16.gmra.mrb[0].mxu0 %v521
      %v674 = vpop.f32.mrb[0].mxu0
      %v675 = vadd.f32 %v610, %v674
      %v676 = vpop.f32.mrb[0].mxu0
      %v677 = vpop.f32.mrb[0].mxu0
      %v678 = vadd.f32 %v610, %v677
      %v679 = vpop.f32.mrb[0].mxu0
      %680 = vmatprep.mubr.bf16.mxu0 0
      %681 = vmatmul.mubr.bf16.gmra.mrb[0].mxu0 %v524
      %v682 = vpop.f32.mrb[0].mxu0
      %v683 = vadd.f32 %v610, %v682
      %v684 = vpop.f32.mrb[0].mxu0
      %v685 = vpop.f32.mrb[0].mxu0
      %v686 = vadd.f32 %v610, %v685
      %v687 = vpop.f32.mrb[0].mxu0
      %688 = vmatprep.mubr.bf16.mxu0 0
      %689 = vmatmul.mubr.bf16.gmra.mrb[0].mxu0 %v527
      %v690 = vpop.f32.mrb[0].mxu0
      %v691 = vadd.f32 %v610, %v690
      %v692 = vpop.f32.mrb[0].mxu0
      %v693 = vpop.f32.mrb[0].mxu0
      %v694 = vadd.f32 %v610, %v693
      %v695 = vpop.f32.mrb[0].mxu0
      %696 = vmatprep.mubr.bf16.mxu0 0
      %697 = vmatmul.mubr.bf16.gmra.mrb[0].mxu0 %v530
      %v698 = vpop.f32.mrb[0].mxu0
      %v699 = vadd.f32 %v610, %v698
      %v700 = vpop.f32.mrb[0].mxu0
      %v701 = vpop.f32.mrb[0].mxu0
      %v702 = vadd.f32 %v610, %v701
      %v703 = vpop.f32.mrb[0].mxu0
      %704 = vmatprep.mubr.bf16.mxu0 0
      %705 = vmatmul.mubr.bf16.gmra.mrb[0].mxu0 %v533
      %v706 = vpop.f32.mrb[0].mxu0
      %v707 = vadd.f32 %v610, %v706
      %v708 = vpop.f32.mrb[0].mxu0
      %v709 = vpop.f32.mrb[0].mxu0
      %v710 = vadd.f32 %v610, %v709
      %v711 = vpop.f32.mrb[0].mxu0
      %712 = vmatprep.mubr.bf16.mxu0 0
      %713 = vmatmul.mubr.bf16.gmra.mrb[0].mxu0 %v536
      %v714 = vpop.f32.mrb[0].mxu0
      %v715 = vadd.f32 %v610, %v714
      %v716 = vpop.f32.mrb[0].mxu0
      %v717 = vpop.f32.mrb[0].mxu0
      %v718 = vadd.f32 %v610, %v717
      %v719 = vpop.f32.mrb[0].mxu0
      %720 = vmatprep.mubr.bf16.mxu0 0
      %721 = vmatmul.mubr.bf16.gmra.mrb[0].mxu0 %v539
      %v722 = vpop.f32.mrb[0].mxu0
      %v723 = vadd.f32 %v610, %v722
      %v724 = vpop.f32.mrb[0].mxu0
      %v725 = vpop.f32.mrb[0].mxu0
      %v726 = vadd.f32 %v610, %v725
      %v727 = vpop.f32.mrb[0].mxu0
      %728 = vmatprep.mubr.bf16.mxu0 0
      %729 = vmatmul.mubr.bf16.gmra.mrb[0].mxu0 %v542
      %v730 = vpop.f32.mrb[0].mxu0
      %v731 = vadd.f32 %v610, %v730
      %v732 = vpop.f32.mrb[0].mxu0
      %v733 = vpop.f32.mrb[0].mxu0
      %v734 = vadd.f32 %v610, %v733
      %v735 = vpop.f32.mrb[0].mxu0
      %736 = vmatprep.mubr.bf16.mxu0 0
      %737 = vmatmul.mubr.bf16.gmra.mrb[0].mxu0 %v545
      %v738 = vpop.f32.mrb[0].mxu0
      %v739 = vadd.f32 %v610, %v738
      %v740 = vpop.f32.mrb[0].mxu0
      %v741 = vpop.f32.mrb[0].mxu0
      %v742 = vadd.f32 %v610, %v741
      %v743 = vpop.f32.mrb[0].mxu0
      %744 = vmatprep.mubr.bf16.mxu0 0
      %745 = vmatmul.mubr.bf16.gmra.mrb[0].mxu0 %v548
      %v746 = vpop.f32.mrb[0].mxu0
      %v747 = vadd.f32 %v610, %v746
      %v748 = vpop.f32.mrb[0].mxu0
      %v749 = vpop.f32.mrb[0].mxu0
      %v750 = vadd.f32 %v610, %v749
      %v751 = vpop.f32.mrb[0].mxu0
      %752 = vmatprep.mubr.bf16.mxu0 0
      %753 = vmatmul.mubr.bf16.gmra.mrb[0].mxu0 %v551
      %v754 = vpop.f32.mrb[0].mxu0
      %v755 = vadd.f32 %v610, %v754
      %v756 = vpop.f32.mrb[0].mxu0
      %v757 = vpop.f32.mrb[0].mxu0
      %v758 = vadd.f32 %v610, %v757
      %v759 = vpop.f32.mrb[0].mxu0
      %760 = vmatprep.mubr.bf16.mxu0 0
      %761 = vmatmul.mubr.bf16.gmra.mrb[0].mxu0 %v554
      %v762 = vpop.f32.mrb[0].mxu0
      %v763 = vadd.f32 %v610, %v762
      %v764 = vpop.f32.mrb[0].mxu0
      %v765 = vpop.f32.mrb[0].mxu0
      %v766 = vadd.f32 %v610, %v765
      %v767 = vpop.f32.mrb[0].mxu0
      %768 = vmatprep.mubr.bf16.mxu0 0
      %769 = vmatmul.mubr.bf16.gmra.mrb[0].mxu0 %v557
      %v770 = vpop.f32.mrb[0].mxu0
      %v771 = vadd.f32 %v610, %v770
      %v772 = vpop.f32.mrb[0].mxu0
      %v773 = vpop.f32.mrb[0].mxu0
      %v774 = vadd.f32 %v610, %v773
      %v775 = vpop.f32.mrb[0].mxu0
      %776 = vdwg.mxu0
      %v777 = vmax.f32 %v651, 0.0
      %v778 = vmax.f32 %v654, 0.0
      %v779 = vmax.f32 %v659, 0.0
      %v780 = vmax.f32 %v662, 0.0
      %v781 = vmax.f32 %v667, 0.0
      %v782 = vmax.f32 %v670, 0.0
      %v783 = vmax.f32 %v675, 0.0
      %v784 = vmax.f32 %v678, 0.0
      %v785 = vmax.f32 %v683, 0.0
      %v786 = vmax.f32 %v686, 0.0
      %v787 = vmax.f32 %v691, 0.0
      %v788 = vmax.f32 %v694, 0.0
      %v789 = vmax.f32 %v699, 0.0
      %v790 = vmax.f32 %v702, 0.0
      %v791 = vmax.f32 %v707, 0.0
      %v792 = vmax.f32 %v710, 0.0
      %v793 = vmax.f32 %v715, 0.0
      %v794 = vmax.f32 %v718, 0.0
      %v795 = vmax.f32 %v723, 0.0
      %v796 = vmax.f32 %v726, 0.0
      %v797 = vmax.f32 %v731, 0.0
      %v798 = vmax.f32 %v734, 0.0
      %v799 = vmax.f32 %v739, 0.0
      %v800 = vmax.f32 %v742, 0.0
      %v801 = vmax.f32 %v747, 0.0
      %v802 = vmax.f32 %v750, 0.0
      %v803 = vmax.f32 %v755, 0.0
      %v804 = vmax.f32 %v758, 0.0
      %v805 = vmax.f32 %v763, 0.0
      %v806 = vmax.f32 %v766, 0.0
      %v807 = vmax.f32 %v771, 0.0
      %v808 = vmax.f32 %v774, 0.0
      %v809 = vld [vmem:[%s5] sm:$0xf]
      %v810 = vld [vmem:[%s6] sm:$0xff]
      %vm843 = vcmask 1040384
      %v844 = vrot.slane %v777, 7
      %v845 = vrot.slane %v778, 7
      %v846 = vsel %vm843, %v844, %v845
      %v847 = vrot.slane %v779, 7
      %v848 = vrot.slane %v780, 7
      %v849 = vsel %vm843, %v847, %v848
      %v850 = vrot.slane %v781, 7
      %v851 = vrot.slane %v782, 7
      %v852 = vsel %vm843, %v850, %v851
      %v853 = vrot.slane %v783, 7
      %v854 = vrot.slane %v784, 7
      %v855 = vsel %vm843, %v853, %v854
      %v856 = vrot.slane %v785, 7
      %v857 = vrot.slane %v786, 7
      %v858 = vsel %vm843, %v856, %v857
      %v859 = vrot.slane %v787, 7
      %v860 = vrot.slane %v788, 7
      %v861 = vsel %vm843, %v859, %v860
      %v862 = vrot.slane %v789, 7
      %v863 = vrot.slane %v790, 7
      %v864 = vsel %vm843, %v862, %v863
      %v865 = vrot.slane %v791, 7
      %v866 = vrot.slane %v792, 7
      %v867 = vsel %vm843, %v865, %v866
      %v868 = vrot.slane %v793, 7
      %v869 = vrot.slane %v794, 7
      %v870 = vsel %vm843, %v868, %v869
      %v871 = vrot.slane %v795, 7
      %v872 = vrot.slane %v796, 7
      %v873 = vsel %vm843, %v871, %v872
      %v874 = vrot.slane %v797, 7
      %v875 = vrot.slane %v798, 7
      %v876 = vsel %vm843, %v874, %v875
      %v877 = vrot.slane %v799, 7
      %v878 = vrot.slane %v800, 7
      %v879 = vsel %vm843, %v877, %v878
      %v880 = vrot.slane %v801, 7
      %v881 = vrot.slane %v802, 7
      %v882 = vsel %vm843, %v880, %v881
      %v883 = vrot.slane %v803, 7
      %v884 = vrot.slane %v804, 7
      %v885 = vsel %vm843, %v883, %v884
      %v886 = vrot.slane %v805, 7
      %v887 = vrot.slane %v806, 7
      %v888 = vsel %vm843, %v886, %v887
      %v889 = vrot.slane %v807, 7
      %v890 = vrot.slane %v808, 7
      %v891 = vsel %vm843, %v889, %v890
      %v939 = vsel %vm843, 0.0, %v844
      %v940 = vsel %vm843, 0.0, %v847
      %v941 = vsel %vm843, 0.0, %v850
      %v942 = vsel %vm843, 0.0, %v853
      %v943 = vsel %vm843, 0.0, %v856
      %v944 = vsel %vm843, 0.0, %v859
      %v945 = vsel %vm843, 0.0, %v862
      %v946 = vsel %vm843, 0.0, %v865
      %v947 = vsel %vm843, 0.0, %v868
      %v948 = vsel %vm843, 0.0, %v871
      %v949 = vsel %vm843, 0.0, %v874
      %v950 = vsel %vm843, 0.0, %v877
      %v951 = vsel %vm843, 0.0, %v880
      %v952 = vsel %vm843, 0.0, %v883
      %v953 = vsel %vm843, 0.0, %v886
      %v954 = vsel %vm843, 0.0, %v889
      %v955 = vsel %vm843, %v845, 0.0
      %v956 = vsel %vm843, %v848, 0.0
      %v957 = vsel %vm843, %v851, 0.0
      %v958 = vsel %vm843, %v854, 0.0
      %v959 = vsel %vm843, %v857, 0.0
      %v960 = vsel %vm843, %v860, 0.0
      %v961 = vsel %vm843, %v863, 0.0
      %v962 = vsel %vm843, %v866, 0.0
      %v963 = vsel %vm843, %v869, 0.0
      %v964 = vsel %vm843, %v872, 0.0
      %v965 = vsel %vm843, %v875, 0.0
      %v966 = vsel %vm843, %v878, 0.0
      %v967 = vsel %vm843, %v881, 0.0
      %v968 = vsel %vm843, %v884, 0.0
      %v969 = vsel %vm843, %v887, 0.0
      %v970 = vsel %vm843, %v890, 0.0
      %vm1002 = vcmask 1046528
      %v1003 = vrot.slane 0.0, 1
      %v1004 = vsel %vm1002, %v1003, %v1003
      %v1005 = vrot.slane %v939, 1
      %v1006 = vrot.slane %v846, 1
      %v1007 = vsel %vm1002, %v1005, %v1006
      %v1008 = vrot.slane %v955, 1
      %v1009 = vsel %vm1002, %v1006, %v1008
      %v1010 = vrot.slane %v940, 1
      %v1011 = vrot.slane %v849, 1
      %v1012 = vsel %vm1002, %v1010, %v1011
      %v1013 = vrot.slane %v956, 1
      %v1014 = vsel %vm1002, %v1011, %v1013
      %v1015 = vrot.slane %v941, 1
      %v1016 = vrot.slane %v852, 1
      %v1017 = vsel %vm1002, %v1015, %v1016
      %v1018 = vrot.slane %v957, 1
      %v1019 = vsel %vm1002, %v1016, %v1018
      %v1020 = vrot.slane %v942, 1
      %v1021 = vrot.slane %v855, 1
      %v1022 = vsel %vm1002, %v1020, %v1021
      %v1023 = vrot.slane %v958, 1
      %v1024 = vsel %vm1002, %v1021, %v1023
      %v1025 = vrot.slane %v943, 1
      %v1026 = vrot.slane %v858, 1
      %v1027 = vsel %vm1002, %v1025, %v1026
      %v1028 = vrot.slane %v959, 1
      %v1029 = vsel %vm1002, %v1026, %v1028
      %v1030 = vrot.slane %v944, 1
      %v1031 = vrot.slane %v861, 1
      %v1032 = vsel %vm1002, %v1030, %v1031
      %v1033 = vrot.slane %v960, 1
      %v1034 = vsel %vm1002, %v1031, %v1033
      %v1035 = vrot.slane %v945, 1
      %v1036 = vrot.slane %v864, 1
      %v1037 = vsel %vm1002, %v1035, %v1036
      %v1038 = vrot.slane %v961, 1
      %v1039 = vsel %vm1002, %v1036, %v1038
      %v1040 = vrot.slane %v946, 1
      %v1041 = vrot.slane %v867, 1
      %v1042 = vsel %vm1002, %v1040, %v1041
      %v1043 = vrot.slane %v962, 1
      %v1044 = vsel %vm1002, %v1041, %v1043
      %v1045 = vrot.slane %v947, 1
      %v1046 = vrot.slane %v870, 1
      %v1047 = vsel %vm1002, %v1045, %v1046
      %v1048 = vrot.slane %v963, 1
      %v1049 = vsel %vm1002, %v1046, %v1048
      %v1050 = vrot.slane %v948, 1
      %v1051 = vrot.slane %v873, 1
      %v1052 = vsel %vm1002, %v1050, %v1051
      %v1053 = vrot.slane %v964, 1
      %v1054 = vsel %vm1002, %v1051, %v1053
      %v1055 = vrot.slane %v949, 1
      %v1056 = vrot.slane %v876, 1
      %v1057 = vsel %vm1002, %v1055, %v1056
      %v1058 = vrot.slane %v965, 1
      %v1059 = vsel %vm1002, %v1056, %v1058
      %v1060 = vrot.slane %v950, 1
      %v1061 = vrot.slane %v879, 1
      %v1062 = vsel %vm1002, %v1060, %v1061
      %v1063 = vrot.slane %v966, 1
      %v1064 = vsel %vm1002, %v1061, %v1063
      %v1065 = vrot.slane %v951, 1
      %v1066 = vrot.slane %v882, 1
      %v1067 = vsel %vm1002, %v1065, %v1066
      %v1068 = vrot.slane %v967, 1
      %v1069 = vsel %vm1002, %v1066, %v1068
      %v1070 = vrot.slane %v952, 1
      %v1071 = vrot.slane %v885, 1
      %v1072 = vsel %vm1002, %v1070, %v1071
      %v1073 = vrot.slane %v968, 1
      %v1074 = vsel %vm1002, %v1071, %v1073
      %v1075 = vrot.slane %v953, 1
      %v1076 = vrot.slane %v888, 1
      %v1077 = vsel %vm1002, %v1075, %v1076
      %v1078 = vrot.slane %v969, 1
      %v1079 = vsel %vm1002, %v1076, %v1078
      %1080 = vrot.lane.b32.xlu0 %v1004, 4
      %v1081 = vpop.permute.xlu0 %1080
      %1082 = vrot.lane.b32.xlu0 %v1007, 4
      %v1083 = vpop.permute.xlu0 %1082
      %1084 = vrot.lane.b32.xlu0 %v1009, 4
      %v1085 = vpop.permute.xlu0 %1084
      %1086 = vrot.lane.b32.xlu0 %v1012, 4
      %v1087 = vpop.permute.xlu0 %1086
      %1088 = vrot.lane.b32.xlu0 %v1014, 4
      %v1089 = vpop.permute.xlu0 %1088
      %1090 = vrot.lane.b32.xlu0 %v1017, 4
      %v1091 = vpop.permute.xlu0 %1090
      %1092 = vrot.lane.b32.xlu0 %v1019, 4
      %v1093 = vpop.permute.xlu0 %1092
      %1094 = vrot.lane.b32.xlu0 %v1022, 4
      %v1095 = vpop.permute.xlu0 %1094
      %1096 = vrot.lane.b32.xlu0 %v1024, 4
      %v1097 = vpop.permute.xlu0 %1096
      %1098 = vrot.lane.b32.xlu0 %v1027, 4
      %v1099 = vpop.permute.xlu0 %1098
      %1100 = vrot.lane.b32.xlu0 %v1029, 4
      %v1101 = vpop.permute.xlu0 %1100
      %1102 = vrot.lane.b32.xlu0 %v1032, 4
      %v1103 = vpop.permute.xlu0 %1102
      %1104 = vrot.lane.b32.xlu0 %v1034, 4
      %v1105 = vpop.permute.xlu0 %1104
      %1106 = vrot.lane.b32.xlu0 %v1037, 4
      %v1107 = vpop.permute.xlu0 %1106
      %1108 = vrot.lane.b32.xlu0 %v1039, 4
      %v1109 = vpop.permute.xlu0 %1108
      %1110 = vrot.lane.b32.xlu0 %v1042, 4
      %v1111 = vpop.permute.xlu0 %1110
      %1112 = vrot.lane.b32.xlu0 %v1044, 4
      %v1113 = vpop.permute.xlu0 %1112
      %1114 = vrot.lane.b32.xlu0 %v1047, 4
      %v1115 = vpop.permute.xlu0 %1114
      %1116 = vrot.lane.b32.xlu0 %v1049, 4
      %v1117 = vpop.permute.xlu0 %1116
      %1118 = vrot.lane.b32.xlu0 %v1052, 4
      %v1119 = vpop.permute.xlu0 %1118
      %1120 = vrot.lane.b32.xlu0 %v1054, 4
      %v1121 = vpop.permute.xlu0 %1120
      %1122 = vrot.lane.b32.xlu0 %v1057, 4
      %v1123 = vpop.permute.xlu0 %1122
      %1124 = vrot.lane.b32.xlu0 %v1059, 4
      %v1125 = vpop.permute.xlu0 %1124
      %1126 = vrot.lane.b32.xlu0 %v1062, 4
      %v1127 = vpop.permute.xlu0 %1126
      %1128 = vrot.lane.b32.xlu0 %v1064, 4
      %v1129 = vpop.permute.xlu0 %1128
      %1130 = vrot.lane.b32.xlu0 %v1067, 4
      %v1131 = vpop.permute.xlu0 %1130
      %1132 = vrot.lane.b32.xlu0 %v1069, 4
      %v1133 = vpop.permute.xlu0 %1132
      %1134 = vrot.lane.b32.xlu0 %v1072, 4
      %v1135 = vpop.permute.xlu0 %1134
      %1136 = vrot.lane.b32.xlu0 %v1074, 4
      %v1137 = vpop.permute.xlu0 %1136
      %1138 = vrot.lane.b32.xlu0 %v1077, 4
      %v1139 = vpop.permute.xlu0 %1138
      %1140 = vrot.lane.b32.xlu0 %v1079, 4
      %v1141 = vpop.permute.xlu0 %1140
      %vm1173 = vcmask 1045504
      %v1174 = vrot.slane 0.0, 2
      %v1175 = vsel %vm1173, %v1174, %v1174
      %v1176 = vrot.slane %v939, 2
      %v1177 = vrot.slane %v846, 2
      %v1178 = vsel %vm1173, %v1176, %v1177
      %v1179 = vrot.slane %v955, 2
      %v1180 = vsel %vm1173, %v1177, %v1179
      %v1181 = vrot.slane %v940, 2
      %v1182 = vrot.slane %v849, 2
      %v1183 = vsel %vm1173, %v1181, %v1182
      %v1184 = vrot.slane %v956, 2
      %v1185 = vsel %vm1173, %v1182, %v1184
      %v1186 = vrot.slane %v941, 2
      %v1187 = vrot.slane %v852, 2
      %v1188 = vsel %vm1173, %v1186, %v1187
      %v1189 = vrot.slane %v957, 2
      %v1190 = vsel %vm1173, %v1187, %v1189
      %v1191 = vrot.slane %v942, 2
      %v1192 = vrot.slane %v855, 2
      %v1193 = vsel %vm1173, %v1191, %v1192
      %v1194 = vrot.slane %v958, 2
      %v1195 = vsel %vm1173, %v1192, %v1194
      %v1196 = vrot.slane %v943, 2
      %v1197 = vrot.slane %v858, 2
      %v1198 = vsel %vm1173, %v1196, %v1197
      %v1199 = vrot.slane %v959, 2
      %v1200 = vsel %vm1173, %v1197, %v1199
      %v1201 = vrot.slane %v944, 2
      %v1202 = vrot.slane %v861, 2
      %v1203 = vsel %vm1173, %v1201, %v1202
      %v1204 = vrot.slane %v960, 2
      %v1205 = vsel %vm1173, %v1202, %v1204
      %v1206 = vrot.slane %v945, 2
      %v1207 = vrot.slane %v864, 2
      %v1208 = vsel %vm1173, %v1206, %v1207
      %v1209 = vrot.slane %v961, 2
      %v1210 = vsel %vm1173, %v1207, %v1209
      %v1211 = vrot.slane %v946, 2
      %v1212 = vrot.slane %v867, 2
      %v1213 = vsel %vm1173, %v1211, %v1212
      %v1214 = vrot.slane %v962, 2
      %v1215 = vsel %vm1173, %v1212, %v1214
      %v1216 = vrot.slane %v947, 2
      %v1217 = vrot.slane %v870, 2
      %v1218 = vsel %vm1173, %v1216, %v1217
      %v1219 = vrot.slane %v963, 2
      %v1220 = vsel %vm1173, %v1217, %v1219
      %v1221 = vrot.slane %v948, 2
      %v1222 = vrot.slane %v873, 2
      %v1223 = vsel %vm1173, %v1221, %v1222
      %v1224 = vrot.slane %v964, 2
      %v1225 = vsel %vm1173, %v1222, %v1224
      %v1226 = vrot.slane %v949, 2
      %v1227 = vrot.slane %v876, 2
      %v1228 = vsel %vm1173, %v1226, %v1227
      %v1229 = vrot.slane %v965, 2
      %v1230 = vsel %vm1173, %v1227, %v1229
      %v1231 = vrot.slane %v950, 2
      %v1232 = vrot.slane %v879, 2
      %v1233 = vsel %vm1173, %v1231, %v1232
      %v1234 = vrot.slane %v966, 2
      %v1235 = vsel %vm1173, %v1232, %v1234
      %v1236 = vrot.slane %v951, 2
      %v1237 = vrot.slane %v882, 2
      %v1238 = vsel %vm1173, %v1236, %v1237
      %v1239 = vrot.slane %v967, 2
      %v1240 = vsel %vm1173, %v1237, %v1239
      %v1241 = vrot.slane %v952, 2
      %v1242 = vrot.slane %v885, 2
      %v1243 = vsel %vm1173, %v1241, %v1242
      %v1244 = vrot.slane %v968, 2
      %v1245 = vsel %vm1173, %v1242, %v1244
      %v1246 = vrot.slane %v953, 2
      %v1247 = vrot.slane %v888, 2
      %v1248 = vsel %vm1173, %v1246, %v1247
      %v1249 = vrot.slane %v969, 2
      %v1250 = vsel %vm1173, %v1247, %v1249
      %1251 = vrot.lane.b32.xlu0 %v1175, 8
      %v1252 = vpop.permute.xlu0 %1251
      %1253 = vrot.lane.b32.xlu0 %v1178, 8
      %v1254 = vpop.permute.xlu0 %1253
      %1255 = vrot.lane.b32.xlu0 %v1180, 8
      %v1256 = vpop.permute.xlu0 %1255
      %1257 = vrot.lane.b32.xlu0 %v1183, 8
      %v1258 = vpop.permute.xlu0 %1257
      %1259 = vrot.lane.b32.xlu0 %v1185, 8
      %v1260 = vpop.permute.xlu0 %1259
      %1261 = vrot.lane.b32.xlu0 %v1188, 8
      %v1262 = vpop.permute.xlu0 %1261
      %1263 = vrot.lane.b32.xlu0 %v1190, 8
      %v1264 = vpop.permute.xlu0 %1263
      %1265 = vrot.lane.b32.xlu0 %v1193, 8
      %v1266 = vpop.permute.xlu0 %1265
      %1267 = vrot.lane.b32.xlu0 %v1195, 8
      %v1268 = vpop.permute.xlu0 %1267
      %1269 = vrot.lane.b32.xlu0 %v1198, 8
      %v1270 = vpop.permute.xlu0 %1269
      %1271 = vrot.lane.b32.xlu0 %v1200, 8
      %v1272 = vpop.permute.xlu0 %1271
      %1273 = vrot.lane.b32.xlu0 %v1203, 8
      %v1274 = vpop.permute.xlu0 %1273
      %1275 = vrot.lane.b32.xlu0 %v1205, 8
      %v1276 = vpop.permute.xlu0 %1275
      %1277 = vrot.lane.b32.xlu0 %v1208, 8
      %v1278 = vpop.permute.xlu0 %1277
      %1279 = vrot.lane.b32.xlu0 %v1210, 8
      %v1280 = vpop.permute.xlu0 %1279
      %1281 = vrot.lane.b32.xlu0 %v1213, 8
      %v1282 = vpop.permute.xlu0 %1281
      %1283 = vrot.lane.b32.xlu0 %v1215, 8
      %v1284 = vpop.permute.xlu0 %1283
      %1285 = vrot.lane.b32.xlu0 %v1218, 8
      %v1286 = vpop.permute.xlu0 %1285
      %1287 = vrot.lane.b32.xlu0 %v1220, 8
      %v1288 = vpop.permute.xlu0 %1287
      %1289 = vrot.lane.b32.xlu0 %v1223, 8
      %v1290 = vpop.permute.xlu0 %1289
      %1291 = vrot.lane.b32.xlu0 %v1225, 8
      %v1292 = vpop.permute.xlu0 %1291
      %1293 = vrot.lane.b32.xlu0 %v1228, 8
      %v1294 = vpop.permute.xlu0 %1293
      %1295 = vrot.lane.b32.xlu0 %v1230, 8
      %v1296 = vpop.permute.xlu0 %1295
      %1297 = vrot.lane.b32.xlu0 %v1233, 8
      %v1298 = vpop.permute.xlu0 %1297
      %1299 = vrot.lane.b32.xlu0 %v1235, 8
      %v1300 = vpop.permute.xlu0 %1299
      %1301 = vrot.lane.b32.xlu0 %v1238, 8
      %v1302 = vpop.permute.xlu0 %1301
      %1303 = vrot.lane.b32.xlu0 %v1240, 8
      %v1304 = vpop.permute.xlu0 %1303
      %1305 = vrot.lane.b32.xlu0 %v1243, 8
      %v1306 = vpop.permute.xlu0 %1305
      %1307 = vrot.lane.b32.xlu0 %v1245, 8
      %v1308 = vpop.permute.xlu0 %1307
      %1309 = vrot.lane.b32.xlu0 %v1248, 8
      %v1310 = vpop.permute.xlu0 %1309
      %1311 = vrot.lane.b32.xlu0 %v1250, 8
      %v1312 = vpop.permute.xlu0 %1311
      %1345 = vrot.lane.b32.xlu0 %v939, 12
      %v1346 = vpop.permute.xlu0 %1345
      %1347 = vrot.lane.b32.xlu0 %v846, 12
      %v1348 = vpop.permute.xlu0 %1347
      %1349 = vrot.lane.b32.xlu0 %v940, 12
      %v1350 = vpop.permute.xlu0 %1349
      %1351 = vrot.lane.b32.xlu0 %v849, 12
      %v1352 = vpop.permute.xlu0 %1351
      %1353 = vrot.lane.b32.xlu0 %v941, 12
      %v1354 = vpop.permute.xlu0 %1353
      %1355 = vrot.lane.b32.xlu0 %v852, 12
      %v1356 = vpop.permute.xlu0 %1355
      %1357 = vrot.lane.b32.xlu0 %v942, 12
      %v1358 = vpop.permute.xlu0 %1357
      %1359 = vrot.lane.b32.xlu0 %v855, 12
      %v1360 = vpop.permute.xlu0 %1359
      %1361 = vrot.lane.b32.xlu0 %v943, 12
      %v1362 = vpop.permute.xlu0 %1361
      %1363 = vrot.lane.b32.xlu0 %v858, 12
      %v1364 = vpop.permute.xlu0 %1363
      %1365 = vrot.lane.b32.xlu0 %v944, 12
      %v1366 = vpop.permute.xlu0 %1365
      %1367 = vrot.lane.b32.xlu0 %v861, 12
      %v1368 = vpop.permute.xlu0 %1367
      %1369 = vrot.lane.b32.xlu0 %v945, 12
      %v1370 = vpop.permute.xlu0 %1369
      %1371 = vrot.lane.b32.xlu0 %v864, 12
      %v1372 = vpop.permute.xlu0 %1371
      %1373 = vrot.lane.b32.xlu0 %v946, 12
      %v1374 = vpop.permute.xlu0 %1373
      %1375 = vrot.lane.b32.xlu0 %v867, 12
      %v1376 = vpop.permute.xlu0 %1375
      %1377 = vrot.lane.b32.xlu0 %v947, 12
      %v1378 = vpop.permute.xlu0 %1377
      %1379 = vrot.lane.b32.xlu0 %v870, 12
      %v1380 = vpop.permute.xlu0 %1379
      %1381 = vrot.lane.b32.xlu0 %v948, 12
      %v1382 = vpop.permute.xlu0 %1381
      %1383 = vrot.lane.b32.xlu0 %v873, 12
      %v1384 = vpop.permute.xlu0 %1383
      %1385 = vrot.lane.b32.xlu0 %v949, 12
      %v1386 = vpop.permute.xlu0 %1385
      %1387 = vrot.lane.b32.xlu0 %v876, 12
      %v1388 = vpop.permute.xlu0 %1387
      %1389 = vrot.lane.b32.xlu0 %v950, 12
      %v1390 = vpop.permute.xlu0 %1389
      %1391 = vrot.lane.b32.xlu0 %v879, 12
      %v1392 = vpop.permute.xlu0 %1391
      %1393 = vrot.lane.b32.xlu0 %v951, 12
      %v1394 = vpop.permute.xlu0 %1393
      %1395 = vrot.lane.b32.xlu0 %v882, 12
      %v1396 = vpop.permute.xlu0 %1395
      %1397 = vrot.lane.b32.xlu0 %v952, 12
      %v1398 = vpop.permute.xlu0 %1397
      %1399 = vrot.lane.b32.xlu0 %v885, 12
      %v1400 = vpop.permute.xlu0 %1399
      %1401 = vrot.lane.b32.xlu0 %v953, 12
      %v1402 = vpop.permute.xlu0 %1401
      %1403 = vrot.lane.b32.xlu0 %v888, 12
      %v1404 = vpop.permute.xlu0 %1403
      %1405 = vrot.lane.b32.xlu0 %v954, 12
      %v1406 = vpop.permute.xlu0 %1405
      %1407 = vrot.lane.b32.xlu0 %v891, 12
      %v1408 = vpop.permute.xlu0 %1407
      %v1442 = vrot.slane %v954, 1
      %v1443 = vrot.slane %v891, 1
      %v1444 = vsel %vm1002, %v1442, %v1443
      %v1445 = vrot.slane %v970, 1
      %v1446 = vsel %vm1002, %v1443, %v1445
      %1447 = vrot.lane.b32.xlu0 %v1007, 16
      %v1448 = vpop.permute.xlu0 %1447
      %1449 = vrot.lane.b32.xlu0 %v1009, 16
      %v1450 = vpop.permute.xlu0 %1449
      %1451 = vrot.lane.b32.xlu0 %v1012, 16
      %v1452 = vpop.permute.xlu0 %1451
      %1453 = vrot.lane.b32.xlu0 %v1014, 16
      %v1454 = vpop.permute.xlu0 %1453
      %1455 = vrot.lane.b32.xlu0 %v1017, 16
      %v1456 = vpop.permute.xlu0 %1455
      %1457 = vrot.lane.b32.xlu0 %v1019, 16
      %v1458 = vpop.permute.xlu0 %1457
      %1459 = vrot.lane.b32.xlu0 %v1022, 16
      %v1460 = vpop.permute.xlu0 %1459
      %1461 = vrot.lane.b32.xlu0 %v1024, 16
      %v1462 = vpop.permute.xlu0 %1461
      %1463 = vrot.lane.b32.xlu0 %v1027, 16
      %v1464 = vpop.permute.xlu0 %1463
      %1465 = vrot.lane.b32.xlu0 %v1029, 16
      %v1466 = vpop.permute.xlu0 %1465
      %1467 = vrot.lane.b32.xlu0 %v1032, 16
      %v1468 = vpop.permute.xlu0 %1467
      %1469 = vrot.lane.b32.xlu0 %v1034, 16
      %v1470 = vpop.permute.xlu0 %1469
      %1471 = vrot.lane.b32.xlu0 %v1037, 16
      %v1472 = vpop.permute.xlu0 %1471
      %1473 = vrot.lane.b32.xlu0 %v1039, 16
      %v1474 = vpop.permute.xlu0 %1473
      %1475 = vrot.lane.b32.xlu0 %v1042, 16
      %v1476 = vpop.permute.xlu0 %1475
      %1477 = vrot.lane.b32.xlu0 %v1044, 16
      %v1478 = vpop.permute.xlu0 %1477
      %1479 = vrot.lane.b32.xlu0 %v1047, 16
      %v1480 = vpop.permute.xlu0 %1479
      %1481 = vrot.lane.b32.xlu0 %v1049, 16
      %v1482 = vpop.permute.xlu0 %1481
      %1483 = vrot.lane.b32.xlu0 %v1052, 16
      %v1484 = vpop.permute.xlu0 %1483
      %1485 = vrot.lane.b32.xlu0 %v1054, 16
      %v1486 = vpop.permute.xlu0 %1485
      %1487 = vrot.lane.b32.xlu0 %v1057, 16
      %v1488 = vpop.permute.xlu0 %1487
      %1489 = vrot.lane.b32.xlu0 %v1059, 16
      %v1490 = vpop.permute.xlu0 %1489
      %1491 = vrot.lane.b32.xlu0 %v1062, 16
      %v1492 = vpop.permute.xlu0 %1491
      %1493 = vrot.lane.b32.xlu0 %v1064, 16
      %v1494 = vpop.permute.xlu0 %1493
      %1495 = vrot.lane.b32.xlu0 %v1067, 16
      %v1496 = vpop.permute.xlu0 %1495
      %1497 = vrot.lane.b32.xlu0 %v1069, 16
      %v1498 = vpop.permute.xlu0 %1497
      %1499 = vrot.lane.b32.xlu0 %v1072, 16
      %v1500 = vpop.permute.xlu0 %1499
      %1501 = vrot.lane.b32.xlu0 %v1074, 16
      %v1502 = vpop.permute.xlu0 %1501
      %1503 = vrot.lane.b32.xlu0 %v1077, 16
      %v1504 = vpop.permute.xlu0 %1503
      %1505 = vrot.lane.b32.xlu0 %v1079, 16
      %v1506 = vpop.permute.xlu0 %1505
      %1507 = vrot.lane.b32.xlu0 %v1444, 16
      %v1508 = vpop.permute.xlu0 %1507
      %1509 = vrot.lane.b32.xlu0 %v1446, 16
      %v1510 = vpop.permute.xlu0 %1509
      %v1543 = vrot.slane %v954, 2
      %v1544 = vrot.slane %v891, 2
      %v1545 = vsel %vm1173, %v1543, %v1544
      %v1546 = vrot.slane %v970, 2
      %v1547 = vsel %vm1173, %v1544, %v1546
      %1548 = vrot.lane.b32.xlu0 %v1178, 20
      %v1549 = vpop.permute.xlu0 %1548
      %1550 = vrot.lane.b32.xlu0 %v1180, 20
      %v1551 = vpop.permute.xlu0 %1550
      %1552 = vrot.lane.b32.xlu0 %v1183, 20
      %v1553 = vpop.permute.xlu0 %1552
      %1554 = vrot.lane.b32.xlu0 %v1185, 20
      %v1555 = vpop.permute.xlu0 %1554
      %1556 = vrot.lane.b32.xlu0 %v1188, 20
      %v1557 = vpop.permute.xlu0 %1556
      %1558 = vrot.lane.b32.xlu0 %v1190, 20
      %v1559 = vpop.permute.xlu0 %1558
      %1560 = vrot.lane.b32.xlu0 %v1193, 20
      %v1561 = vpop.permute.xlu0 %1560
      %1562 = vrot.lane.b32.xlu0 %v1195, 20
      %v1563 = vpop.permute.xlu0 %1562
      %1564 = vrot.lane.b32.xlu0 %v1198, 20
      %v1565 = vpop.permute.xlu0 %1564
      %1566 = vrot.lane.b32.xlu0 %v1200, 20
      %v1567 = vpop.permute.xlu0 %1566
      %1568 = vrot.lane.b32.xlu0 %v1203, 20
      %v1569 = vpop.permute.xlu0 %1568
      %1570 = vrot.lane.b32.xlu0 %v1205, 20
      %v1571 = vpop.permute.xlu0 %1570
      %1572 = vrot.lane.b32.xlu0 %v1208, 20
      %v1573 = vpop.permute.xlu0 %1572
      %1574 = vrot.lane.b32.xlu0 %v1210, 20
      %v1575 = vpop.permute.xlu0 %1574
      %1576 = vrot.lane.b32.xlu0 %v1213, 20
      %v1577 = vpop.permute.xlu0 %1576
      %1578 = vrot.lane.b32.xlu0 %v1215, 20
      %v1579 = vpop.permute.xlu0 %1578
      %1580 = vrot.lane.b32.xlu0 %v1218, 20
      %v1581 = vpop.permute.xlu0 %1580
      %1582 = vrot.lane.b32.xlu0 %v1220, 20
      %v1583 = vpop.permute.xlu0 %1582
      %1584 = vrot.lane.b32.xlu0 %v1223, 20
      %v1585 = vpop.permute.xlu0 %1584
      %1586 = vrot.lane.b32.xlu0 %v1225, 20
      %v1587 = vpop.permute.xlu0 %1586
      %1588 = vrot.lane.b32.xlu0 %v1228, 20
      %v1589 = vpop.permute.xlu0 %1588
      %1590 = vrot.lane.b32.xlu0 %v1230, 20
      %v1591 = vpop.permute.xlu0 %1590
      %1592 = vrot.lane.b32.xlu0 %v1233, 20
      %v1593 = vpop.permute.xlu0 %1592
      %1594 = vrot.lane.b32.xlu0 %v1235, 20
      %v1595 = vpop.permute.xlu0 %1594
      %1596 = vrot.lane.b32.xlu0 %v1238, 20
      %v1597 = vpop.permute.xlu0 %1596
      %1598 = vrot.lane.b32.xlu0 %v1240, 20
      %v1599 = vpop.permute.xlu0 %1598
      %1600 = vrot.lane.b32.xlu0 %v1243, 20
      %v1601 = vpop.permute.xlu0 %1600
      %1602 = vrot.lane.b32.xlu0 %v1245, 20
      %v1603 = vpop.permute.xlu0 %1602
      %1604 = vrot.lane.b32.xlu0 %v1248, 20
      %v1605 = vpop.permute.xlu0 %1604
      %1606 = vrot.lane.b32.xlu0 %v1250, 20
      %v1607 = vpop.permute.xlu0 %1606
      %1608 = vrot.lane.b32.xlu0 %v1545, 20
      %v1609 = vpop.permute.xlu0 %1608
      %1610 = vrot.lane.b32.xlu0 %v1547, 20
      %v1611 = vpop.permute.xlu0 %1610
      %1644 = vrot.lane.b32.xlu0 %v940, 24
      %v1645 = vpop.permute.xlu0 %1644
      %1646 = vrot.lane.b32.xlu0 %v849, 24
      %v1647 = vpop.permute.xlu0 %1646
      %1648 = vrot.lane.b32.xlu0 %v941, 24
      %v1649 = vpop.permute.xlu0 %1648
      %1650 = vrot.lane.b32.xlu0 %v852, 24
      %v1651 = vpop.permute.xlu0 %1650
      %1652 = vrot.lane.b32.xlu0 %v942, 24
      %v1653 = vpop.permute.xlu0 %1652
      %1654 = vrot.lane.b32.xlu0 %v855, 24
      %v1655 = vpop.permute.xlu0 %1654
      %1656 = vrot.lane.b32.xlu0 %v943, 24
      %v1657 = vpop.permute.xlu0 %1656
      %1658 = vrot.lane.b32.xlu0 %v858, 24
      %v1659 = vpop.permute.xlu0 %1658
      %1660 = vrot.lane.b32.xlu0 %v944, 24
      %v1661 = vpop.permute.xlu0 %1660
      %1662 = vrot.lane.b32.xlu0 %v861, 24
      %v1663 = vpop.permute.xlu0 %1662
      %1664 = vrot.lane.b32.xlu0 %v945, 24
      %v1665 = vpop.permute.xlu0 %1664
      %1666 = vrot.lane.b32.xlu0 %v864, 24
      %v1667 = vpop.permute.xlu0 %1666
      %1668 = vrot.lane.b32.xlu0 %v946, 24
      %v1669 = vpop.permute.xlu0 %1668
      %1670 = vrot.lane.b32.xlu0 %v867, 24
      %v1671 = vpop.permute.xlu0 %1670
      %1672 = vrot.lane.b32.xlu0 %v947, 24
      %v1673 = vpop.permute.xlu0 %1672
      %1674 = vrot.lane.b32.xlu0 %v870, 24
      %v1675 = vpop.permute.xlu0 %1674
      %1676 = vrot.lane.b32.xlu0 %v948, 24
      %v1677 = vpop.permute.xlu0 %1676
      %1678 = vrot.lane.b32.xlu0 %v873, 24
      %v1679 = vpop.permute.xlu0 %1678
      %1680 = vrot.lane.b32.xlu0 %v949, 24
      %v1681 = vpop.permute.xlu0 %1680
      %1682 = vrot.lane.b32.xlu0 %v876, 24
      %v1683 = vpop.permute.xlu0 %1682
      %1684 = vrot.lane.b32.xlu0 %v950, 24
      %v1685 = vpop.permute.xlu0 %1684
      %1686 = vrot.lane.b32.xlu0 %v879, 24
      %v1687 = vpop.permute.xlu0 %1686
      %1688 = vrot.lane.b32.xlu0 %v951, 24
      %v1689 = vpop.permute.xlu0 %1688
      %1690 = vrot.lane.b32.xlu0 %v882, 24
      %v1691 = vpop.permute.xlu0 %1690
      %1692 = vrot.lane.b32.xlu0 %v952, 24
      %v1693 = vpop.permute.xlu0 %1692
      %1694 = vrot.lane.b32.xlu0 %v885, 24
      %v1695 = vpop.permute.xlu0 %1694
      %1696 = vrot.lane.b32.xlu0 %v953, 24
      %v1697 = vpop.permute.xlu0 %1696
      %1698 = vrot.lane.b32.xlu0 %v888, 24
      %v1699 = vpop.permute.xlu0 %1698
      %1700 = vrot.lane.b32.xlu0 %v954, 24
      %v1701 = vpop.permute.xlu0 %1700
      %1702 = vrot.lane.b32.xlu0 %v891, 24
      %v1703 = vpop.permute.xlu0 %1702
      %1704 = vrot.lane.b32.xlu0 0.0, 24
      %v1705 = vpop.permute.xlu0 %1704
      %1737 = vrot.lane.b32.xlu0 %v1012, 28
      %v1738 = vpop.permute.xlu0 %1737
      %1739 = vrot.lane.b32.xlu0 %v1014, 28
      %v1740 = vpop.permute.xlu0 %1739
      %1741 = vrot.lane.b32.xlu0 %v1017, 28
      %v1742 = vpop.permute.xlu0 %1741
      %1743 = vrot.lane.b32.xlu0 %v1019, 28
      %v1744 = vpop.permute.xlu0 %1743
      %1745 = vrot.lane.b32.xlu0 %v1022, 28
      %v1746 = vpop.permute.xlu0 %1745
      %1747 = vrot.lane.b32.xlu0 %v1024, 28
      %v1748 = vpop.permute.xlu0 %1747
      %1749 = vrot.lane.b32.xlu0 %v1027, 28
      %v1750 = vpop.permute.xlu0 %1749
      %1751 = vrot.lane.b32.xlu0 %v1029, 28
      %v1752 = vpop.permute.xlu0 %1751
      %1753 = vrot.lane.b32.xlu0 %v1032, 28
      %v1754 = vpop.permute.xlu0 %1753
      %1755 = vrot.lane.b32.xlu0 %v1034, 28
      %v1756 = vpop.permute.xlu0 %1755
      %1757 = vrot.lane.b32.xlu0 %v1037, 28
      %v1758 = vpop.permute.xlu0 %1757
      %1759 = vrot.lane.b32.xlu0 %v1039, 28
      %v1760 = vpop.permute.xlu0 %1759
      %1761 = vrot.lane.b32.xlu0 %v1042, 28
      %v1762 = vpop.permute.xlu0 %1761
      %1763 = vrot.lane.b32.xlu0 %v1044, 28
      %v1764 = vpop.permute.xlu0 %1763
      %1765 = vrot.lane.b32.xlu0 %v1047, 28
      %v1766 = vpop.permute.xlu0 %1765
      %1767 = vrot.lane.b32.xlu0 %v1049, 28
      %v1768 = vpop.permute.xlu0 %1767
      %1769 = vrot.lane.b32.xlu0 %v1052, 28
      %v1770 = vpop.permute.xlu0 %1769
      %1771 = vrot.lane.b32.xlu0 %v1054, 28
      %v1772 = vpop.permute.xlu0 %1771
      %1773 = vrot.lane.b32.xlu0 %v1057, 28
      %v1774 = vpop.permute.xlu0 %1773
      %1775 = vrot.lane.b32.xlu0 %v1059, 28
      %v1776 = vpop.permute.xlu0 %1775
      %1777 = vrot.lane.b32.xlu0 %v1062, 28
      %v1778 = vpop.permute.xlu0 %1777
      %1779 = vrot.lane.b32.xlu0 %v1064, 28
      %v1780 = vpop.permute.xlu0 %1779
      %1781 = vrot.lane.b32.xlu0 %v1067, 28
      %v1782 = vpop.permute.xlu0 %1781
      %1783 = vrot.lane.b32.xlu0 %v1069, 28
      %v1784 = vpop.permute.xlu0 %1783
      %1785 = vrot.lane.b32.xlu0 %v1072, 28
      %v1786 = vpop.permute.xlu0 %1785
      %1787 = vrot.lane.b32.xlu0 %v1074, 28
      %v1788 = vpop.permute.xlu0 %1787
      %1789 = vrot.lane.b32.xlu0 %v1077, 28
      %v1790 = vpop.permute.xlu0 %1789
      %1791 = vrot.lane.b32.xlu0 %v1079, 28
      %v1792 = vpop.permute.xlu0 %1791
      %1793 = vrot.lane.b32.xlu0 %v1444, 28
      %v1794 = vpop.permute.xlu0 %1793
      %1795 = vrot.lane.b32.xlu0 %v1446, 28
      %v1796 = vpop.permute.xlu0 %1795
      %1797 = vrot.lane.b32.xlu0 %v1004, 28
      %v1798 = vpop.permute.xlu0 %1797
      %1830 = vrot.lane.b32.xlu0 %v1183, 32
      %v1831 = vpop.permute.xlu0 %1830
      %1832 = vrot.lane.b32.xlu0 %v1185, 32
      %v1833 = vpop.permute.xlu0 %1832
      %1834 = vrot.lane.b32.xlu0 %v1188, 32
      %v1835 = vpop.permute.xlu0 %1834
      %1836 = vrot.lane.b32.xlu0 %v1190, 32
      %v1837 = vpop.permute.xlu0 %1836
      %1838 = vrot.lane.b32.xlu0 %v1193, 32
      %v1839 = vpop.permute.xlu0 %1838
      %1840 = vrot.lane.b32.xlu0 %v1195, 32
      %v1841 = vpop.permute.xlu0 %1840
      %1842 = vrot.lane.b32.xlu0 %v1198, 32
      %v1843 = vpop.permute.xlu0 %1842
      %1844 = vrot.lane.b32.xlu0 %v1200, 32
      %v1845 = vpop.permute.xlu0 %1844
      %1846 = vrot.lane.b32.xlu0 %v1203, 32
      %v1847 = vpop.permute.xlu0 %1846
      %1848 = vrot.lane.b32.xlu0 %v1205, 32
      %v1849 = vpop.permute.xlu0 %1848
      %1850 = vrot.lane.b32.xlu0 %v1208, 32
      %v1851 = vpop.permute.xlu0 %1850
      %1852 = vrot.lane.b32.xlu0 %v1210, 32
      %v1853 = vpop.permute.xlu0 %1852
      %1854 = vrot.lane.b32.xlu0 %v1213, 32
      %v1855 = vpop.permute.xlu0 %1854
      %1856 = vrot.lane.b32.xlu0 %v1215, 32
      %v1857 = vpop.permute.xlu0 %1856
      %1858 = vrot.lane.b32.xlu0 %v1218, 32
      %v1859 = vpop.permute.xlu0 %1858
      %1860 = vrot.lane.b32.xlu0 %v1220, 32
      %v1861 = vpop.permute.xlu0 %1860
      %1862 = vrot.lane.b32.xlu0 %v1223, 32
      %v1863 = vpop.permute.xlu0 %1862
      %1864 = vrot.lane.b32.xlu0 %v1225, 32
      %v1865 = vpop.permute.xlu0 %1864
      %1866 = vrot.lane.b32.xlu0 %v1228, 32
      %v1867 = vpop.permute.xlu0 %1866
      %1868 = vrot.lane.b32.xlu0 %v1230, 32
      %v1869 = vpop.permute.xlu0 %1868
      %1870 = vrot.lane.b32.xlu0 %v1233, 32
      %v1871 = vpop.permute.xlu0 %1870
      %1872 = vrot.lane.b32.xlu0 %v1235, 32
      %v1873 = vpop.permute.xlu0 %1872
      %1874 = vrot.lane.b32.xlu0 %v1238, 32
      %v1875 = vpop.permute.xlu0 %1874
      %1876 = vrot.lane.b32.xlu0 %v1240, 32
      %v1877 = vpop.permute.xlu0 %1876
      %1878 = vrot.lane.b32.xlu0 %v1243, 32
      %v1879 = vpop.permute.xlu0 %1878
      %1880 = vrot.lane.b32.xlu0 %v1245, 32
      %v1881 = vpop.permute.xlu0 %1880
      %1882 = vrot.lane.b32.xlu0 %v1248, 32
      %v1883 = vpop.permute.xlu0 %1882
      %1884 = vrot.lane.b32.xlu0 %v1250, 32
      %v1885 = vpop.permute.xlu0 %1884
      %1886 = vrot.lane.b32.xlu0 %v1545, 32
      %v1887 = vpop.permute.xlu0 %1886
      %1888 = vrot.lane.b32.xlu0 %v1547, 32
      %v1889 = vpop.permute.xlu0 %1888
      %1890 = vrot.lane.b32.xlu0 %v1175, 32
      %v1891 = vpop.permute.xlu0 %1890
      %v1923 = vsel %vm507, 0.0, %v1081
      %v1924 = vsel %vm507, %v939, %v1083
      %v1925 = vsel %vm507, %v846, %v1085
      %v1926 = vsel %vm507, %v940, %v1087
      %v1927 = vsel %vm507, %v849, %v1089
      %v1928 = vsel %vm507, %v941, %v1091
      %v1929 = vsel %vm507, %v852, %v1093
      %v1930 = vsel %vm507, %v942, %v1095
      %v1931 = vsel %vm507, %v855, %v1097
      %v1932 = vsel %vm507, %v943, %v1099
      %v1933 = vsel %vm507, %v858, %v1101
      %v1934 = vsel %vm507, %v944, %v1103
      %v1935 = vsel %vm507, %v861, %v1105
      %v1936 = vsel %vm507, %v945, %v1107
      %v1937 = vsel %vm507, %v864, %v1109
      %v1938 = vsel %vm507, %v946, %v1111
      %v1939 = vsel %vm507, %v867, %v1113
      %v1940 = vsel %vm507, %v947, %v1115
      %v1941 = vsel %vm507, %v870, %v1117
      %v1942 = vsel %vm507, %v948, %v1119
      %v1943 = vsel %vm507, %v873, %v1121
      %v1944 = vsel %vm507, %v949, %v1123
      %v1945 = vsel %vm507, %v876, %v1125
      %v1946 = vsel %vm507, %v950, %v1127
      %v1947 = vsel %vm507, %v879, %v1129
      %v1948 = vsel %vm507, %v951, %v1131
      %v1949 = vsel %vm507, %v882, %v1133
      %v1950 = vsel %vm507, %v952, %v1135
      %v1951 = vsel %vm507, %v885, %v1137
      %v1952 = vsel %vm507, %v953, %v1139
      %v1953 = vsel %vm507, %v888, %v1141
      %vm1954 = vcmask 64512
      %v1955 = vsel %vm1954, %v1923, %v1252
      %v1956 = vsel %vm1954, %v1924, %v1254
      %v1957 = vsel %vm1954, %v1925, %v1256
      %v1958 = vsel %vm1954, %v1926, %v1258
      %v1959 = vsel %vm1954, %v1927, %v1260
      %v1960 = vsel %vm1954, %v1928, %v1262
      %v1961 = vsel %vm1954, %v1929, %v1264
      %v1962 = vsel %vm1954, %v1930, %v1266
      %v1963 = vsel %vm1954, %v1931, %v1268
      %v1964 = vsel %vm1954, %v1932, %v1270
      %v1965 = vsel %vm1954, %v1933, %v1272
      %v1966 = vsel %vm1954, %v1934, %v1274
      %v1967 = vsel %vm1954, %v1935, %v1276
      %v1968 = vsel %vm1954, %v1936, %v1278
      %v1969 = vsel %vm1954, %v1937, %v1280
      %v1970 = vsel %vm1954, %v1938, %v1282
      %v1971 = vsel %vm1954, %v1939, %v1284
      %v1972 = vsel %vm1954, %v1940, %v1286
      %v1973 = vsel %vm1954, %v1941, %v1288
      %v1974 = vsel %vm1954, %v1942, %v1290
      %v1975 = vsel %vm1954, %v1943, %v1292
      %v1976 = vsel %vm1954, %v1944, %v1294
      %v1977 = vsel %vm1954, %v1945, %v1296
      %v1978 = vsel %vm1954, %v1946, %v1298
      %v1979 = vsel %vm1954, %v1947, %v1300
      %v1980 = vsel %vm1954, %v1948, %v1302
      %v1981 = vsel %vm1954, %v1949, %v1304
      %v1982 = vsel %vm1954, %v1950, %v1306
      %v1983 = vsel %vm1954, %v1951, %v1308
      %v1984 = vsel %vm1954, %v1952, %v1310
      %v1985 = vsel %vm1954, %v1953, %v1312
      %vm1986 = vcmask 97280
      %v1987 = vsel %vm1986, %v1955, %v1346
      %v1988 = vsel %vm1986, %v1955, %v1348
      %v1989 = vsel %vm1986, %v1956, %v1350
      %v1990 = vsel %vm1986, %v1957, %v1352
      %v1991 = vsel %vm1986, %v1958, %v1354
      %v1992 = vsel %vm1986, %v1959, %v1356
      %v1993 = vsel %vm1986, %v1960, %v1358
      %v1994 = vsel %vm1986, %v1961, %v1360
      %v1995 = vsel %vm1986, %v1962, %v1362
      %v1996 = vsel %vm1986, %v1963, %v1364
      %v1997 = vsel %vm1986, %v1964, %v1366
      %v1998 = vsel %vm1986, %v1965, %v1368
      %v1999 = vsel %vm1986, %v1966, %v1370
      %v2000 = vsel %vm1986, %v1967, %v1372
      %v2001 = vsel %vm1986, %v1968, %v1374
      %v2002 = vsel %vm1986, %v1969, %v1376
      %v2003 = vsel %vm1986, %v1970, %v1378
      %v2004 = vsel %vm1986, %v1971, %v1380
      %v2005 = vsel %vm1986, %v1972, %v1382
      %v2006 = vsel %vm1986, %v1973, %v1384
      %v2007 = vsel %vm1986, %v1974, %v1386
      %v2008 = vsel %vm1986, %v1975, %v1388
      %v2009 = vsel %vm1986, %v1976, %v1390
      %v2010 = vsel %vm1986, %v1977, %v1392
      %v2011 = vsel %vm1986, %v1978, %v1394
      %v2012 = vsel %vm1986, %v1979, %v1396
      %v2013 = vsel %vm1986, %v1980, %v1398
      %v2014 = vsel %vm1986, %v1981, %v1400
      %v2015 = vsel %vm1986, %v1982, %v1402
      %v2016 = vsel %vm1986, %v1983, %v1404
      %v2017 = vsel %vm1986, %v1984, %v1406
      %v2018 = vsel %vm1986, %v1985, %v1408
      %vm2019 = vcmask 130048
      %v2020 = vsel %vm2019, %v1987, %v1448
      %v2021 = vsel %vm2019, %v1988, %v1450
      %v2022 = vsel %vm2019, %v1989, %v1452
      %v2023 = vsel %vm2019, %v1990, %v1454
      %v2024 = vsel %vm2019, %v1991, %v1456
      %v2025 = vsel %vm2019, %v1992, %v1458
      %v2026 = vsel %vm2019, %v1993, %v1460
      %v2027 = vsel %vm2019, %v1994, %v1462
      %v2028 = vsel %vm2019, %v1995, %v1464
      %v2029 = vsel %vm2019, %v1996, %v1466
      %v2030 = vsel %vm2019, %v1997, %v1468
      %v2031 = vsel %vm2019, %v1998, %v1470
      %v2032 = vsel %vm2019, %v1999, %v1472
      %v2033 = vsel %vm2019, %v2000, %v1474
      %v2034 = vsel %vm2019, %v2001, %v1476
      %v2035 = vsel %vm2019, %v2002, %v1478
      %v2036 = vsel %vm2019, %v2003, %v1480
      %v2037 = vsel %vm2019, %v2004, %v1482
      %v2038 = vsel %vm2019, %v2005, %v1484
      %v2039 = vsel %vm2019, %v2006, %v1486
      %v2040 = vsel %vm2019, %v2007, %v1488
      %v2041 = vsel %vm2019, %v2008, %v1490
      %v2042 = vsel %vm2019, %v2009, %v1492
      %v2043 = vsel %vm2019, %v2010, %v1494
      %v2044 = vsel %vm2019, %v2011, %v1496
      %v2045 = vsel %vm2019, %v2012, %v1498
      %v2046 = vsel %vm2019, %v2013, %v1500
      %v2047 = vsel %vm2019, %v2014, %v1502
      %v2048 = vsel %vm2019, %v2015, %v1504
      %v2049 = vsel %vm2019, %v2016, %v1506
      %v2050 = vsel %vm2019, %v2017, %v1508
      %v2051 = vsel %vm2019, %v2018, %v1510
      %vm2052 = vcmask 162816
      %v2053 = vsel %vm2052, %v2020, %v1549
      %v2054 = vsel %vm2052, %v2021, %v1551
      %v2055 = vsel %vm2052, %v2022, %v1553
      %v2056 = vsel %vm2052, %v2023, %v1555
      %v2057 = vsel %vm2052, %v2024, %v1557
      %v2058 = vsel %vm2052, %v2025, %v1559
      %v2059 = vsel %vm2052, %v2026, %v1561
      %v2060 = vsel %vm2052, %v2027, %v1563
      %v2061 = vsel %vm2052, %v2028, %v1565
      %v2062 = vsel %vm2052, %v2029, %v1567
      %v2063 = vsel %vm2052, %v2030, %v1569
      %v2064 = vsel %vm2052, %v2031, %v1571
      %v2065 = vsel %vm2052, %v2032, %v1573
      %v2066 = vsel %vm2052, %v2033, %v1575
      %v2067 = vsel %vm2052, %v2034, %v1577
      %v2068 = vsel %vm2052, %v2035, %v1579
      %v2069 = vsel %vm2052, %v2036, %v1581
      %v2070 = vsel %vm2052, %v2037, %v1583
      %v2071 = vsel %vm2052, %v2038, %v1585
      %v2072 = vsel %vm2052, %v2039, %v1587
      %v2073 = vsel %vm2052, %v2040, %v1589
      %v2074 = vsel %vm2052, %v2041, %v1591
      %v2075 = vsel %vm2052, %v2042, %v1593
      %v2076 = vsel %vm2052, %v2043, %v1595
      %v2077 = vsel %vm2052, %v2044, %v1597
      %v2078 = vsel %vm2052, %v2045, %v1599
      %v2079 = vsel %vm2052, %v2046, %v1601
      %v2080 = vsel %vm2052, %v2047, %v1603
      %v2081 = vsel %vm2052, %v2048, %v1605
      %v2082 = vsel %vm2052, %v2049, %v1607
      %v2083 = vsel %vm2052, %v2050, %v1609
      %v2084 = vsel %vm2052, %v2051, %v1611
      %vm2085 = vcmask 195584
      %v2086 = vsel %vm2085, %v2053, %v1645
      %v2087 = vsel %vm2085, %v2054, %v1647
      %v2088 = vsel %vm2085, %v2055, %v1649
      %v2089 = vsel %vm2085, %v2056, %v1651
      %v2090 = vsel %vm2085, %v2057, %v1653
      %v2091 = vsel %vm2085, %v2058, %v1655
      %v2092 = vsel %vm2085, %v2059, %v1657
      %v2093 = vsel %vm2085, %v2060, %v1659
      %v2094 = vsel %vm2085, %v2061, %v1661
      %v2095 = vsel %vm2085, %v2062, %v1663
      %v2096 = vsel %vm2085, %v2063, %v1665
      %v2097 = vsel %vm2085, %v2064, %v1667
      %v2098 = vsel %vm2085, %v2065, %v1669
      %v2099 = vsel %vm2085, %v2066, %v1671
      %v2100 = vsel %vm2085, %v2067, %v1673
      %v2101 = vsel %vm2085, %v2068, %v1675
      %v2102 = vsel %vm2085, %v2069, %v1677
      %v2103 = vsel %vm2085, %v2070, %v1679
      %v2104 = vsel %vm2085, %v2071, %v1681
      %v2105 = vsel %vm2085, %v2072, %v1683
      %v2106 = vsel %vm2085, %v2073, %v1685
      %v2107 = vsel %vm2085, %v2074, %v1687
      %v2108 = vsel %vm2085, %v2075, %v1689
      %v2109 = vsel %vm2085, %v2076, %v1691
      %v2110 = vsel %vm2085, %v2077, %v1693
      %v2111 = vsel %vm2085, %v2078, %v1695
      %v2112 = vsel %vm2085, %v2079, %v1697
      %v2113 = vsel %vm2085, %v2080, %v1699
      %v2114 = vsel %vm2085, %v2081, %v1701
      %v2115 = vsel %vm2085, %v2082, %v1703
      %v2116 = vsel %vm2085, %v2083, %v1705
      %v2117 = vsel %vm2085, %v2084, %v1705
      %vm2118 = vcmask 228352
      %v2119 = vsel %vm2118, %v2086, %v1738
      %v2120 = vsel %vm2118, %v2087, %v1740
      %v2121 = vsel %vm2118, %v2088, %v1742
      %v2122 = vsel %vm2118, %v2089, %v1744
      %v2123 = vsel %vm2118, %v2090, %v1746
      %v2124 = vsel %vm2118, %v2091, %v1748
      %v2125 = vsel %vm2118, %v2092, %v1750
      %v2126 = vsel %vm2118, %v2093, %v1752
      %v2127 = vsel %vm2118, %v2094, %v1754
      %v2128 = vsel %vm2118, %v2095, %v1756
      %v2129 = vsel %vm2118, %v2096, %v1758
      %v2130 = vsel %vm2118, %v2097, %v1760
      %v2131 = vsel %vm2118, %v2098, %v1762
      %v2132 = vsel %vm2118, %v2099, %v1764
      %v2133 = vsel %vm2118, %v2100, %v1766
      %v2134 = vsel %vm2118, %v2101, %v1768
      %v2135 = vsel %vm2118, %v2102, %v1770
      %v2136 = vsel %vm2118, %v2103, %v1772
      %v2137 = vsel %vm2118, %v2104, %v1774
      %v2138 = vsel %vm2118, %v2105, %v1776
      %v2139 = vsel %vm2118, %v2106, %v1778
      %v2140 = vsel %vm2118, %v2107, %v1780
      %v2141 = vsel %vm2118, %v2108, %v1782
      %v2142 = vsel %vm2118, %v2109, %v1784
      %v2143 = vsel %vm2118, %v2110, %v1786
      %v2144 = vsel %vm2118, %v2111, %v1788
      %v2145 = vsel %vm2118, %v2112, %v1790
      %v2146 = vsel %vm2118, %v2113, %v1792
      %v2147 = vsel %vm2118, %v2114, %v1794
      %v2148 = vsel %vm2118, %v2115, %v1796
      %v2149 = vsel %vm2118, %v2116, %v1798
      %v2150 = vsel %vm2118, %v2117, %v1798
      %vm2151 = vcmask 261120
      %v2152 = vsel %vm2151, %v2119, %v1831
      %v2153 = vsel %vm2151, %v2120, %v1833
      %v2154 = vsel %vm2151, %v2121, %v1835
      %v2155 = vsel %vm2151, %v2122, %v1837
      %v2156 = vsel %vm2151, %v2123, %v1839
      %v2157 = vsel %vm2151, %v2124, %v1841
      %v2158 = vsel %vm2151, %v2125, %v1843
      %v2159 = vsel %vm2151, %v2126, %v1845
      %v2160 = vsel %vm2151, %v2127, %v1847
      %v2161 = vsel %vm2151, %v2128, %v1849
      %v2162 = vsel %vm2151, %v2129, %v1851
      %v2163 = vsel %vm2151, %v2130, %v1853
      %v2164 = vsel %vm2151, %v2131, %v1855
      %v2165 = vsel %vm2151, %v2132, %v1857
      %v2166 = vsel %vm2151, %v2133, %v1859
      %v2167 = vsel %vm2151, %v2134, %v1861
      %v2168 = vsel %vm2151, %v2135, %v1863
      %v2169 = vsel %vm2151, %v2136, %v1865
      %v2170 = vsel %vm2151, %v2137, %v1867
      %v2171 = vsel %vm2151, %v2138, %v1869
      %v2172 = vsel %vm2151, %v2139, %v1871
      %v2173 = vsel %vm2151, %v2140, %v1873
      %v2174 = vsel %vm2151, %v2141, %v1875
      %v2175 = vsel %vm2151, %v2142, %v1877
      %v2176 = vsel %vm2151, %v2143, %v1879
      %v2177 = vsel %vm2151, %v2144, %v1881
      %v2178 = vsel %vm2151, %v2145, %v1883
      %v2179 = vsel %vm2151, %v2146, %v1885
      %v2180 = vsel %vm2151, %v2147, %v1887
      %v2181 = vsel %vm2151, %v2148, %v1889
      %v2182 = vsel %vm2151, %v2149, %v1891
      %v2183 = vsel %vm2151, %v2150, %v1891
      %v2184 = vpack.c.bf16 %v2153, %v2152
      %v2185 = vpack.c.bf16 %v2155, %v2154
      %v2186 = vpack.c.bf16 %v2157, %v2156
      %v2187 = vpack.c.bf16 %v2159, %v2158
      %v2188 = vpack.c.bf16 %v2161, %v2160
      %v2189 = vpack.c.bf16 %v2163, %v2162
      %v2190 = vpack.c.bf16 %v2165, %v2164
      %v2191 = vpack.c.bf16 %v2167, %v2166
      %v2192 = vpack.c.bf16 %v2169, %v2168
      %v2193 = vpack.c.bf16 %v2171, %v2170
      %v2194 = vpack.c.bf16 %v2173, %v2172
      %v2195 = vpack.c.bf16 %v2175, %v2174
      %v2196 = vpack.c.bf16 %v2177, %v2176
      %v2197 = vpack.c.bf16 %v2179, %v2178
      %v2198 = vpack.c.bf16 %v2181, %v2180
      %v2199 = vpack.c.bf16 %v2183, %v2182
      %2201 = vset.pattern.permute.xlu0 0
      %2202 = vperm.xlu0 %2201, %v810
      %v2203 = vpop.permute.xlu0 %2202
      %vm2205 = vcmask 293888
      %v2207 = vsel %vm2205, %v809, 0
      %v2210 = vsel %vm2205, %v2184, 0
      %v2213 = vsel %vm2205, %v2185, 0
      %v2216 = vsel %vm2205, %v2186, 0
      %v2219 = vsel %vm2205, %v2187, 0
      %v2222 = vsel %vm2205, %v2188, 0
      %v2225 = vsel %vm2205, %v2189, 0
      %v2228 = vsel %vm2205, %v2190, 0
      %v2231 = vsel %vm2205, %v2191, 0
      %v2234 = vsel %vm2205, %v2192, 0
      %v2237 = vsel %vm2205, %v2193, 0
      %v2240 = vsel %vm2205, %v2194, 0
      %v2243 = vsel %vm2205, %v2195, 0
      %v2246 = vsel %vm2205, %v2196, 0
      %v2249 = vsel %vm2205, %v2197, 0
      %v2252 = vsel %vm2205, %v2198, 0
      %v2255 = vsel %vm2205, %v2199, 0
      %2257 = vmatprep.subr.bf16.mxu0 0
      %2258 = vmatpush1.bf16.xpose.msra.mxu0 %v2210
      %2259 = vmatprep.subr.bf16.mxu0 0
      %2260 = vmatpush1.bf16.xpose.msra.mxu0 %v2213
      %2261 = vmatprep.subr.bf16.mxu0 0
      %2262 = vmatpush1.bf16.xpose.msra.mxu0 %v2216
      %2263 = vmatprep.subr.bf16.mxu0 0
      %2264 = vmatpush1.bf16.xpose.msra.mxu0 %v2219
      %2265 = vmatprep.subr.bf16.mxu0 0
      %2266 = vmatpush1.bf16.xpose.msra.mxu0 %v2222
      %2267 = vmatprep.subr.bf16.mxu0 0
      %2268 = vmatpush1.bf16.xpose.msra.mxu0 %v2225
      %2269 = vmatprep.subr.bf16.mxu0 0
      %2270 = vmatpush1.bf16.xpose.msra.mxu0 %v2228
      %2271 = vmatprep.subr.bf16.mxu0 0
      %2272 = vmatpush1.bf16.xpose.msra.mxu0 %v2231
      %2273 = vmatprep.subr.bf16.mxu0 0
      %2274 = vmatpush1.bf16.xpose.msra.mxu0 %v2234
      %2275 = vmatprep.subr.bf16.mxu0 0
      %2276 = vmatpush1.bf16.xpose.msra.mxu0 %v2237
      %2277 = vmatprep.subr.bf16.mxu0 0
      %2278 = vmatpush1.bf16.xpose.msra.mxu0 %v2240
      %2279 = vmatprep.subr.bf16.mxu0 0
      %2280 = vmatpush1.bf16.xpose.msra.mxu0 %v2243
      %2281 = vmatprep.subr.bf16.mxu0 0
      %2282 = vmatpush1.bf16.xpose.msra.mxu0 %v2246
      %2283 = vmatprep.subr.bf16.mxu0 0
      %2284 = vmatpush1.bf16.xpose.msra.mxu0 %v2249
      %2285 = vmatprep.subr.bf16.mxu0 0
      %2286 = vmatpush1.bf16.xpose.msra.mxu0 %v2252
      %2287 = vmatprep.subr.bf16.mxu0 0
      %2288 = vmatpush1.bf16.xpose.msra.mxu0 %v2255
      %2289 = vmatprep.mubr.bf16.mxu0 0
      %2290 = vmatmul.mubr.bf16.gmra.mrb[0].mxu0 %v2207
      %v2291 = vpop.f32.mrb[0].mxu0
      %v2292 = vadd.f32 %v2203, %v2291
      %v2293 = vpop.f32.mrb[0].mxu0
      %v2294 = vadd.f32 %v2203, %v2293
      %v2295 = vpop.f32.mrb[0].mxu0
      %v2296 = vpop.f32.mrb[0].mxu0
      %2297 = vdwg.mxu0
      %v2298 = vmax.f32 %v2292, 0.0
      %v2299 = vmax.f32 %v2294, 0.0
      %v2302 = vrot.slane %v2298, 4
      %v2303 = vrot.slane %v2299, 4
      %2306 = vst [vmem:[%s386] sm:$0xf0] %v2302
      %2307 = vst [vmem:[%s386 + $0x8] sm:$0xf0] %v2303
      %2308 = vst [vmem:[%s386 + $0x10] sm:$0xf] %v2302
      %2309 = vst [vmem:[%s386 + $0x18] sm:$0xf] %v2303
      %v2310 = vld [vmem:[%s7] sm:$0x3]
      %v2311 = vld [vmem:[%s8] sm:$0xf]
      %v2312 = vrot.slane %v777, 6
      %v2313 = vrot.slane %v778, 6
      %v2314 = vsel %vm612, %v2312, %v2313
      %v2315 = vrot.slane %v779, 6
      %v2316 = vrot.slane %v780, 6
      %v2317 = vsel %vm612, %v2315, %v2316
      %v2318 = vrot.slane %v781, 6
      %v2319 = vrot.slane %v782, 6
      %v2320 = vsel %vm612, %v2318, %v2319
      %v2321 = vrot.slane %v783, 6
      %v2322 = vrot.slane %v784, 6
      %v2323 = vsel %vm612, %v2321, %v2322
      %v2324 = vrot.slane %v785, 6
      %v2325 = vrot.slane %v786, 6
      %v2326 = vsel %vm612, %v2324, %v2325
      %v2327 = vrot.slane %v787, 6
      %v2328 = vrot.slane %v788, 6
      %v2329 = vsel %vm612, %v2327, %v2328
      %v2330 = vrot.slane %v789, 6
      %v2331 = vrot.slane %v790, 6
      %v2332 = vsel %vm612, %v2330, %v2331
      %v2333 = vrot.slane %v791, 6
      %v2334 = vrot.slane %v792, 6
      %v2335 = vsel %vm612, %v2333, %v2334
      %v2336 = vrot.slane %v793, 6
      %v2337 = vrot.slane %v794, 6
      %v2338 = vsel %vm612, %v2336, %v2337
      %v2339 = vrot.slane %v795, 6
      %v2340 = vrot.slane %v796, 6
      %v2341 = vsel %vm612, %v2339, %v2340
      %v2342 = vrot.slane %v797, 6
      %v2343 = vrot.slane %v798, 6
      %v2344 = vsel %vm612, %v2342, %v2343
      %v2345 = vrot.slane %v799, 6
      %v2346 = vrot.slane %v800, 6
      %v2347 = vsel %vm612, %v2345, %v2346
      %v2348 = vrot.slane %v801, 6
      %v2349 = vrot.slane %v802, 6
      %v2350 = vsel %vm612, %v2348, %v2349
      %v2351 = vrot.slane %v803, 6
      %v2352 = vrot.slane %v804, 6
      %v2353 = vsel %vm612, %v2351, %v2352
      %v2354 = vrot.slane %v805, 6
      %v2355 = vrot.slane %v806, 6
      %v2356 = vsel %vm612, %v2354, %v2355
      %v2357 = vrot.slane %v807, 6
      %v2358 = vrot.slane %v808, 6
      %v2359 = vsel %vm612, %v2357, %v2358
      %2360 = vrot.lane.b32.xlu0 %v2312, 124
      %v2361 = vpop.permute.xlu0 %2360
      %2362 = vrot.lane.b32.xlu0 %v2314, 124
      %v2363 = vpop.permute.xlu0 %2362
      %2364 = vrot.lane.b32.xlu0 %v2313, 124
      %v2365 = vpop.permute.xlu0 %2364
      %2366 = vrot.lane.b32.xlu0 %v2315, 124
      %v2367 = vpop.permute.xlu0 %2366
      %2368 = vrot.lane.b32.xlu0 %v2317, 124
      %v2369 = vpop.permute.xlu0 %2368
      %2370 = vrot.lane.b32.xlu0 %v2316, 124
      %v2371 = vpop.permute.xlu0 %2370
      %2372 = vrot.lane.b32.xlu0 %v2318, 124
      %v2373 = vpop.permute.xlu0 %2372
      %2374 = vrot.lane.b32.xlu0 %v2320, 124
      %v2375 = vpop.permute.xlu0 %2374
      %2376 = vrot.lane.b32.xlu0 %v2319, 124
      %v2377 = vpop.permute.xlu0 %2376
      %2378 = vrot.lane.b32.xlu0 %v2321, 124
      %v2379 = vpop.permute.xlu0 %2378
      %2380 = vrot.lane.b32.xlu0 %v2323, 124
      %v2381 = vpop.permute.xlu0 %2380
      %2382 = vrot.lane.b32.xlu0 %v2322, 124
      %v2383 = vpop.permute.xlu0 %2382
      %2384 = vrot.lane.b32.xlu0 %v2324, 124
      %v2385 = vpop.permute.xlu0 %2384
      %2386 = vrot.lane.b32.xlu0 %v2326, 124
      %v2387 = vpop.permute.xlu0 %2386
      %2388 = vrot.lane.b32.xlu0 %v2325, 124
      %v2389 = vpop.permute.xlu0 %2388
      %2390 = vrot.lane.b32.xlu0 %v2327, 124
      %v2391 = vpop.permute.xlu0 %2390
      %2392 = vrot.lane.b32.xlu0 %v2329, 124
      %v2393 = vpop.permute.xlu0 %2392
      %2394 = vrot.lane.b32.xlu0 %v2328, 124
      %v2395 = vpop.permute.xlu0 %2394
      %2396 = vrot.lane.b32.xlu0 %v2330, 124
      %v2397 = vpop.permute.xlu0 %2396
      %2398 = vrot.lane.b32.xlu0 %v2332, 124
      %v2399 = vpop.permute.xlu0 %2398
      %2400 = vrot.lane.b32.xlu0 %v2331, 124
      %v2401 = vpop.permute.xlu0 %2400
      %2402 = vrot.lane.b32.xlu0 %v2333, 124
      %v2403 = vpop.permute.xlu0 %2402
      %2404 = vrot.lane.b32.xlu0 %v2335, 124
      %v2405 = vpop.permute.xlu0 %2404
      %2406 = vrot.lane.b32.xlu0 %v2334, 124
      %v2407 = vpop.permute.xlu0 %2406
      %2408 = vrot.lane.b32.xlu0 %v2336, 124
      %v2409 = vpop.permute.xlu0 %2408
      %2410 = vrot.lane.b32.xlu0 %v2338, 124
      %v2411 = vpop.permute.xlu0 %2410
      %2412 = vrot.lane.b32.xlu0 %v2337, 124
      %v2413 = vpop.permute.xlu0 %2412
      %2414 = vrot.lane.b32.xlu0 %v2339, 124
      %v2415 = vpop.permute.xlu0 %2414
      %2416 = vrot.lane.b32.xlu0 %v2341, 124
      %v2417 = vpop.permute.xlu0 %2416
      %2418 = vrot.lane.b32.xlu0 %v2340, 124
      %v2419 = vpop.permute.xlu0 %2418
      %2420 = vrot.lane.b32.xlu0 %v2342, 124
      %v2421 = vpop.permute.xlu0 %2420
      %2422 = vrot.lane.b32.xlu0 %v2344, 124
      %v2423 = vpop.permute.xlu0 %2422
      %2424 = vrot.lane.b32.xlu0 %v2343, 124
      %v2425 = vpop.permute.xlu0 %2424
      %2426 = vrot.lane.b32.xlu0 %v2345, 124
      %v2427 = vpop.permute.xlu0 %2426
      %2428 = vrot.lane.b32.xlu0 %v2347, 124
      %v2429 = vpop.permute.xlu0 %2428
      %2430 = vrot.lane.b32.xlu0 %v2346, 124
      %v2431 = vpop.permute.xlu0 %2430
      %2432 = vrot.lane.b32.xlu0 %v2348, 124
      %v2433 = vpop.permute.xlu0 %2432
      %2434 = vrot.lane.b32.xlu0 %v2350, 124
      %v2435 = vpop.permute.xlu0 %2434
      %2436 = vrot.lane.b32.xlu0 %v2349, 124
      %v2437 = vpop.permute.xlu0 %2436
      %2438 = vrot.lane.b32.xlu0 %v2351, 124
      %v2439 = vpop.permute.xlu0 %2438
      %2440 = vrot.lane.b32.xlu0 %v2353, 124
      %v2441 = vpop.permute.xlu0 %2440
      %2442 = vrot.lane.b32.xlu0 %v2352, 124
      %v2443 = vpop.permute.xlu0 %2442
      %2444 = vrot.lane.b32.xlu0 %v2354, 124
      %v2445 = vpop.permute.xlu0 %2444
      %2446 = vrot.lane.b32.xlu0 %v2356, 124
      %v2447 = vpop.permute.xlu0 %2446
      %2448 = vrot.lane.b32.xlu0 %v2355, 124
      %v2449 = vpop.permute.xlu0 %2448
      %2450 = vrot.lane.b32.xlu0 %v2357, 124
      %v2451 = vpop.permute.xlu0 %2450
      %2452 = vrot.lane.b32.xlu0 %v2359, 124
      %v2453 = vpop.permute.xlu0 %2452
      %2454 = vrot.lane.b32.xlu0 %v2358, 124
      %v2455 = vpop.permute.xlu0 %2454
      %v2504 = vsel %vm612, 0.0, %v2361
      %v2505 = vsel %vm612, 0.0, %v2367
      %v2506 = vsel %vm612, 0.0, %v2373
      %v2507 = vsel %vm612, 0.0, %v2379
      %v2508 = vsel %vm612, 0.0, %v2385
      %v2509 = vsel %vm612, 0.0, %v2391
      %v2510 = vsel %vm612, 0.0, %v2397
      %v2511 = vsel %vm612, 0.0, %v2403
      %v2512 = vsel %vm612, 0.0, %v2409
      %v2513 = vsel %vm612, 0.0, %v2415
      %v2514 = vsel %vm612, 0.0, %v2421
      %v2515 = vsel %vm612, 0.0, %v2427
      %v2516 = vsel %vm612, 0.0, %v2433
      %v2517 = vsel %vm612, 0.0, %v2439
      %v2518 = vsel %vm612, 0.0, %v2445
      %v2519 = vsel %vm612, 0.0, %v2451
      %v2520 = vsel %vm612, %v2365, 0.0
      %v2521 = vsel %vm612, %v2371, 0.0
      %v2522 = vsel %vm612, %v2377, 0.0
      %v2523 = vsel %vm612, %v2383, 0.0
      %v2524 = vsel %vm612, %v2389, 0.0
      %v2525 = vsel %vm612, %v2395, 0.0
      %v2526 = vsel %vm612, %v2401, 0.0
      %v2527 = vsel %vm612, %v2407, 0.0
      %v2528 = vsel %vm612, %v2413, 0.0
      %v2529 = vsel %vm612, %v2419, 0.0
      %v2530 = vsel %vm612, %v2425, 0.0
      %v2531 = vsel %vm612, %v2431, 0.0
      %v2532 = vsel %vm612, %v2437, 0.0
      %v2533 = vsel %vm612, %v2443, 0.0
      %v2534 = vsel %vm612, %v2449, 0.0
      %v2535 = vsel %vm612, %v2455, 0.0
      %v2564 = vrot.slane %v2504, 1
      %v2565 = vrot.slane %v2363, 1
      %v2566 = vsel %vm1002, %v2564, %v2565
      %v2567 = vrot.slane %v2520, 1
      %v2568 = vsel %vm1002, %v2565, %v2567
      %v2569 = vrot.slane %v2505, 1
      %v2570 = vrot.slane %v2369, 1
      %v2571 = vsel %vm1002, %v2569, %v2570
      %v2572 = vrot.slane %v2521, 1
      %v2573 = vsel %vm1002, %v2570, %v2572
      %v2574 = vrot.slane %v2506, 1
      %v2575 = vrot.slane %v2375, 1
      %v2576 = vsel %vm1002, %v2574, %v2575
      %v2577 = vrot.slane %v2522, 1
      %v2578 = vsel %vm1002, %v2575, %v2577
      %v2579 = vrot.slane %v2507, 1
      %v2580 = vrot.slane %v2381, 1
      %v2581 = vsel %vm1002, %v2579, %v2580
      %v2582 = vrot.slane %v2523, 1
      %v2583 = vsel %vm1002, %v2580, %v2582
      %v2584 = vrot.slane %v2508, 1
      %v2585 = vrot.slane %v2387, 1
      %v2586 = vsel %vm1002, %v2584, %v2585
      %v2587 = vrot.slane %v2524, 1
      %v2588 = vsel %vm1002, %v2585, %v2587
      %v2589 = vrot.slane %v2509, 1
      %v2590 = vrot.slane %v2393, 1
      %v2591 = vsel %vm1002, %v2589, %v2590
      %v2592 = vrot.slane %v2525, 1
      %v2593 = vsel %vm1002, %v2590, %v2592
      %v2594 = vrot.slane %v2510, 1
      %v2595 = vrot.slane %v2399, 1
      %v2596 = vsel %vm1002, %v2594, %v2595
      %v2597 = vrot.slane %v2526, 1
      %v2598 = vsel %vm1002, %v2595, %v2597
      %v2599 = vrot.slane %v2511, 1
      %v2600 = vrot.slane %v2405, 1
      %v2601 = vsel %vm1002, %v2599, %v2600
      %v2602 = vrot.slane %v2527, 1
      %v2603 = vsel %vm1002, %v2600, %v2602
      %v2604 = vrot.slane %v2512, 1
      %v2605 = vrot.slane %v2411, 1
      %v2606 = vsel %vm1002, %v2604, %v2605
      %v2607 = vrot.slane %v2528, 1
      %v2608 = vsel %vm1002, %v2605, %v2607
      %v2609 = vrot.slane %v2513, 1
      %v2610 = vrot.slane %v2417, 1
      %v2611 = vsel %vm1002, %v2609, %v2610
      %v2612 = vrot.slane %v2529, 1
      %v2613 = vsel %vm1002, %v2610, %v2612
      %v2614 = vrot.slane %v2514, 1
      %v2615 = vrot.slane %v2423, 1
      %v2616 = vsel %vm1002, %v2614, %v2615
      %v2617 = vrot.slane %v2530, 1
      %v2618 = vsel %vm1002, %v2615, %v2617
      %v2619 = vrot.slane %v2515, 1
      %v2620 = vrot.slane %v2429, 1
      %v2621 = vsel %vm1002, %v2619, %v2620
      %v2622 = vrot.slane %v2531, 1
      %v2623 = vsel %vm1002, %v2620, %v2622
      %v2624 = vrot.slane %v2516, 1
      %v2625 = vrot.slane %v2435, 1
      %v2626 = vsel %vm1002, %v2624, %v2625
      %v2627 = vrot.slane %v2532, 1
      %v2628 = vsel %vm1002, %v2625, %v2627
      %v2629 = vrot.slane %v2517, 1
      %v2630 = vrot.slane %v2441, 1
      %v2631 = vsel %vm1002, %v2629, %v2630
      %v2632 = vrot.slane %v2533, 1
      %v2633 = vsel %vm1002, %v2630, %v2632
      %2634 = vrot.lane.b32.xlu0 %v1004, 2
      %v2635 = vpop.permute.xlu0 %2634
      %2636 = vrot.lane.b32.xlu0 %v2566, 2
      %v2637 = vpop.permute.xlu0 %2636
      %2638 = vrot.lane.b32.xlu0 %v2568, 2
      %v2639 = vpop.permute.xlu0 %2638
      %2640 = vrot.lane.b32.xlu0 %v2571, 2
      %v2641 = vpop.permute.xlu0 %2640
      %2642 = vrot.lane.b32.xlu0 %v2573, 2
      %v2643 = vpop.permute.xlu0 %2642
      %2644 = vrot.lane.b32.xlu0 %v2576, 2
      %v2645 = vpop.permute.xlu0 %2644
      %2646 = vrot.lane.b32.xlu0 %v2578, 2
      %v2647 = vpop.permute.xlu0 %2646
      %2648 = vrot.lane.b32.xlu0 %v2581, 2
      %v2649 = vpop.permute.xlu0 %2648
      %2650 = vrot.lane.b32.xlu0 %v2583, 2
      %v2651 = vpop.permute.xlu0 %2650
      %2652 = vrot.lane.b32.xlu0 %v2586, 2
      %v2653 = vpop.permute.xlu0 %2652
      %2654 = vrot.lane.b32.xlu0 %v2588, 2
      %v2655 = vpop.permute.xlu0 %2654
      %2656 = vrot.lane.b32.xlu0 %v2591, 2
      %v2657 = vpop.permute.xlu0 %2656
      %2658 = vrot.lane.b32.xlu0 %v2593, 2
      %v2659 = vpop.permute.xlu0 %2658
      %2660 = vrot.lane.b32.xlu0 %v2596, 2
      %v2661 = vpop.permute.xlu0 %2660
      %2662 = vrot.lane.b32.xlu0 %v2598, 2
      %v2663 = vpop.permute.xlu0 %2662
      %2664 = vrot.lane.b32.xlu0 %v2601, 2
      %v2665 = vpop.permute.xlu0 %2664
      %2666 = vrot.lane.b32.xlu0 %v2603, 2
      %v2667 = vpop.permute.xlu0 %2666
      %2668 = vrot.lane.b32.xlu0 %v2606, 2
      %v2669 = vpop.permute.xlu0 %2668
      %2670 = vrot.lane.b32.xlu0 %v2608, 2
      %v2671 = vpop.permute.xlu0 %2670
      %2672 = vrot.lane.b32.xlu0 %v2611, 2
      %v2673 = vpop.permute.xlu0 %2672
      %2674 = vrot.lane.b32.xlu0 %v2613, 2
      %v2675 = vpop.permute.xlu0 %2674
      %2676 = vrot.lane.b32.xlu0 %v2616, 2
      %v2677 = vpop.permute.xlu0 %2676
      %2678 = vrot.lane.b32.xlu0 %v2618, 2
      %v2679 = vpop.permute.xlu0 %2678
      %2680 = vrot.lane.b32.xlu0 %v2621, 2
      %v2681 = vpop.permute.xlu0 %2680
      %2682 = vrot.lane.b32.xlu0 %v2623, 2
      %v2683 = vpop.permute.xlu0 %2682
      %2684 = vrot.lane.b32.xlu0 %v2626, 2
      %v2685 = vpop.permute.xlu0 %2684
      %2686 = vrot.lane.b32.xlu0 %v2628, 2
      %v2687 = vpop.permute.xlu0 %2686
      %2688 = vrot.lane.b32.xlu0 %v2631, 2
      %v2689 = vpop.permute.xlu0 %2688
      %2690 = vrot.lane.b32.xlu0 %v2633, 2
      %v2691 = vpop.permute.xlu0 %2690
      %v2721 = vrot.slane %v2504, 2
      %v2722 = vrot.slane %v2363, 2
      %v2723 = vsel %vm1173, %v2721, %v2722
      %v2724 = vrot.slane %v2520, 2
      %v2725 = vsel %vm1173, %v2722, %v2724
      %v2726 = vrot.slane %v2505, 2
      %v2727 = vrot.slane %v2369, 2
      %v2728 = vsel %vm1173, %v2726, %v2727
      %v2729 = vrot.slane %v2521, 2
      %v2730 = vsel %vm1173, %v2727, %v2729
      %v2731 = vrot.slane %v2506, 2
      %v2732 = vrot.slane %v2375, 2
      %v2733 = vsel %vm1173, %v2731, %v2732
      %v2734 = vrot.slane %v2522, 2
      %v2735 = vsel %vm1173, %v2732, %v2734
      %v2736 = vrot.slane %v2507, 2
      %v2737 = vrot.slane %v2381, 2
      %v2738 = vsel %vm1173, %v2736, %v2737
      %v2739 = vrot.slane %v2523, 2
      %v2740 = vsel %vm1173, %v2737, %v2739
      %v2741 = vrot.slane %v2508, 2
      %v2742 = vrot.slane %v2387, 2
      %v2743 = vsel %vm1173, %v2741, %v2742
      %v2744 = vrot.slane %v2524, 2
      %v2745 = vsel %vm1173, %v2742, %v2744
      %v2746 = vrot.slane %v2509, 2
      %v2747 = vrot.slane %v2393, 2
      %v2748 = vsel %vm1173, %v2746, %v2747
      %v2749 = vrot.slane %v2525, 2
      %v2750 = vsel %vm1173, %v2747, %v2749
      %v2751 = vrot.slane %v2510, 2
      %v2752 = vrot.slane %v2399, 2
      %v2753 = vsel %vm1173, %v2751, %v2752
      %v2754 = vrot.slane %v2526, 2
      %v2755 = vsel %vm1173, %v2752, %v2754
      %v2756 = vrot.slane %v2511, 2
      %v2757 = vrot.slane %v2405, 2
      %v2758 = vsel %vm1173, %v2756, %v2757
      %v2759 = vrot.slane %v2527, 2
      %v2760 = vsel %vm1173, %v2757, %v2759
      %v2761 = vrot.slane %v2512, 2
      %v2762 = vrot.slane %v2411, 2
      %v2763 = vsel %vm1173, %v2761, %v2762
      %v2764 = vrot.slane %v2528, 2
      %v2765 = vsel %vm1173, %v2762, %v2764
      %v2766 = vrot.slane %v2513, 2
      %v2767 = vrot.slane %v2417, 2
      %v2768 = vsel %vm1173, %v2766, %v2767
      %v2769 = vrot.slane %v2529, 2
      %v2770 = vsel %vm1173, %v2767, %v2769
      %v2771 = vrot.slane %v2514, 2
      %v2772 = vrot.slane %v2423, 2
      %v2773 = vsel %vm1173, %v2771, %v2772
      %v2774 = vrot.slane %v2530, 2
      %v2775 = vsel %vm1173, %v2772, %v2774
      %v2776 = vrot.slane %v2515, 2
      %v2777 = vrot.slane %v2429, 2
      %v2778 = vsel %vm1173, %v2776, %v2777
      %v2779 = vrot.slane %v2531, 2
      %v2780 = vsel %vm1173, %v2777, %v2779
      %v2781 = vrot.slane %v2516, 2
      %v2782 = vrot.slane %v2435, 2
      %v2783 = vsel %vm1173, %v2781, %v2782
      %v2784 = vrot.slane %v2532, 2
      %v2785 = vsel %vm1173, %v2782, %v2784
      %v2786 = vrot.slane %v2517, 2
      %v2787 = vrot.slane %v2441, 2
      %v2788 = vsel %vm1173, %v2786, %v2787
      %v2789 = vrot.slane %v2533, 2
      %v2790 = vsel %vm1173, %v2787, %v2789
      %2791 = vrot.lane.b32.xlu0 %v1175, 4
      %v2792 = vpop.permute.xlu0 %2791
      %2793 = vrot.lane.b32.xlu0 %v2723, 4
      %v2794 = vpop.permute.xlu0 %2793
      %2795 = vrot.lane.b32.xlu0 %v2725, 4
      %v2796 = vpop.permute.xlu0 %2795
      %2797 = vrot.lane.b32.xlu0 %v2728, 4
      %v2798 = vpop.permute.xlu0 %2797
      %2799 = vrot.lane.b32.xlu0 %v2730, 4
      %v2800 = vpop.permute.xlu0 %2799
      %2801 = vrot.lane.b32.xlu0 %v2733, 4
      %v2802 = vpop.permute.xlu0 %2801
      %2803 = vrot.lane.b32.xlu0 %v2735, 4
      %v2804 = vpop.permute.xlu0 %2803
      %2805 = vrot.lane.b32.xlu0 %v2738, 4
      %v2806 = vpop.permute.xlu0 %2805
      %2807 = vrot.lane.b32.xlu0 %v2740, 4
      %v2808 = vpop.permute.xlu0 %2807
      %2809 = vrot.lane.b32.xlu0 %v2743, 4
      %v2810 = vpop.permute.xlu0 %2809
      %2811 = vrot.lane.b32.xlu0 %v2745, 4
      %v2812 = vpop.permute.xlu0 %2811
      %2813 = vrot.lane.b32.xlu0 %v2748, 4
      %v2814 = vpop.permute.xlu0 %2813
      %2815 = vrot.lane.b32.xlu0 %v2750, 4
      %v2816 = vpop.permute.xlu0 %2815
      %2817 = vrot.lane.b32.xlu0 %v2753, 4
      %v2818 = vpop.permute.xlu0 %2817
      %2819 = vrot.lane.b32.xlu0 %v2755, 4
      %v2820 = vpop.permute.xlu0 %2819
      %2821 = vrot.lane.b32.xlu0 %v2758, 4
      %v2822 = vpop.permute.xlu0 %2821
      %2823 = vrot.lane.b32.xlu0 %v2760, 4
      %v2824 = vpop.permute.xlu0 %2823
      %2825 = vrot.lane.b32.xlu0 %v2763, 4
      %v2826 = vpop.permute.xlu0 %2825
      %2827 = vrot.lane.b32.xlu0 %v2765, 4
      %v2828 = vpop.permute.xlu0 %2827
      %2829 = vrot.lane.b32.xlu0 %v2768, 4
      %v2830 = vpop.permute.xlu0 %2829
      %2831 = vrot.lane.b32.xlu0 %v2770, 4
      %v2832 = vpop.permute.xlu0 %2831
      %2833 = vrot.lane.b32.xlu0 %v2773, 4
      %v2834 = vpop.permute.xlu0 %2833
      %2835 = vrot.lane.b32.xlu0 %v2775, 4
      %v2836 = vpop.permute.xlu0 %2835
      %2837 = vrot.lane.b32.xlu0 %v2778, 4
      %v2838 = vpop.permute.xlu0 %2837
      %2839 = vrot.lane.b32.xlu0 %v2780, 4
      %v2840 = vpop.permute.xlu0 %2839
      %2841 = vrot.lane.b32.xlu0 %v2783, 4
      %v2842 = vpop.permute.xlu0 %2841
      %2843 = vrot.lane.b32.xlu0 %v2785, 4
      %v2844 = vpop.permute.xlu0 %2843
      %2845 = vrot.lane.b32.xlu0 %v2788, 4
      %v2846 = vpop.permute.xlu0 %2845
      %2847 = vrot.lane.b32.xlu0 %v2790, 4
      %v2848 = vpop.permute.xlu0 %2847
      %vm2878 = vcmask 1044480
      %v2879 = vrot.slane 0.0, 3
      %v2880 = vsel %vm2878, %v2879, %v2879
      %v2881 = vrot.slane %v2504, 3
      %v2882 = vrot.slane %v2363, 3
      %v2883 = vsel %vm2878, %v2881, %v2882
      %v2884 = vrot.slane %v2520, 3
      %v2885 = vsel %vm2878, %v2882, %v2884
      %v2886 = vrot.slane %v2505, 3
      %v2887 = vrot.slane %v2369, 3
      %v2888 = vsel %vm2878, %v2886, %v2887
      %v2889 = vrot.slane %v2521, 3
      %v2890 = vsel %vm2878, %v2887, %v2889
      %v2891 = vrot.slane %v2506, 3
      %v2892 = vrot.slane %v2375, 3
      %v2893 = vsel %vm2878, %v2891, %v2892
      %v2894 = vrot.slane %v2522, 3
      %v2895 = vsel %vm2878, %v2892, %v2894
      %v2896 = vrot.slane %v2507, 3
      %v2897 = vrot.slane %v2381, 3
      %v2898 = vsel %vm2878, %v2896, %v2897
      %v2899 = vrot.slane %v2523, 3
      %v2900 = vsel %vm2878, %v2897, %v2899
      %v2901 = vrot.slane %v2508, 3
      %v2902 = vrot.slane %v2387, 3
      %v2903 = vsel %vm2878, %v2901, %v2902
      %v2904 = vrot.slane %v2524, 3
      %v2905 = vsel %vm2878, %v2902, %v2904
      %v2906 = vrot.slane %v2509, 3
      %v2907 = vrot.slane %v2393, 3
      %v2908 = vsel %vm2878, %v2906, %v2907
      %v2909 = vrot.slane %v2525, 3
      %v2910 = vsel %vm2878, %v2907, %v2909
      %v2911 = vrot.slane %v2510, 3
      %v2912 = vrot.slane %v2399, 3
      %v2913 = vsel %vm2878, %v2911, %v2912
      %v2914 = vrot.slane %v2526, 3
      %v2915 = vsel %vm2878, %v2912, %v2914
      %v2916 = vrot.slane %v2511, 3
      %v2917 = vrot.slane %v2405, 3
      %v2918 = vsel %vm2878, %v2916, %v2917
      %v2919 = vrot.slane %v2527, 3
      %v2920 = vsel %vm2878, %v2917, %v2919
      %v2921 = vrot.slane %v2512, 3
      %v2922 = vrot.slane %v2411, 3
      %v2923 = vsel %vm2878, %v2921, %v2922
      %v2924 = vrot.slane %v2528, 3
      %v2925 = vsel %vm2878, %v2922, %v2924
      %v2926 = vrot.slane %v2513, 3
      %v2927 = vrot.slane %v2417, 3
      %v2928 = vsel %vm2878, %v2926, %v2927
      %v2929 = vrot.slane %v2529, 3
      %v2930 = vsel %vm2878, %v2927, %v2929
      %v2931 = vrot.slane %v2514, 3
      %v2932 = vrot.slane %v2423, 3
      %v2933 = vsel %vm2878, %v2931, %v2932
      %v2934 = vrot.slane %v2530, 3
      %v2935 = vsel %vm2878, %v2932, %v2934
      %v2936 = vrot.slane %v2515, 3
      %v2937 = vrot.slane %v2429, 3
      %v2938 = vsel %vm2878, %v2936, %v2937
      %v2939 = vrot.slane %v2531, 3
      %v2940 = vsel %vm2878, %v2937, %v2939
      %v2941 = vrot.slane %v2516, 3
      %v2942 = vrot.slane %v2435, 3
      %v2943 = vsel %vm2878, %v2941, %v2942
      %v2944 = vrot.slane %v2532, 3
      %v2945 = vsel %vm2878, %v2942, %v2944
      %v2946 = vrot.slane %v2517, 3
      %v2947 = vrot.slane %v2441, 3
      %v2948 = vsel %vm2878, %v2946, %v2947
      %v2949 = vrot.slane %v2533, 3
      %v2950 = vsel %vm2878, %v2947, %v2949
      %2951 = vrot.lane.b32.xlu0 %v2880, 6
      %v2952 = vpop.permute.xlu0 %2951
      %2953 = vrot.lane.b32.xlu0 %v2883, 6
      %v2954 = vpop.permute.xlu0 %2953
      %2955 = vrot.lane.b32.xlu0 %v2885, 6
      %v2956 = vpop.permute.xlu0 %2955
      %2957 = vrot.lane.b32.xlu0 %v2888, 6
      %v2958 = vpop.permute.xlu0 %2957
      %2959 = vrot.lane.b32.xlu0 %v2890, 6
      %v2960 = vpop.permute.xlu0 %2959
      %2961 = vrot.lane.b32.xlu0 %v2893, 6
      %v2962 = vpop.permute.xlu0 %2961
      %2963 = vrot.lane.b32.xlu0 %v2895, 6
      %v2964 = vpop.permute.xlu0 %2963
      %2965 = vrot.lane.b32.xlu0 %v2898, 6
      %v2966 = vpop.permute.xlu0 %2965
      %2967 = vrot.lane.b32.xlu0 %v2900, 6
      %v2968 = vpop.permute.xlu0 %2967
      %2969 = vrot.lane.b32.xlu0 %v2903, 6
      %v2970 = vpop.permute.xlu0 %2969
      %2971 = vrot.lane.b32.xlu0 %v2905, 6
      %v2972 = vpop.permute.xlu0 %2971
      %2973 = vrot.lane.b32.xlu0 %v2908, 6
      %v2974 = vpop.permute.xlu0 %2973
      %2975 = vrot.lane.b32.xlu0 %v2910, 6
      %v2976 = vpop.permute.xlu0 %2975
      %2977 = vrot.lane.b32.xlu0 %v2913, 6
      %v2978 = vpop.permute.xlu0 %2977
      %2979 = vrot.lane.b32.xlu0 %v2915, 6
      %v2980 = vpop.permute.xlu0 %2979
      %2981 = vrot.lane.b32.xlu0 %v2918, 6
      %v2982 = vpop.permute.xlu0 %2981
      %2983 = vrot.lane.b32.xlu0 %v2920, 6
      %v2984 = vpop.permute.xlu0 %2983
      %2985 = vrot.lane.b32.xlu0 %v2923, 6
      %v2986 = vpop.permute.xlu0 %2985
      %2987 = vrot.lane.b32.xlu0 %v2925, 6
      %v2988 = vpop.permute.xlu0 %2987
      %2989 = vrot.lane.b32.xlu0 %v2928, 6
      %v2990 = vpop.permute.xlu0 %2989
      %2991 = vrot.lane.b32.xlu0 %v2930, 6
      %v2992 = vpop.permute.xlu0 %2991
      %2993 = vrot.lane.b32.xlu0 %v2933, 6
      %v2994 = vpop.permute.xlu0 %2993
      %2995 = vrot.lane.b32.xlu0 %v2935, 6
      %v2996 = vpop.permute.xlu0 %2995
      %2997 = vrot.lane.b32.xlu0 %v2938, 6
      %v2998 = vpop.permute.xlu0 %2997
      %2999 = vrot.lane.b32.xlu0 %v2940, 6
      %v3000 = vpop.permute.xlu0 %2999
      %3001 = vrot.lane.b32.xlu0 %v2943, 6
      %v3002 = vpop.permute.xlu0 %3001
      %3003 = vrot.lane.b32.xlu0 %v2945, 6
      %v3004 = vpop.permute.xlu0 %3003
      %3005 = vrot.lane.b32.xlu0 %v2948, 6
      %v3006 = vpop.permute.xlu0 %3005
      %3007 = vrot.lane.b32.xlu0 %v2950, 6
      %v3008 = vpop.permute.xlu0 %3007
      %vm3038 = vcmask 1043456
      %v3039 = vrot.slane 0.0, 4
      %v3040 = vsel %vm3038, %v3039, %v3039
      %v3041 = vrot.slane %v2504, 4
      %v3042 = vrot.slane %v2363, 4
      %v3043 = vsel %vm3038, %v3041, %v3042
      %v3044 = vrot.slane %v2520, 4
      %v3045 = vsel %vm3038, %v3042, %v3044
      %v3046 = vrot.slane %v2505, 4
      %v3047 = vrot.slane %v2369, 4
      %v3048 = vsel %vm3038, %v3046, %v3047
      %v3049 = vrot.slane %v2521, 4
      %v3050 = vsel %vm3038, %v3047, %v3049
      %v3051 = vrot.slane %v2506, 4
      %v3052 = vrot.slane %v2375, 4
      %v3053 = vsel %vm3038, %v3051, %v3052
      %v3054 = vrot.slane %v2522, 4
      %v3055 = vsel %vm3038, %v3052, %v3054
      %v3056 = vrot.slane %v2507, 4
      %v3057 = vrot.slane %v2381, 4
      %v3058 = vsel %vm3038, %v3056, %v3057
      %v3059 = vrot.slane %v2523, 4
      %v3060 = vsel %vm3038, %v3057, %v3059
      %v3061 = vrot.slane %v2508, 4
      %v3062 = vrot.slane %v2387, 4
      %v3063 = vsel %vm3038, %v3061, %v3062
      %v3064 = vrot.slane %v2524, 4
      %v3065 = vsel %vm3038, %v3062, %v3064
      %v3066 = vrot.slane %v2509, 4
      %v3067 = vrot.slane %v2393, 4
      %v3068 = vsel %vm3038, %v3066, %v3067
      %v3069 = vrot.slane %v2525, 4
      %v3070 = vsel %vm3038, %v3067, %v3069
      %v3071 = vrot.slane %v2510, 4
      %v3072 = vrot.slane %v2399, 4
      %v3073 = vsel %vm3038, %v3071, %v3072
      %v3074 = vrot.slane %v2526, 4
      %v3075 = vsel %vm3038, %v3072, %v3074
      %v3076 = vrot.slane %v2511, 4
      %v3077 = vrot.slane %v2405, 4
      %v3078 = vsel %vm3038, %v3076, %v3077
      %v3079 = vrot.slane %v2527, 4
      %v3080 = vsel %vm3038, %v3077, %v3079
      %v3081 = vrot.slane %v2512, 4
      %v3082 = vrot.slane %v2411, 4
      %v3083 = vsel %vm3038, %v3081, %v3082
      %v3084 = vrot.slane %v2528, 4
      %v3085 = vsel %vm3038, %v3082, %v3084
      %v3086 = vrot.slane %v2513, 4
      %v3087 = vrot.slane %v2417, 4
      %v3088 = vsel %vm3038, %v3086, %v3087
      %v3089 = vrot.slane %v2529, 4
      %v3090 = vsel %vm3038, %v3087, %v3089
      %v3091 = vrot.slane %v2514, 4
      %v3092 = vrot.slane %v2423, 4
      %v3093 = vsel %vm3038, %v3091, %v3092
      %v3094 = vrot.slane %v2530, 4
      %v3095 = vsel %vm3038, %v3092, %v3094
      %v3096 = vrot.slane %v2515, 4
      %v3097 = vrot.slane %v2429, 4
      %v3098 = vsel %vm3038, %v3096, %v3097
      %v3099 = vrot.slane %v2531, 4
      %v3100 = vsel %vm3038, %v3097, %v3099
      %v3101 = vrot.slane %v2516, 4
      %v3102 = vrot.slane %v2435, 4
      %v3103 = vsel %vm3038, %v3101, %v3102
      %v3104 = vrot.slane %v2532, 4
      %v3105 = vsel %vm3038, %v3102, %v3104
      %v3106 = vrot.slane %v2517, 4
      %v3107 = vrot.slane %v2441, 4
      %v3108 = vsel %vm3038, %v3106, %v3107
      %v3109 = vrot.slane %v2533, 4
      %v3110 = vsel %vm3038, %v3107, %v3109
      %3111 = vrot.lane.b32.xlu0 %v3040, 8
      %v3112 = vpop.permute.xlu0 %3111
      %3113 = vrot.lane.b32.xlu0 %v3043, 8
      %v3114 = vpop.permute.xlu0 %3113
      %3115 = vrot.lane.b32.xlu0 %v3045, 8
      %v3116 = vpop.permute.xlu0 %3115
      %3117 = vrot.lane.b32.xlu0 %v3048, 8
      %v3118 = vpop.permute.xlu0 %3117
      %3119 = vrot.lane.b32.xlu0 %v3050, 8
      %v3120 = vpop.permute.xlu0 %3119
      %3121 = vrot.lane.b32.xlu0 %v3053, 8
      %v3122 = vpop.permute.xlu0 %3121
      %3123 = vrot.lane.b32.xlu0 %v3055, 8
      %v3124 = vpop.permute.xlu0 %3123
      %3125 = vrot.lane.b32.xlu0 %v3058, 8
      %v3126 = vpop.permute.xlu0 %3125
      %3127 = vrot.lane.b32.xlu0 %v3060, 8
      %v3128 = vpop.permute.xlu0 %3127
      %3129 = vrot.lane.b32.xlu0 %v3063, 8
      %v3130 = vpop.permute.xlu0 %3129
      %3131 = vrot.lane.b32.xlu0 %v3065, 8
      %v3132 = vpop.permute.xlu0 %3131
      %3133 = vrot.lane.b32.xlu0 %v3068, 8
      %v3134 = vpop.permute.xlu0 %3133
      %3135 = vrot.lane.b32.xlu0 %v3070, 8
      %v3136 = vpop.permute.xlu0 %3135
      %3137 = vrot.lane.b32.xlu0 %v3073, 8
      %v3138 = vpop.permute.xlu0 %3137
      %3139 = vrot.lane.b32.xlu0 %v3075, 8
      %v3140 = vpop.permute.xlu0 %3139
      %3141 = vrot.lane.b32.xlu0 %v3078, 8
      %v3142 = vpop.permute.xlu0 %3141
      %3143 = vrot.lane.b32.xlu0 %v3080, 8
      %v3144 = vpop.permute.xlu0 %3143
      %3145 = vrot.lane.b32.xlu0 %v3083, 8
      %v3146 = vpop.permute.xlu0 %3145
      %3147 = vrot.lane.b32.xlu0 %v3085, 8
      %v3148 = vpop.permute.xlu0 %3147
      %3149 = vrot.lane.b32.xlu0 %v3088, 8
      %v3150 = vpop.permute.xlu0 %3149
      %3151 = vrot.lane.b32.xlu0 %v3090, 8
      %v3152 = vpop.permute.xlu0 %3151
      %3153 = vrot.lane.b32.xlu0 %v3093, 8
      %v3154 = vpop.permute.xlu0 %3153
      %3155 = vrot.lane.b32.xlu0 %v3095, 8
      %v3156 = vpop.permute.xlu0 %3155
      %3157 = vrot.lane.b32.xlu0 %v3098, 8
      %v3158 = vpop.permute.xlu0 %3157
      %3159 = vrot.lane.b32.xlu0 %v3100, 8
      %v3160 = vpop.permute.xlu0 %3159
      %3161 = vrot.lane.b32.xlu0 %v3103, 8
      %v3162 = vpop.permute.xlu0 %3161
      %3163 = vrot.lane.b32.xlu0 %v3105, 8
      %v3164 = vpop.permute.xlu0 %3163
      %3165 = vrot.lane.b32.xlu0 %v3108, 8
      %v3166 = vpop.permute.xlu0 %3165
      %3167 = vrot.lane.b32.xlu0 %v3110, 8
      %v3168 = vpop.permute.xlu0 %3167
      %3199 = vrot.lane.b32.xlu0 0.0, 10
      %v3200 = vpop.permute.xlu0 %3199
      %3201 = vrot.lane.b32.xlu0 %v2504, 10
      %v3202 = vpop.permute.xlu0 %3201
      %3203 = vrot.lane.b32.xlu0 %v2363, 10
      %v3204 = vpop.permute.xlu0 %3203
      %3205 = vrot.lane.b32.xlu0 %v2505, 10
      %v3206 = vpop.permute.xlu0 %3205
      %3207 = vrot.lane.b32.xlu0 %v2369, 10
      %v3208 = vpop.permute.xlu0 %3207
      %3209 = vrot.lane.b32.xlu0 %v2506, 10
      %v3210 = vpop.permute.xlu0 %3209
      %3211 = vrot.lane.b32.xlu0 %v2375, 10
      %v3212 = vpop.permute.xlu0 %3211
      %3213 = vrot.lane.b32.xlu0 %v2507, 10
      %v3214 = vpop.permute.xlu0 %3213
      %3215 = vrot.lane.b32.xlu0 %v2381, 10
      %v3216 = vpop.permute.xlu0 %3215
      %3217 = vrot.lane.b32.xlu0 %v2508, 10
      %v3218 = vpop.permute.xlu0 %3217
      %3219 = vrot.lane.b32.xlu0 %v2387, 10
      %v3220 = vpop.permute.xlu0 %3219
      %3221 = vrot.lane.b32.xlu0 %v2509, 10
      %v3222 = vpop.permute.xlu0 %3221
      %3223 = vrot.lane.b32.xlu0 %v2393, 10
      %v3224 = vpop.permute.xlu0 %3223
      %3225 = vrot.lane.b32.xlu0 %v2510, 10
      %v3226 = vpop.permute.xlu0 %3225
      %3227 = vrot.lane.b32.xlu0 %v2399, 10
      %v3228 = vpop.permute.xlu0 %3227
      %3229 = vrot.lane.b32.xlu0 %v2511, 10
      %v3230 = vpop.permute.xlu0 %3229
      %3231 = vrot.lane.b32.xlu0 %v2405, 10
      %v3232 = vpop.permute.xlu0 %3231
      %3233 = vrot.lane.b32.xlu0 %v2512, 10
      %v3234 = vpop.permute.xlu0 %3233
      %3235 = vrot.lane.b32.xlu0 %v2411, 10
      %v3236 = vpop.permute.xlu0 %3235
      %3237 = vrot.lane.b32.xlu0 %v2513, 10
      %v3238 = vpop.permute.xlu0 %3237
      %3239 = vrot.lane.b32.xlu0 %v2417, 10
      %v3240 = vpop.permute.xlu0 %3239
      %3241 = vrot.lane.b32.xlu0 %v2514, 10
      %v3242 = vpop.permute.xlu0 %3241
      %3243 = vrot.lane.b32.xlu0 %v2423, 10
      %v3244 = vpop.permute.xlu0 %3243
      %3245 = vrot.lane.b32.xlu0 %v2515, 10
      %v3246 = vpop.permute.xlu0 %3245
      %3247 = vrot.lane.b32.xlu0 %v2429, 10
      %v3248 = vpop.permute.xlu0 %3247
      %3249 = vrot.lane.b32.xlu0 %v2516, 10
      %v3250 = vpop.permute.xlu0 %3249
      %3251 = vrot.lane.b32.xlu0 %v2435, 10
      %v3252 = vpop.permute.xlu0 %3251
      %3253 = vrot.lane.b32.xlu0 %v2517, 10
      %v3254 = vpop.permute.xlu0 %3253
      %3255 = vrot.lane.b32.xlu0 %v2441, 10
      %v3256 = vpop.permute.xlu0 %3255
      %3257 = vrot.lane.b32.xlu0 %v2518, 10
      %v3258 = vpop.permute.xlu0 %3257
      %3259 = vrot.lane.b32.xlu0 %v2447, 10
      %v3260 = vpop.permute.xlu0 %3259
      %v3293 = vrot.slane %v2518, 1
      %v3294 = vrot.slane %v2447, 1
      %v3295 = vsel %vm1002, %v3293, %v3294
      %v3296 = vrot.slane %v2534, 1
      %v3297 = vsel %vm1002, %v3294, %v3296
      %3298 = vrot.lane.b32.xlu0 %v1004, 12
      %v3299 = vpop.permute.xlu0 %3298
      %3300 = vrot.lane.b32.xlu0 %v2566, 12
      %v3301 = vpop.permute.xlu0 %3300
      %3302 = vrot.lane.b32.xlu0 %v2568, 12
      %v3303 = vpop.permute.xlu0 %3302
      %3304 = vrot.lane.b32.xlu0 %v2571, 12
      %v3305 = vpop.permute.xlu0 %3304
      %3306 = vrot.lane.b32.xlu0 %v2573, 12
      %v3307 = vpop.permute.xlu0 %3306
      %3308 = vrot.lane.b32.xlu0 %v2576, 12
      %v3309 = vpop.permute.xlu0 %3308
      %3310 = vrot.lane.b32.xlu0 %v2578, 12
      %v3311 = vpop.permute.xlu0 %3310
      %3312 = vrot.lane.b32.xlu0 %v2581, 12
      %v3313 = vpop.permute.xlu0 %3312
      %3314 = vrot.lane.b32.xlu0 %v2583, 12
      %v3315 = vpop.permute.xlu0 %3314
      %3316 = vrot.lane.b32.xlu0 %v2586, 12
      %v3317 = vpop.permute.xlu0 %3316
      %3318 = vrot.lane.b32.xlu0 %v2588, 12
      %v3319 = vpop.permute.xlu0 %3318
      %3320 = vrot.lane.b32.xlu0 %v2591, 12
      %v3321 = vpop.permute.xlu0 %3320
      %3322 = vrot.lane.b32.xlu0 %v2593, 12
      %v3323 = vpop.permute.xlu0 %3322
      %3324 = vrot.lane.b32.xlu0 %v2596, 12
      %v3325 = vpop.permute.xlu0 %3324
      %3326 = vrot.lane.b32.xlu0 %v2598, 12
      %v3327 = vpop.permute.xlu0 %3326
      %3328 = vrot.lane.b32.xlu0 %v2601, 12
      %v3329 = vpop.permute.xlu0 %3328
      %3330 = vrot.lane.b32.xlu0 %v2603, 12
      %v3331 = vpop.permute.xlu0 %3330
      %3332 = vrot.lane.b32.xlu0 %v2606, 12
      %v3333 = vpop.permute.xlu0 %3332
      %3334 = vrot.lane.b32.xlu0 %v2608, 12
      %v3335 = vpop.permute.xlu0 %3334
      %3336 = vrot.lane.b32.xlu0 %v2611, 12
      %v3337 = vpop.permute.xlu0 %3336
      %3338 = vrot.lane.b32.xlu0 %v2613, 12
      %v3339 = vpop.permute.xlu0 %3338
      %3340 = vrot.lane.b32.xlu0 %v2616, 12
      %v3341 = vpop.permute.xlu0 %3340
      %3342 = vrot.lane.b32.xlu0 %v2618, 12
      %v3343 = vpop.permute.xlu0 %3342
      %3344 = vrot.lane.b32.xlu0 %v2621, 12
      %v3345 = vpop.permute.xlu0 %3344
      %3346 = vrot.lane.b32.xlu0 %v2623, 12
      %v3347 = vpop.permute.xlu0 %3346
      %3348 = vrot.lane.b32.xlu0 %v2626, 12
      %v3349 = vpop.permute.xlu0 %3348
      %3350 = vrot.lane.b32.xlu0 %v2628, 12
      %v3351 = vpop.permute.xlu0 %3350
      %3352 = vrot.lane.b32.xlu0 %v2631, 12
      %v3353 = vpop.permute.xlu0 %3352
      %3354 = vrot.lane.b32.xlu0 %v2633, 12
      %v3355 = vpop.permute.xlu0 %3354
      %3356 = vrot.lane.b32.xlu0 %v3295, 12
      %v3357 = vpop.permute.xlu0 %3356
      %3358 = vrot.lane.b32.xlu0 %v3297, 12
      %v3359 = vpop.permute.xlu0 %3358
      %v3391 = vrot.slane %v2518, 2
      %v3392 = vrot.slane %v2447, 2
      %v3393 = vsel %vm1173, %v3391, %v3392
      %v3394 = vrot.slane %v2534, 2
      %v3395 = vsel %vm1173, %v3392, %v3394
      %3396 = vrot.lane.b32.xlu0 %v1175, 14
      %v3397 = vpop.permute.xlu0 %3396
      %3398 = vrot.lane.b32.xlu0 %v2723, 14
      %v3399 = vpop.permute.xlu0 %3398
      %3400 = vrot.lane.b32.xlu0 %v2725, 14
      %v3401 = vpop.permute.xlu0 %3400
      %3402 = vrot.lane.b32.xlu0 %v2728, 14
      %v3403 = vpop.permute.xlu0 %3402
      %3404 = vrot.lane.b32.xlu0 %v2730, 14
      %v3405 = vpop.permute.xlu0 %3404
      %3406 = vrot.lane.b32.xlu0 %v2733, 14
      %v3407 = vpop.permute.xlu0 %3406
      %3408 = vrot.lane.b32.xlu0 %v2735, 14
      %v3409 = vpop.permute.xlu0 %3408
      %3410 = vrot.lane.b32.xlu0 %v2738, 14
      %v3411 = vpop.permute.xlu0 %3410
      %3412 = vrot.lane.b32.xlu0 %v2740, 14
      %v3413 = vpop.permute.xlu0 %3412
      %3414 = vrot.lane.b32.xlu0 %v2743, 14
      %v3415 = vpop.permute.xlu0 %3414
      %3416 = vrot.lane.b32.xlu0 %v2745, 14
      %v3417 = vpop.permute.xlu0 %3416
      %3418 = vrot.lane.b32.xlu0 %v2748, 14
      %v3419 = vpop.permute.xlu0 %3418
      %3420 = vrot.lane.b32.xlu0 %v2750, 14
      %v3421 = vpop.permute.xlu0 %3420
      %3422 = vrot.lane.b32.xlu0 %v2753, 14
      %v3423 = vpop.permute.xlu0 %3422
      %3424 = vrot.lane.b32.xlu0 %v2755, 14
      %v3425 = vpop.permute.xlu0 %3424
      %3426 = vrot.lane.b32.xlu0 %v2758, 14
      %v3427 = vpop.permute.xlu0 %3426
      %3428 = vrot.lane.b32.xlu0 %v2760, 14
      %v3429 = vpop.permute.xlu0 %3428
      %3430 = vrot.lane.b32.xlu0 %v2763, 14
      %v3431 = vpop.permute.xlu0 %3430
      %3432 = vrot.lane.b32.xlu0 %v2765, 14
      %v3433 = vpop.permute.xlu0 %3432
      %3434 = vrot.lane.b32.xlu0 %v2768, 14
      %v3435 = vpop.permute.xlu0 %3434
      %3436 = vrot.lane.b32.xlu0 %v2770, 14
      %v3437 = vpop.permute.xlu0 %3436
      %3438 = vrot.lane.b32.xlu0 %v2773, 14
      %v3439 = vpop.permute.xlu0 %3438
      %3440 = vrot.lane.b32.xlu0 %v2775, 14
      %v3441 = vpop.permute.xlu0 %3440
      %3442 = vrot.lane.b32.xlu0 %v2778, 14
      %v3443 = vpop.permute.xlu0 %3442
      %3444 = vrot.lane.b32.xlu0 %v2780, 14
      %v3445 = vpop.permute.xlu0 %3444
      %3446 = vrot.lane.b32.xlu0 %v2783, 14
      %v3447 = vpop.permute.xlu0 %3446
      %3448 = vrot.lane.b32.xlu0 %v2785, 14
      %v3449 = vpop.permute.xlu0 %3448
      %3450 = vrot.lane.b32.xlu0 %v2788, 14
      %v3451 = vpop.permute.xlu0 %3450
      %3452 = vrot.lane.b32.xlu0 %v2790, 14
      %v3453 = vpop.permute.xlu0 %3452
      %3454 = vrot.lane.b32.xlu0 %v3393, 14
      %v3455 = vpop.permute.xlu0 %3454
      %3456 = vrot.lane.b32.xlu0 %v3395, 14
      %v3457 = vpop.permute.xlu0 %3456
      %v3489 = vrot.slane %v2518, 3
      %v3490 = vrot.slane %v2447, 3
      %v3491 = vsel %vm2878, %v3489, %v3490
      %v3492 = vrot.slane %v2534, 3
      %v3493 = vsel %vm2878, %v3490, %v3492
      %3494 = vrot.lane.b32.xlu0 %v2880, 16
      %v3495 = vpop.permute.xlu0 %3494
      %3496 = vrot.lane.b32.xlu0 %v2883, 16
      %v3497 = vpop.permute.xlu0 %3496
      %3498 = vrot.lane.b32.xlu0 %v2885, 16
      %v3499 = vpop.permute.xlu0 %3498
      %3500 = vrot.lane.b32.xlu0 %v2888, 16
      %v3501 = vpop.permute.xlu0 %3500
      %3502 = vrot.lane.b32.xlu0 %v2890, 16
      %v3503 = vpop.permute.xlu0 %3502
      %3504 = vrot.lane.b32.xlu0 %v2893, 16
      %v3505 = vpop.permute.xlu0 %3504
      %3506 = vrot.lane.b32.xlu0 %v2895, 16
      %v3507 = vpop.permute.xlu0 %3506
      %3508 = vrot.lane.b32.xlu0 %v2898, 16
      %v3509 = vpop.permute.xlu0 %3508
      %3510 = vrot.lane.b32.xlu0 %v2900, 16
      %v3511 = vpop.permute.xlu0 %3510
      %3512 = vrot.lane.b32.xlu0 %v2903, 16
      %v3513 = vpop.permute.xlu0 %3512
      %3514 = vrot.lane.b32.xlu0 %v2905, 16
      %v3515 = vpop.permute.xlu0 %3514
      %3516 = vrot.lane.b32.xlu0 %v2908, 16
      %v3517 = vpop.permute.xlu0 %3516
      %3518 = vrot.lane.b32.xlu0 %v2910, 16
      %v3519 = vpop.permute.xlu0 %3518
      %3520 = vrot.lane.b32.xlu0 %v2913, 16
      %v3521 = vpop.permute.xlu0 %3520
      %3522 = vrot.lane.b32.xlu0 %v2915, 16
      %v3523 = vpop.permute.xlu0 %3522
      %3524 = vrot.lane.b32.xlu0 %v2918, 16
      %v3525 = vpop.permute.xlu0 %3524
      %3526 = vrot.lane.b32.xlu0 %v2920, 16
      %v3527 = vpop.permute.xlu0 %3526
      %3528 = vrot.lane.b32.xlu0 %v2923, 16
      %v3529 = vpop.permute.xlu0 %3528
      %3530 = vrot.lane.b32.xlu0 %v2925, 16
      %v3531 = vpop.permute.xlu0 %3530
      %3532 = vrot.lane.b32.xlu0 %v2928, 16
      %v3533 = vpop.permute.xlu0 %3532
      %3534 = vrot.lane.b32.xlu0 %v2930, 16
      %v3535 = vpop.permute.xlu0 %3534
      %3536 = vrot.lane.b32.xlu0 %v2933, 16
      %v3537 = vpop.permute.xlu0 %3536
      %3538 = vrot.lane.b32.xlu0 %v2935, 16
      %v3539 = vpop.permute.xlu0 %3538
      %3540 = vrot.lane.b32.xlu0 %v2938, 16
      %v3541 = vpop.permute.xlu0 %3540
      %3542 = vrot.lane.b32.xlu0 %v2940, 16
      %v3543 = vpop.permute.xlu0 %3542
      %3544 = vrot.lane.b32.xlu0 %v2943, 16
      %v3545 = vpop.permute.xlu0 %3544
      %3546 = vrot.lane.b32.xlu0 %v2945, 16
      %v3547 = vpop.permute.xlu0 %3546
      %3548 = vrot.lane.b32.xlu0 %v2948, 16
      %v3549 = vpop.permute.xlu0 %3548
      %3550 = vrot.lane.b32.xlu0 %v2950, 16
      %v3551 = vpop.permute.xlu0 %3550
      %3552 = vrot.lane.b32.xlu0 %v3491, 16
      %v3553 = vpop.permute.xlu0 %3552
      %3554 = vrot.lane.b32.xlu0 %v3493, 16
      %v3555 = vpop.permute.xlu0 %3554
      %v3587 = vrot.slane %v2518, 4
      %v3588 = vrot.slane %v2447, 4
      %v3589 = vsel %vm3038, %v3587, %v3588
      %v3590 = vrot.slane %v2534, 4
      %v3591 = vsel %vm3038, %v3588, %v3590
      %3592 = vrot.lane.b32.xlu0 %v3040, 18
      %v3593 = vpop.permute.xlu0 %3592
      %3594 = vrot.lane.b32.xlu0 %v3043, 18
      %v3595 = vpop.permute.xlu0 %3594
      %3596 = vrot.lane.b32.xlu0 %v3045, 18
      %v3597 = vpop.permute.xlu0 %3596
      %3598 = vrot.lane.b32.xlu0 %v3048, 18
      %v3599 = vpop.permute.xlu0 %3598
      %3600 = vrot.lane.b32.xlu0 %v3050, 18
      %v3601 = vpop.permute.xlu0 %3600
      %3602 = vrot.lane.b32.xlu0 %v3053, 18
      %v3603 = vpop.permute.xlu0 %3602
      %3604 = vrot.lane.b32.xlu0 %v3055, 18
      %v3605 = vpop.permute.xlu0 %3604
      %3606 = vrot.lane.b32.xlu0 %v3058, 18
      %v3607 = vpop.permute.xlu0 %3606
      %3608 = vrot.lane.b32.xlu0 %v3060, 18
      %v3609 = vpop.permute.xlu0 %3608
      %3610 = vrot.lane.b32.xlu0 %v3063, 18
      %v3611 = vpop.permute.xlu0 %3610
      %3612 = vrot.lane.b32.xlu0 %v3065, 18
      %v3613 = vpop.permute.xlu0 %3612
      %3614 = vrot.lane.b32.xlu0 %v3068, 18
      %v3615 = vpop.permute.xlu0 %3614
      %3616 = vrot.lane.b32.xlu0 %v3070, 18
      %v3617 = vpop.permute.xlu0 %3616
      %3618 = vrot.lane.b32.xlu0 %v3073, 18
      %v3619 = vpop.permute.xlu0 %3618
      %3620 = vrot.lane.b32.xlu0 %v3075, 18
      %v3621 = vpop.permute.xlu0 %3620
      %3622 = vrot.lane.b32.xlu0 %v3078, 18
      %v3623 = vpop.permute.xlu0 %3622
      %3624 = vrot.lane.b32.xlu0 %v3080, 18
      %v3625 = vpop.permute.xlu0 %3624
      %3626 = vrot.lane.b32.xlu0 %v3083, 18
      %v3627 = vpop.permute.xlu0 %3626
      %3628 = vrot.lane.b32.xlu0 %v3085, 18
      %v3629 = vpop.permute.xlu0 %3628
      %3630 = vrot.lane.b32.xlu0 %v3088, 18
      %v3631 = vpop.permute.xlu0 %3630
      %3632 = vrot.lane.b32.xlu0 %v3090, 18
      %v3633 = vpop.permute.xlu0 %3632
      %3634 = vrot.lane.b32.xlu0 %v3093, 18
      %v3635 = vpop.permute.xlu0 %3634
      %3636 = vrot.lane.b32.xlu0 %v3095, 18
      %v3637 = vpop.permute.xlu0 %3636
      %3638 = vrot.lane.b32.xlu0 %v3098, 18
      %v3639 = vpop.permute.xlu0 %3638
      %3640 = vrot.lane.b32.xlu0 %v3100, 18
      %v3641 = vpop.permute.xlu0 %3640
      %3642 = vrot.lane.b32.xlu0 %v3103, 18
      %v3643 = vpop.permute.xlu0 %3642
      %3644 = vrot.lane.b32.xlu0 %v3105, 18
      %v3645 = vpop.permute.xlu0 %3644
      %3646 = vrot.lane.b32.xlu0 %v3108, 18
      %v3647 = vpop.permute.xlu0 %3646
      %3648 = vrot.lane.b32.xlu0 %v3110, 18
      %v3649 = vpop.permute.xlu0 %3648
      %3650 = vrot.lane.b32.xlu0 %v3589, 18
      %v3651 = vpop.permute.xlu0 %3650
      %3652 = vrot.lane.b32.xlu0 %v3591, 18
      %v3653 = vpop.permute.xlu0 %3652
      %3686 = vrot.lane.b32.xlu0 %v2504, 20
      %v3687 = vpop.permute.xlu0 %3686
      %3688 = vrot.lane.b32.xlu0 %v2363, 20
      %v3689 = vpop.permute.xlu0 %3688
      %3690 = vrot.lane.b32.xlu0 %v2505, 20
      %v3691 = vpop.permute.xlu0 %3690
      %3692 = vrot.lane.b32.xlu0 %v2369, 20
      %v3693 = vpop.permute.xlu0 %3692
      %3694 = vrot.lane.b32.xlu0 %v2506, 20
      %v3695 = vpop.permute.xlu0 %3694
      %3696 = vrot.lane.b32.xlu0 %v2375, 20
      %v3697 = vpop.permute.xlu0 %3696
      %3698 = vrot.lane.b32.xlu0 %v2507, 20
      %v3699 = vpop.permute.xlu0 %3698
      %3700 = vrot.lane.b32.xlu0 %v2381, 20
      %v3701 = vpop.permute.xlu0 %3700
      %3702 = vrot.lane.b32.xlu0 %v2508, 20
      %v3703 = vpop.permute.xlu0 %3702
      %3704 = vrot.lane.b32.xlu0 %v2387, 20
      %v3705 = vpop.permute.xlu0 %3704
      %3706 = vrot.lane.b32.xlu0 %v2509, 20
      %v3707 = vpop.permute.xlu0 %3706
      %3708 = vrot.lane.b32.xlu0 %v2393, 20
      %v3709 = vpop.permute.xlu0 %3708
      %3710 = vrot.lane.b32.xlu0 %v2510, 20
      %v3711 = vpop.permute.xlu0 %3710
      %3712 = vrot.lane.b32.xlu0 %v2399, 20
      %v3713 = vpop.permute.xlu0 %3712
      %3714 = vrot.lane.b32.xlu0 %v2511, 20
      %v3715 = vpop.permute.xlu0 %3714
      %3716 = vrot.lane.b32.xlu0 %v2405, 20
      %v3717 = vpop.permute.xlu0 %3716
      %3718 = vrot.lane.b32.xlu0 %v2512, 20
      %v3719 = vpop.permute.xlu0 %3718
      %3720 = vrot.lane.b32.xlu0 %v2411, 20
      %v3721 = vpop.permute.xlu0 %3720
      %3722 = vrot.lane.b32.xlu0 %v2513, 20
      %v3723 = vpop.permute.xlu0 %3722
      %3724 = vrot.lane.b32.xlu0 %v2417, 20
      %v3725 = vpop.permute.xlu0 %3724
      %3726 = vrot.lane.b32.xlu0 %v2514, 20
      %v3727 = vpop.permute.xlu0 %3726
      %3728 = vrot.lane.b32.xlu0 %v2423, 20
      %v3729 = vpop.permute.xlu0 %3728
      %3730 = vrot.lane.b32.xlu0 %v2515, 20
      %v3731 = vpop.permute.xlu0 %3730
      %3732 = vrot.lane.b32.xlu0 %v2429, 20
      %v3733 = vpop.permute.xlu0 %3732
      %3734 = vrot.lane.b32.xlu0 %v2516, 20
      %v3735 = vpop.permute.xlu0 %3734
      %3736 = vrot.lane.b32.xlu0 %v2435, 20
      %v3737 = vpop.permute.xlu0 %3736
      %3738 = vrot.lane.b32.xlu0 %v2517, 20
      %v3739 = vpop.permute.xlu0 %3738
      %3740 = vrot.lane.b32.xlu0 %v2441, 20
      %v3741 = vpop.permute.xlu0 %3740
      %3742 = vrot.lane.b32.xlu0 %v2518, 20
      %v3743 = vpop.permute.xlu0 %3742
      %3744 = vrot.lane.b32.xlu0 %v2447, 20
      %v3745 = vpop.permute.xlu0 %3744
      %3746 = vrot.lane.b32.xlu0 %v2519, 20
      %v3747 = vpop.permute.xlu0 %3746
      %3748 = vrot.lane.b32.xlu0 %v2453, 20
      %v3749 = vpop.permute.xlu0 %3748
      %v3783 = vrot.slane %v2519, 1
      %v3784 = vrot.slane %v2453, 1
      %v3785 = vsel %vm1002, %v3783, %v3784
      %v3786 = vrot.slane %v2535, 1
      %v3787 = vsel %vm1002, %v3784, %v3786
      %3788 = vrot.lane.b32.xlu0 %v2566, 22
      %v3789 = vpop.permute.xlu0 %3788
      %3790 = vrot.lane.b32.xlu0 %v2568, 22
      %v3791 = vpop.permute.xlu0 %3790
      %3792 = vrot.lane.b32.xlu0 %v2571, 22
      %v3793 = vpop.permute.xlu0 %3792
      %3794 = vrot.lane.b32.xlu0 %v2573, 22
      %v3795 = vpop.permute.xlu0 %3794
      %3796 = vrot.lane.b32.xlu0 %v2576, 22
      %v3797 = vpop.permute.xlu0 %3796
      %3798 = vrot.lane.b32.xlu0 %v2578, 22
      %v3799 = vpop.permute.xlu0 %3798
      %3800 = vrot.lane.b32.xlu0 %v2581, 22
      %v3801 = vpop.permute.xlu0 %3800
      %3802 = vrot.lane.b32.xlu0 %v2583, 22
      %v3803 = vpop.permute.xlu0 %3802
      %3804 = vrot.lane.b32.xlu0 %v2586, 22
      %v3805 = vpop.permute.xlu0 %3804
      %3806 = vrot.lane.b32.xlu0 %v2588, 22
      %v3807 = vpop.permute.xlu0 %3806
      %3808 = vrot.lane.b32.xlu0 %v2591, 22
      %v3809 = vpop.permute.xlu0 %3808
      %3810 = vrot.lane.b32.xlu0 %v2593, 22
      %v3811 = vpop.permute.xlu0 %3810
      %3812 = vrot.lane.b32.xlu0 %v2596, 22
      %v3813 = vpop.permute.xlu0 %3812
      %3814 = vrot.lane.b32.xlu0 %v2598, 22
      %v3815 = vpop.permute.xlu0 %3814
      %3816 = vrot.lane.b32.xlu0 %v2601, 22
      %v3817 = vpop.permute.xlu0 %3816
      %3818 = vrot.lane.b32.xlu0 %v2603, 22
      %v3819 = vpop.permute.xlu0 %3818
      %3820 = vrot.lane.b32.xlu0 %v2606, 22
      %v3821 = vpop.permute.xlu0 %3820
      %3822 = vrot.lane.b32.xlu0 %v2608, 22
      %v3823 = vpop.permute.xlu0 %3822
      %3824 = vrot.lane.b32.xlu0 %v2611, 22
      %v3825 = vpop.permute.xlu0 %3824
      %3826 = vrot.lane.b32.xlu0 %v2613, 22
      %v3827 = vpop.permute.xlu0 %3826
      %3828 = vrot.lane.b32.xlu0 %v2616, 22
      %v3829 = vpop.permute.xlu0 %3828
      %3830 = vrot.lane.b32.xlu0 %v2618, 22
      %v3831 = vpop.permute.xlu0 %3830
      %3832 = vrot.lane.b32.xlu0 %v2621, 22
      %v3833 = vpop.permute.xlu0 %3832
      %3834 = vrot.lane.b32.xlu0 %v2623, 22
      %v3835 = vpop.permute.xlu0 %3834
      %3836 = vrot.lane.b32.xlu0 %v2626, 22
      %v3837 = vpop.permute.xlu0 %3836
      %3838 = vrot.lane.b32.xlu0 %v2628, 22
      %v3839 = vpop.permute.xlu0 %3838
      %3840 = vrot.lane.b32.xlu0 %v2631, 22
      %v3841 = vpop.permute.xlu0 %3840
      %3842 = vrot.lane.b32.xlu0 %v2633, 22
      %v3843 = vpop.permute.xlu0 %3842
      %3844 = vrot.lane.b32.xlu0 %v3295, 22
      %v3845 = vpop.permute.xlu0 %3844
      %3846 = vrot.lane.b32.xlu0 %v3297, 22
      %v3847 = vpop.permute.xlu0 %3846
      %3848 = vrot.lane.b32.xlu0 %v3785, 22
      %v3849 = vpop.permute.xlu0 %3848
      %3850 = vrot.lane.b32.xlu0 %v3787, 22
      %v3851 = vpop.permute.xlu0 %3850
      %v3884 = vrot.slane %v2519, 2
      %v3885 = vrot.slane %v2453, 2
      %v3886 = vsel %vm1173, %v3884, %v3885
      %v3887 = vrot.slane %v2535, 2
      %v3888 = vsel %vm1173, %v3885, %v3887
      %3889 = vrot.lane.b32.xlu0 %v2723, 24
      %v3890 = vpop.permute.xlu0 %3889
      %3891 = vrot.lane.b32.xlu0 %v2725, 24
      %v3892 = vpop.permute.xlu0 %3891
      %3893 = vrot.lane.b32.xlu0 %v2728, 24
      %v3894 = vpop.permute.xlu0 %3893
      %3895 = vrot.lane.b32.xlu0 %v2730, 24
      %v3896 = vpop.permute.xlu0 %3895
      %3897 = vrot.lane.b32.xlu0 %v2733, 24
      %v3898 = vpop.permute.xlu0 %3897
      %3899 = vrot.lane.b32.xlu0 %v2735, 24
      %v3900 = vpop.permute.xlu0 %3899
      %3901 = vrot.lane.b32.xlu0 %v2738, 24
      %v3902 = vpop.permute.xlu0 %3901
      %3903 = vrot.lane.b32.xlu0 %v2740, 24
      %v3904 = vpop.permute.xlu0 %3903
      %3905 = vrot.lane.b32.xlu0 %v2743, 24
      %v3906 = vpop.permute.xlu0 %3905
      %3907 = vrot.lane.b32.xlu0 %v2745, 24
      %v3908 = vpop.permute.xlu0 %3907
      %3909 = vrot.lane.b32.xlu0 %v2748, 24
      %v3910 = vpop.permute.xlu0 %3909
      %3911 = vrot.lane.b32.xlu0 %v2750, 24
      %v3912 = vpop.permute.xlu0 %3911
      %3913 = vrot.lane.b32.xlu0 %v2753, 24
      %v3914 = vpop.permute.xlu0 %3913
      %3915 = vrot.lane.b32.xlu0 %v2755, 24
      %v3916 = vpop.permute.xlu0 %3915
      %3917 = vrot.lane.b32.xlu0 %v2758, 24
      %v3918 = vpop.permute.xlu0 %3917
      %3919 = vrot.lane.b32.xlu0 %v2760, 24
      %v3920 = vpop.permute.xlu0 %3919
      %3921 = vrot.lane.b32.xlu0 %v2763, 24
      %v3922 = vpop.permute.xlu0 %3921
      %3923 = vrot.lane.b32.xlu0 %v2765, 24
      %v3924 = vpop.permute.xlu0 %3923
      %3925 = vrot.lane.b32.xlu0 %v2768, 24
      %v3926 = vpop.permute.xlu0 %3925
      %3927 = vrot.lane.b32.xlu0 %v2770, 24
      %v3928 = vpop.permute.xlu0 %3927
      %3929 = vrot.lane.b32.xlu0 %v2773, 24
      %v3930 = vpop.permute.xlu0 %3929
      %3931 = vrot.lane.b32.xlu0 %v2775, 24
      %v3932 = vpop.permute.xlu0 %3931
      %3933 = vrot.lane.b32.xlu0 %v2778, 24
      %v3934 = vpop.permute.xlu0 %3933
      %3935 = vrot.lane.b32.xlu0 %v2780, 24
      %v3936 = vpop.permute.xlu0 %3935
      %3937 = vrot.lane.b32.xlu0 %v2783, 24
      %v3938 = vpop.permute.xlu0 %3937
      %3939 = vrot.lane.b32.xlu0 %v2785, 24
      %v3940 = vpop.permute.xlu0 %3939
      %3941 = vrot.lane.b32.xlu0 %v2788, 24
      %v3942 = vpop.permute.xlu0 %3941
      %3943 = vrot.lane.b32.xlu0 %v2790, 24
      %v3944 = vpop.permute.xlu0 %3943
      %3945 = vrot.lane.b32.xlu0 %v3393, 24
      %v3946 = vpop.permute.xlu0 %3945
      %3947 = vrot.lane.b32.xlu0 %v3395, 24
      %v3948 = vpop.permute.xlu0 %3947
      %3949 = vrot.lane.b32.xlu0 %v3886, 24
      %v3950 = vpop.permute.xlu0 %3949
      %3951 = vrot.lane.b32.xlu0 %v3888, 24
      %v3952 = vpop.permute.xlu0 %3951
      %v3985 = vrot.slane %v2519, 3
      %v3986 = vrot.slane %v2453, 3
      %v3987 = vsel %vm2878, %v3985, %v3986
      %v3988 = vrot.slane %v2535, 3
      %v3989 = vsel %vm2878, %v3986, %v3988
      %3990 = vrot.lane.b32.xlu0 %v2883, 26
      %v3991 = vpop.permute.xlu0 %3990
      %3992 = vrot.lane.b32.xlu0 %v2885, 26
      %v3993 = vpop.permute.xlu0 %3992
      %3994 = vrot.lane.b32.xlu0 %v2888, 26
      %v3995 = vpop.permute.xlu0 %3994
      %3996 = vrot.lane.b32.xlu0 %v2890, 26
      %v3997 = vpop.permute.xlu0 %3996
      %3998 = vrot.lane.b32.xlu0 %v2893, 26
      %v3999 = vpop.permute.xlu0 %3998
      %4000 = vrot.lane.b32.xlu0 %v2895, 26
      %v4001 = vpop.permute.xlu0 %4000
      %4002 = vrot.lane.b32.xlu0 %v2898, 26
      %v4003 = vpop.permute.xlu0 %4002
      %4004 = vrot.lane.b32.xlu0 %v2900, 26
      %v4005 = vpop.permute.xlu0 %4004
      %4006 = vrot.lane.b32.xlu0 %v2903, 26
      %v4007 = vpop.permute.xlu0 %4006
      %4008 = vrot.lane.b32.xlu0 %v2905, 26
      %v4009 = vpop.permute.xlu0 %4008
      %4010 = vrot.lane.b32.xlu0 %v2908, 26
      %v4011 = vpop.permute.xlu0 %4010
      %4012 = vrot.lane.b32.xlu0 %v2910, 26
      %v4013 = vpop.permute.xlu0 %4012
      %4014 = vrot.lane.b32.xlu0 %v2913, 26
      %v4015 = vpop.permute.xlu0 %4014
      %4016 = vrot.lane.b32.xlu0 %v2915, 26
      %v4017 = vpop.permute.xlu0 %4016
      %4018 = vrot.lane.b32.xlu0 %v2918, 26
      %v4019 = vpop.permute.xlu0 %4018
      %4020 = vrot.lane.b32.xlu0 %v2920, 26
      %v4021 = vpop.permute.xlu0 %4020
      %4022 = vrot.lane.b32.xlu0 %v2923, 26
      %v4023 = vpop.permute.xlu0 %4022
      %4024 = vrot.lane.b32.xlu0 %v2925, 26
      %v4025 = vpop.permute.xlu0 %4024
      %4026 = vrot.lane.b32.xlu0 %v2928, 26
      %v4027 = vpop.permute.xlu0 %4026
      %4028 = vrot.lane.b32.xlu0 %v2930, 26
      %v4029 = vpop.permute.xlu0 %4028
      %4030 = vrot.lane.b32.xlu0 %v2933, 26
      %v4031 = vpop.permute.xlu0 %4030
      %4032 = vrot.lane.b32.xlu0 %v2935, 26
      %v4033 = vpop.permute.xlu0 %4032
      %4034 = vrot.lane.b32.xlu0 %v2938, 26
      %v4035 = vpop.permute.xlu0 %4034
      %4036 = vrot.lane.b32.xlu0 %v2940, 26
      %v4037 = vpop.permute.xlu0 %4036
      %4038 = vrot.lane.b32.xlu0 %v2943, 26
      %v4039 = vpop.permute.xlu0 %4038
      %4040 = vrot.lane.b32.xlu0 %v2945, 26
      %v4041 = vpop.permute.xlu0 %4040
      %4042 = vrot.lane.b32.xlu0 %v2948, 26
      %v4043 = vpop.permute.xlu0 %4042
      %4044 = vrot.lane.b32.xlu0 %v2950, 26
      %v4045 = vpop.permute.xlu0 %4044
      %4046 = vrot.lane.b32.xlu0 %v3491, 26
      %v4047 = vpop.permute.xlu0 %4046
      %4048 = vrot.lane.b32.xlu0 %v3493, 26
      %v4049 = vpop.permute.xlu0 %4048
      %4050 = vrot.lane.b32.xlu0 %v3987, 26
      %v4051 = vpop.permute.xlu0 %4050
      %4052 = vrot.lane.b32.xlu0 %v3989, 26
      %v4053 = vpop.permute.xlu0 %4052
      %v4086 = vrot.slane %v2519, 4
      %v4087 = vrot.slane %v2453, 4
      %v4088 = vsel %vm3038, %v4086, %v4087
      %v4089 = vrot.slane %v2535, 4
      %v4090 = vsel %vm3038, %v4087, %v4089
      %4091 = vrot.lane.b32.xlu0 %v3043, 28
      %v4092 = vpop.permute.xlu0 %4091
      %4093 = vrot.lane.b32.xlu0 %v3045, 28
      %v4094 = vpop.permute.xlu0 %4093
      %4095 = vrot.lane.b32.xlu0 %v3048, 28
      %v4096 = vpop.permute.xlu0 %4095
      %4097 = vrot.lane.b32.xlu0 %v3050, 28
      %v4098 = vpop.permute.xlu0 %4097
      %4099 = vrot.lane.b32.xlu0 %v3053, 28
      %v4100 = vpop.permute.xlu0 %4099
      %4101 = vrot.lane.b32.xlu0 %v3055, 28
      %v4102 = vpop.permute.xlu0 %4101
      %4103 = vrot.lane.b32.xlu0 %v3058, 28
      %v4104 = vpop.permute.xlu0 %4103
      %4105 = vrot.lane.b32.xlu0 %v3060, 28
      %v4106 = vpop.permute.xlu0 %4105
      %4107 = vrot.lane.b32.xlu0 %v3063, 28
      %v4108 = vpop.permute.xlu0 %4107
      %4109 = vrot.lane.b32.xlu0 %v3065, 28
      %v4110 = vpop.permute.xlu0 %4109
      %4111 = vrot.lane.b32.xlu0 %v3068, 28
      %v4112 = vpop.permute.xlu0 %4111
      %4113 = vrot.lane.b32.xlu0 %v3070, 28
      %v4114 = vpop.permute.xlu0 %4113
      %4115 = vrot.lane.b32.xlu0 %v3073, 28
      %v4116 = vpop.permute.xlu0 %4115
      %4117 = vrot.lane.b32.xlu0 %v3075, 28
      %v4118 = vpop.permute.xlu0 %4117
      %4119 = vrot.lane.b32.xlu0 %v3078, 28
      %v4120 = vpop.permute.xlu0 %4119
      %4121 = vrot.lane.b32.xlu0 %v3080, 28
      %v4122 = vpop.permute.xlu0 %4121
      %4123 = vrot.lane.b32.xlu0 %v3083, 28
      %v4124 = vpop.permute.xlu0 %4123
      %4125 = vrot.lane.b32.xlu0 %v3085, 28
      %v4126 = vpop.permute.xlu0 %4125
      %4127 = vrot.lane.b32.xlu0 %v3088, 28
      %v4128 = vpop.permute.xlu0 %4127
      %4129 = vrot.lane.b32.xlu0 %v3090, 28
      %v4130 = vpop.permute.xlu0 %4129
      %4131 = vrot.lane.b32.xlu0 %v3093, 28
      %v4132 = vpop.permute.xlu0 %4131
      %4133 = vrot.lane.b32.xlu0 %v3095, 28
      %v4134 = vpop.permute.xlu0 %4133
      %4135 = vrot.lane.b32.xlu0 %v3098, 28
      %v4136 = vpop.permute.xlu0 %4135
      %4137 = vrot.lane.b32.xlu0 %v3100, 28
      %v4138 = vpop.permute.xlu0 %4137
      %4139 = vrot.lane.b32.xlu0 %v3103, 28
      %v4140 = vpop.permute.xlu0 %4139
      %4141 = vrot.lane.b32.xlu0 %v3105, 28
      %v4142 = vpop.permute.xlu0 %4141
      %4143 = vrot.lane.b32.xlu0 %v3108, 28
      %v4144 = vpop.permute.xlu0 %4143
      %4145 = vrot.lane.b32.xlu0 %v3110, 28
      %v4146 = vpop.permute.xlu0 %4145
      %4147 = vrot.lane.b32.xlu0 %v3589, 28
      %v4148 = vpop.permute.xlu0 %4147
      %4149 = vrot.lane.b32.xlu0 %v3591, 28
      %v4150 = vpop.permute.xlu0 %4149
      %4151 = vrot.lane.b32.xlu0 %v4088, 28
      %v4152 = vpop.permute.xlu0 %4151
      %4153 = vrot.lane.b32.xlu0 %v4090, 28
      %v4154 = vpop.permute.xlu0 %4153
      %4187 = vrot.lane.b32.xlu0 %v2505, 30
      %v4188 = vpop.permute.xlu0 %4187
      %4189 = vrot.lane.b32.xlu0 %v2369, 30
      %v4190 = vpop.permute.xlu0 %4189
      %4191 = vrot.lane.b32.xlu0 %v2506, 30
      %v4192 = vpop.permute.xlu0 %4191
      %4193 = vrot.lane.b32.xlu0 %v2375, 30
      %v4194 = vpop.permute.xlu0 %4193
      %4195 = vrot.lane.b32.xlu0 %v2507, 30
      %v4196 = vpop.permute.xlu0 %4195
      %4197 = vrot.lane.b32.xlu0 %v2381, 30
      %v4198 = vpop.permute.xlu0 %4197
      %4199 = vrot.lane.b32.xlu0 %v2508, 30
      %v4200 = vpop.permute.xlu0 %4199
      %4201 = vrot.lane.b32.xlu0 %v2387, 30
      %v4202 = vpop.permute.xlu0 %4201
      %4203 = vrot.lane.b32.xlu0 %v2509, 30
      %v4204 = vpop.permute.xlu0 %4203
      %4205 = vrot.lane.b32.xlu0 %v2393, 30
      %v4206 = vpop.permute.xlu0 %4205
      %4207 = vrot.lane.b32.xlu0 %v2510, 30
      %v4208 = vpop.permute.xlu0 %4207
      %4209 = vrot.lane.b32.xlu0 %v2399, 30
      %v4210 = vpop.permute.xlu0 %4209
      %4211 = vrot.lane.b32.xlu0 %v2511, 30
      %v4212 = vpop.permute.xlu0 %4211
      %4213 = vrot.lane.b32.xlu0 %v2405, 30
      %v4214 = vpop.permute.xlu0 %4213
      %4215 = vrot.lane.b32.xlu0 %v2512, 30
      %v4216 = vpop.permute.xlu0 %4215
      %4217 = vrot.lane.b32.xlu0 %v2411, 30
      %v4218 = vpop.permute.xlu0 %4217
      %4219 = vrot.lane.b32.xlu0 %v2513, 30
      %v4220 = vpop.permute.xlu0 %4219
      %4221 = vrot.lane.b32.xlu0 %v2417, 30
      %v4222 = vpop.permute.xlu0 %4221
      %4223 = vrot.lane.b32.xlu0 %v2514, 30
      %v4224 = vpop.permute.xlu0 %4223
      %4225 = vrot.lane.b32.xlu0 %v2423, 30
      %v4226 = vpop.permute.xlu0 %4225
      %4227 = vrot.lane.b32.xlu0 %v2515, 30
      %v4228 = vpop.permute.xlu0 %4227
      %4229 = vrot.lane.b32.xlu0 %v2429, 30
      %v4230 = vpop.permute.xlu0 %4229
      %4231 = vrot.lane.b32.xlu0 %v2516, 30
      %v4232 = vpop.permute.xlu0 %4231
      %4233 = vrot.lane.b32.xlu0 %v2435, 30
      %v4234 = vpop.permute.xlu0 %4233
      %4235 = vrot.lane.b32.xlu0 %v2517, 30
      %v4236 = vpop.permute.xlu0 %4235
      %4237 = vrot.lane.b32.xlu0 %v2441, 30
      %v4238 = vpop.permute.xlu0 %4237
      %4239 = vrot.lane.b32.xlu0 %v2518, 30
      %v4240 = vpop.permute.xlu0 %4239
      %4241 = vrot.lane.b32.xlu0 %v2447, 30
      %v4242 = vpop.permute.xlu0 %4241
      %4243 = vrot.lane.b32.xlu0 %v2519, 30
      %v4244 = vpop.permute.xlu0 %4243
      %4245 = vrot.lane.b32.xlu0 %v2453, 30
      %v4246 = vpop.permute.xlu0 %4245
      %4247 = vrot.lane.b32.xlu0 0.0, 30
      %v4248 = vpop.permute.xlu0 %4247
      %vm4280 = vcmask 15360
      %v4281 = vsel %vm4280, 0.0, %v2635
      %v4282 = vsel %vm4280, %v2504, %v2637
      %v4283 = vsel %vm4280, %v2363, %v2639
      %v4284 = vsel %vm4280, %v2505, %v2641
      %v4285 = vsel %vm4280, %v2369, %v2643
      %v4286 = vsel %vm4280, %v2506, %v2645
      %v4287 = vsel %vm4280, %v2375, %v2647
      %v4288 = vsel %vm4280, %v2507, %v2649
      %v4289 = vsel %vm4280, %v2381, %v2651
      %v4290 = vsel %vm4280, %v2508, %v2653
      %v4291 = vsel %vm4280, %v2387, %v2655
      %v4292 = vsel %vm4280, %v2509, %v2657
      %v4293 = vsel %vm4280, %v2393, %v2659
      %v4294 = vsel %vm4280, %v2510, %v2661
      %v4295 = vsel %vm4280, %v2399, %v2663
      %v4296 = vsel %vm4280, %v2511, %v2665
      %v4297 = vsel %vm4280, %v2405, %v2667
      %v4298 = vsel %vm4280, %v2512, %v2669
      %v4299 = vsel %vm4280, %v2411, %v2671
      %v4300 = vsel %vm4280, %v2513, %v2673
      %v4301 = vsel %vm4280, %v2417, %v2675
      %v4302 = vsel %vm4280, %v2514, %v2677
      %v4303 = vsel %vm4280, %v2423, %v2679
      %v4304 = vsel %vm4280, %v2515, %v2681
      %v4305 = vsel %vm4280, %v2429, %v2683
      %v4306 = vsel %vm4280, %v2516, %v2685
      %v4307 = vsel %vm4280, %v2435, %v2687
      %v4308 = vsel %vm4280, %v2517, %v2689
      %v4309 = vsel %vm4280, %v2441, %v2691
      %v4310 = vsel %vm507, %v4281, %v2792
      %v4311 = vsel %vm507, %v4282, %v2794
      %v4312 = vsel %vm507, %v4283, %v2796
      %v4313 = vsel %vm507, %v4284, %v2798
      %v4314 = vsel %vm507, %v4285, %v2800
      %v4315 = vsel %vm507, %v4286, %v2802
      %v4316 = vsel %vm507, %v4287, %v2804
      %v4317 = vsel %vm507, %v4288, %v2806
      %v4318 = vsel %vm507, %v4289, %v2808
      %v4319 = vsel %vm507, %v4290, %v2810
      %v4320 = vsel %vm507, %v4291, %v2812
      %v4321 = vsel %vm507, %v4292, %v2814
      %v4322 = vsel %vm507, %v4293, %v2816
      %v4323 = vsel %vm507, %v4294, %v2818
      %v4324 = vsel %vm507, %v4295, %v2820
      %v4325 = vsel %vm507, %v4296, %v2822
      %v4326 = vsel %vm507, %v4297, %v2824
      %v4327 = vsel %vm507, %v4298, %v2826
      %v4328 = vsel %vm507, %v4299, %v2828
      %v4329 = vsel %vm507, %v4300, %v2830
      %v4330 = vsel %vm507, %v4301, %v2832
      %v4331 = vsel %vm507, %v4302, %v2834
      %v4332 = vsel %vm507, %v4303, %v2836
      %v4333 = vsel %vm507, %v4304, %v2838
      %v4334 = vsel %vm507, %v4305, %v2840
      %v4335 = vsel %vm507, %v4306, %v2842
      %v4336 = vsel %vm507, %v4307, %v2844
      %v4337 = vsel %vm507, %v4308, %v2846
      %v4338 = vsel %vm507, %v4309, %v2848
      %vm4339 = vcmask 48128
      %v4340 = vsel %vm4339, %v4310, %v2952
      %v4341 = vsel %vm4339, %v4311, %v2954
      %v4342 = vsel %vm4339, %v4312, %v2956
      %v4343 = vsel %vm4339, %v4313, %v2958
      %v4344 = vsel %vm4339, %v4314, %v2960
      %v4345 = vsel %vm4339, %v4315, %v2962
      %v4346 = vsel %vm4339, %v4316, %v2964
      %v4347 = vsel %vm4339, %v4317, %v2966
      %v4348 = vsel %vm4339, %v4318, %v2968
      %v4349 = vsel %vm4339, %v4319, %v2970
      %v4350 = vsel %vm4339, %v4320, %v2972
      %v4351 = vsel %vm4339, %v4321, %v2974
      %v4352 = vsel %vm4339, %v4322, %v2976
      %v4353 = vsel %vm4339, %v4323, %v2978
      %v4354 = vsel %vm4339, %v4324, %v2980
      %v4355 = vsel %vm4339, %v4325, %v2982
      %v4356 = vsel %vm4339, %v4326, %v2984
      %v4357 = vsel %vm4339, %v4327, %v2986
      %v4358 = vsel %vm4339, %v4328, %v2988
      %v4359 = vsel %vm4339, %v4329, %v2990
      %v4360 = vsel %vm4339, %v4330, %v2992
      %v4361 = vsel %vm4339, %v4331, %v2994
      %v4362 = vsel %vm4339, %v4332, %v2996
      %v4363 = vsel %vm4339, %v4333, %v2998
      %v4364 = vsel %vm4339, %v4334, %v3000
      %v4365 = vsel %vm4339, %v4335, %v3002
      %v4366 = vsel %vm4339, %v4336, %v3004
      %v4367 = vsel %vm4339, %v4337, %v3006
      %v4368 = vsel %vm4339, %v4338, %v3008
      %v4369 = vsel %vm1954, %v4340, %v3112
      %v4370 = vsel %vm1954, %v4341, %v3114
      %v4371 = vsel %vm1954, %v4342, %v3116
      %v4372 = vsel %vm1954, %v4343, %v3118
      %v4373 = vsel %vm1954, %v4344, %v3120
      %v4374 = vsel %vm1954, %v4345, %v3122
      %v4375 = vsel %vm1954, %v4346, %v3124
      %v4376 = vsel %vm1954, %v4347, %v3126
      %v4377 = vsel %vm1954, %v4348, %v3128
      %v4378 = vsel %vm1954, %v4349, %v3130
      %v4379 = vsel %vm1954, %v4350, %v3132
      %v4380 = vsel %vm1954, %v4351, %v3134
      %v4381 = vsel %vm1954, %v4352, %v3136
      %v4382 = vsel %vm1954, %v4353, %v3138
      %v4383 = vsel %vm1954, %v4354, %v3140
      %v4384 = vsel %vm1954, %v4355, %v3142
      %v4385 = vsel %vm1954, %v4356, %v3144
      %v4386 = vsel %vm1954, %v4357, %v3146
      %v4387 = vsel %vm1954, %v4358, %v3148
      %v4388 = vsel %vm1954, %v4359, %v3150
      %v4389 = vsel %vm1954, %v4360, %v3152
      %v4390 = vsel %vm1954, %v4361, %v3154
      %v4391 = vsel %vm1954, %v4362, %v3156
      %v4392 = vsel %vm1954, %v4363, %v3158
      %v4393 = vsel %vm1954, %v4364, %v3160
      %v4394 = vsel %vm1954, %v4365, %v3162
      %v4395 = vsel %vm1954, %v4366, %v3164
      %v4396 = vsel %vm1954, %v4367, %v3166
      %v4397 = vsel %vm1954, %v4368, %v3168
      %vm4398 = vcmask 80896
      %v4399 = vsel %vm4398, %v4369, %v3200
      %v4400 = vsel %vm4398, %v4369, %v3202
      %v4401 = vsel %vm4398, %v4369, %v3204
      %v4402 = vsel %vm4398, %v4370, %v3206
      %v4403 = vsel %vm4398, %v4371, %v3208
      %v4404 = vsel %vm4398, %v4372, %v3210
      %v4405 = vsel %vm4398, %v4373, %v3212
      %v4406 = vsel %vm4398, %v4374, %v3214
      %v4407 = vsel %vm4398, %v4375, %v3216
      %v4408 = vsel %vm4398, %v4376, %v3218
      %v4409 = vsel %vm4398, %v4377, %v3220
      %v4410 = vsel %vm4398, %v4378, %v3222
      %v4411 = vsel %vm4398, %v4379, %v3224
      %v4412 = vsel %vm4398, %v4380, %v3226
      %v4413 = vsel %vm4398, %v4381, %v3228
      %v4414 = vsel %vm4398, %v4382, %v3230
      %v4415 = vsel %vm4398, %v4383, %v3232
      %v4416 = vsel %vm4398, %v4384, %v3234
      %v4417 = vsel %vm4398, %v4385, %v3236
      %v4418 = vsel %vm4398, %v4386, %v3238
      %v4419 = vsel %vm4398, %v4387, %v3240
      %v4420 = vsel %vm4398, %v4388, %v3242
      %v4421 = vsel %vm4398, %v4389, %v3244
      %v4422 = vsel %vm4398, %v4390, %v3246
      %v4423 = vsel %vm4398, %v4391, %v3248
      %v4424 = vsel %vm4398, %v4392, %v3250
      %v4425 = vsel %vm4398, %v4393, %v3252
      %v4426 = vsel %vm4398, %v4394, %v3254
      %v4427 = vsel %vm4398, %v4395, %v3256
      %v4428 = vsel %vm4398, %v4396, %v3258
      %v4429 = vsel %vm4398, %v4397, %v3260
      %v4430 = vsel %vm1986, %v4399, %v3299
      %v4431 = vsel %vm1986, %v4400, %v3301
      %v4432 = vsel %vm1986, %v4401, %v3303
      %v4433 = vsel %vm1986, %v4402, %v3305
      %v4434 = vsel %vm1986, %v4403, %v3307
      %v4435 = vsel %vm1986, %v4404, %v3309
      %v4436 = vsel %vm1986, %v4405, %v3311
      %v4437 = vsel %vm1986, %v4406, %v3313
      %v4438 = vsel %vm1986, %v4407, %v3315
      %v4439 = vsel %vm1986, %v4408, %v3317
      %v4440 = vsel %vm1986, %v4409, %v3319
      %v4441 = vsel %vm1986, %v4410, %v3321
      %v4442 = vsel %vm1986, %v4411, %v3323
      %v4443 = vsel %vm1986, %v4412, %v3325
      %v4444 = vsel %vm1986, %v4413, %v3327
      %v4445 = vsel %vm1986, %v4414, %v3329
      %v4446 = vsel %vm1986, %v4415, %v3331
      %v4447 = vsel %vm1986, %v4416, %v3333
      %v4448 = vsel %vm1986, %v4417, %v3335
      %v4449 = vsel %vm1986, %v4418, %v3337
      %v4450 = vsel %vm1986, %v4419, %v3339
      %v4451 = vsel %vm1986, %v4420, %v3341
      %v4452 = vsel %vm1986, %v4421, %v3343
      %v4453 = vsel %vm1986, %v4422, %v3345
      %v4454 = vsel %vm1986, %v4423, %v3347
      %v4455 = vsel %vm1986, %v4424, %v3349
      %v4456 = vsel %vm1986, %v4425, %v3351
      %v4457 = vsel %vm1986, %v4426, %v3353
      %v4458 = vsel %vm1986, %v4427, %v3355
      %v4459 = vsel %vm1986, %v4428, %v3357
      %v4460 = vsel %vm1986, %v4429, %v3359
      %vm4461 = vcmask 113664
      %v4462 = vsel %vm4461, %v4430, %v3397
      %v4463 = vsel %vm4461, %v4431, %v3399
      %v4464 = vsel %vm4461, %v4432, %v3401
      %v4465 = vsel %vm4461, %v4433, %v3403
      %v4466 = vsel %vm4461, %v4434, %v3405
      %v4467 = vsel %vm4461, %v4435, %v3407
      %v4468 = vsel %vm4461, %v4436, %v3409
      %v4469 = vsel %vm4461, %v4437, %v3411
      %v4470 = vsel %vm4461, %v4438, %v3413
      %v4471 = vsel %vm4461, %v4439, %v3415
      %v4472 = vsel %vm4461, %v4440, %v3417
      %v4473 = vsel %vm4461, %v4441, %v3419
      %v4474 = vsel %vm4461, %v4442, %v3421
      %v4475 = vsel %vm4461, %v4443, %v3423
      %v4476 = vsel %vm4461, %v4444, %v3425
      %v4477 = vsel %vm4461, %v4445, %v3427
      %v4478 = vsel %vm4461, %v4446, %v3429
      %v4479 = vsel %vm4461, %v4447, %v3431
      %v4480 = vsel %vm4461, %v4448, %v3433
      %v4481 = vsel %vm4461, %v4449, %v3435
      %v4482 = vsel %vm4461, %v4450, %v3437
      %v4483 = vsel %vm4461, %v4451, %v3439
      %v4484 = vsel %vm4461, %v4452, %v3441
      %v4485 = vsel %vm4461, %v4453, %v3443
      %v4486 = vsel %vm4461, %v4454, %v3445
      %v4487 = vsel %vm4461, %v4455, %v3447
      %v4488 = vsel %vm4461, %v4456, %v3449
      %v4489 = vsel %vm4461, %v4457, %v3451
      %v4490 = vsel %vm4461, %v4458, %v3453
      %v4491 = vsel %vm4461, %v4459, %v3455
      %v4492 = vsel %vm4461, %v4460, %v3457
      %v4493 = vsel %vm2019, %v4462, %v3495
      %v4494 = vsel %vm2019, %v4463, %v3497
      %v4495 = vsel %vm2019, %v4464, %v3499
      %v4496 = vsel %vm2019, %v4465, %v3501
      %v4497 = vsel %vm2019, %v4466, %v3503
      %v4498 = vsel %vm2019, %v4467, %v3505
      %v4499 = vsel %vm2019, %v4468, %v3507
      %v4500 = vsel %vm2019, %v4469, %v3509
      %v4501 = vsel %vm2019, %v4470, %v3511
      %v4502 = vsel %vm2019, %v4471, %v3513
      %v4503 = vsel %vm2019, %v4472, %v3515
      %v4504 = vsel %vm2019, %v4473, %v3517
      %v4505 = vsel %vm2019, %v4474, %v3519
      %v4506 = vsel %vm2019, %v4475, %v3521
      %v4507 = vsel %vm2019, %v4476, %v3523
      %v4508 = vsel %vm2019, %v4477, %v3525
      %v4509 = vsel %vm2019, %v4478, %v3527
      %v4510 = vsel %vm2019, %v4479, %v3529
      %v4511 = vsel %vm2019, %v4480, %v3531
      %v4512 = vsel %vm2019, %v4481, %v3533
      %v4513 = vsel %vm2019, %v4482, %v3535
      %v4514 = vsel %vm2019, %v4483, %v3537
      %v4515 = vsel %vm2019, %v4484, %v3539
      %v4516 = vsel %vm2019, %v4485, %v3541
      %v4517 = vsel %vm2019, %v4486, %v3543
      %v4518 = vsel %vm2019, %v4487, %v3545
      %v4519 = vsel %vm2019, %v4488, %v3547
      %v4520 = vsel %vm2019, %v4489, %v3549
      %v4521 = vsel %vm2019, %v4490, %v3551
      %v4522 = vsel %vm2019, %v4491, %v3553
      %v4523 = vsel %vm2019, %v4492, %v3555
      %vm4524 = vcmask 146432
      %v4525 = vsel %vm4524, %v4493, %v3593
      %v4526 = vsel %vm4524, %v4494, %v3595
      %v4527 = vsel %vm4524, %v4495, %v3597
      %v4528 = vsel %vm4524, %v4496, %v3599
      %v4529 = vsel %vm4524, %v4497, %v3601
      %v4530 = vsel %vm4524, %v4498, %v3603
      %v4531 = vsel %vm4524, %v4499, %v3605
      %v4532 = vsel %vm4524, %v4500, %v3607
      %v4533 = vsel %vm4524, %v4501, %v3609
      %v4534 = vsel %vm4524, %v4502, %v3611
      %v4535 = vsel %vm4524, %v4503, %v3613
      %v4536 = vsel %vm4524, %v4504, %v3615
      %v4537 = vsel %vm4524, %v4505, %v3617
      %v4538 = vsel %vm4524, %v4506, %v3619
      %v4539 = vsel %vm4524, %v4507, %v3621
      %v4540 = vsel %vm4524, %v4508, %v3623
      %v4541 = vsel %vm4524, %v4509, %v3625
      %v4542 = vsel %vm4524, %v4510, %v3627
      %v4543 = vsel %vm4524, %v4511, %v3629
      %v4544 = vsel %vm4524, %v4512, %v3631
      %v4545 = vsel %vm4524, %v4513, %v3633
      %v4546 = vsel %vm4524, %v4514, %v3635
      %v4547 = vsel %vm4524, %v4515, %v3637
      %v4548 = vsel %vm4524, %v4516, %v3639
      %v4549 = vsel %vm4524, %v4517, %v3641
      %v4550 = vsel %vm4524, %v4518, %v3643
      %v4551 = vsel %vm4524, %v4519, %v3645
      %v4552 = vsel %vm4524, %v4520, %v3647
      %v4553 = vsel %vm4524, %v4521, %v3649
      %v4554 = vsel %vm4524, %v4522, %v3651
      %v4555 = vsel %vm4524, %v4523, %v3653
      %v4556 = vsel %vm2052, %v4525, %v3687
      %v4557 = vsel %vm2052, %v4525, %v3689
      %v4558 = vsel %vm2052, %v4526, %v3691
      %v4559 = vsel %vm2052, %v4527, %v3693
      %v4560 = vsel %vm2052, %v4528, %v3695
      %v4561 = vsel %vm2052, %v4529, %v3697
      %v4562 = vsel %vm2052, %v4530, %v3699
      %v4563 = vsel %vm2052, %v4531, %v3701
      %v4564 = vsel %vm2052, %v4532, %v3703
      %v4565 = vsel %vm2052, %v4533, %v3705
      %v4566 = vsel %vm2052, %v4534, %v3707
      %v4567 = vsel %vm2052, %v4535, %v3709
      %v4568 = vsel %vm2052, %v4536, %v3711
      %v4569 = vsel %vm2052, %v4537, %v3713
      %v4570 = vsel %vm2052, %v4538, %v3715
      %v4571 = vsel %vm2052, %v4539, %v3717
      %v4572 = vsel %vm2052, %v4540, %v3719
      %v4573 = vsel %vm2052, %v4541, %v3721
      %v4574 = vsel %vm2052, %v4542, %v3723
      %v4575 = vsel %vm2052, %v4543, %v3725
      %v4576 = vsel %vm2052, %v4544, %v3727
      %v4577 = vsel %vm2052, %v4545, %v3729
      %v4578 = vsel %vm2052, %v4546, %v3731
      %v4579 = vsel %vm2052, %v4547, %v3733
      %v4580 = vsel %vm2052, %v4548, %v3735
      %v4581 = vsel %vm2052, %v4549, %v3737
      %v4582 = vsel %vm2052, %v4550, %v3739
      %v4583 = vsel %vm2052, %v4551, %v3741
      %v4584 = vsel %vm2052, %v4552, %v3743
      %v4585 = vsel %vm2052, %v4553, %v3745
      %v4586 = vsel %vm2052, %v4554, %v3747
      %v4587 = vsel %vm2052, %v4555, %v3749
      %vm4588 = vcmask 179200
      %v4589 = vsel %vm4588, %v4556, %v3789
      %v4590 = vsel %vm4588, %v4557, %v3791
      %v4591 = vsel %vm4588, %v4558, %v3793
      %v4592 = vsel %vm4588, %v4559, %v3795
      %v4593 = vsel %vm4588, %v4560, %v3797
      %v4594 = vsel %vm4588, %v4561, %v3799
      %v4595 = vsel %vm4588, %v4562, %v3801
      %v4596 = vsel %vm4588, %v4563, %v3803
      %v4597 = vsel %vm4588, %v4564, %v3805
      %v4598 = vsel %vm4588, %v4565, %v3807
      %v4599 = vsel %vm4588, %v4566, %v3809
      %v4600 = vsel %vm4588, %v4567, %v3811
      %v4601 = vsel %vm4588, %v4568, %v3813
      %v4602 = vsel %vm4588, %v4569, %v3815
      %v4603 = vsel %vm4588, %v4570, %v3817
      %v4604 = vsel %vm4588, %v4571, %v3819
      %v4605 = vsel %vm4588, %v4572, %v3821
      %v4606 = vsel %vm4588, %v4573, %v3823
      %v4607 = vsel %vm4588, %v4574, %v3825
      %v4608 = vsel %vm4588, %v4575, %v3827
      %v4609 = vsel %vm4588, %v4576, %v3829
      %v4610 = vsel %vm4588, %v4577, %v3831
      %v4611 = vsel %vm4588, %v4578, %v3833
      %v4612 = vsel %vm4588, %v4579, %v3835
      %v4613 = vsel %vm4588, %v4580, %v3837
      %v4614 = vsel %vm4588, %v4581, %v3839
      %v4615 = vsel %vm4588, %v4582, %v3841
      %v4616 = vsel %vm4588, %v4583, %v3843
      %v4617 = vsel %vm4588, %v4584, %v3845
      %v4618 = vsel %vm4588, %v4585, %v3847
      %v4619 = vsel %vm4588, %v4586, %v3849
      %v4620 = vsel %vm4588, %v4587, %v3851
      %v4621 = vsel %vm2085, %v4589, %v3890
      %v4622 = vsel %vm2085, %v4590, %v3892
      %v4623 = vsel %vm2085, %v4591, %v3894
      %v4624 = vsel %vm2085, %v4592, %v3896
      %v4625 = vsel %vm2085, %v4593, %v3898
      %v4626 = vsel %vm2085, %v4594, %v3900
      %v4627 = vsel %vm2085, %v4595, %v3902
      %v4628 = vsel %vm2085, %v4596, %v3904
      %v4629 = vsel %vm2085, %v4597, %v3906
      %v4630 = vsel %vm2085, %v4598, %v3908
      %v4631 = vsel %vm2085, %v4599, %v3910
      %v4632 = vsel %vm2085, %v4600, %v3912
      %v4633 = vsel %vm2085, %v4601, %v3914
      %v4634 = vsel %vm2085, %v4602, %v3916
      %v4635 = vsel %vm2085, %v4603, %v3918
      %v4636 = vsel %vm2085, %v4604, %v3920
      %v4637 = vsel %vm2085, %v4605, %v3922
      %v4638 = vsel %vm2085, %v4606, %v3924
      %v4639 = vsel %vm2085, %v4607, %v3926
      %v4640 = vsel %vm2085, %v4608, %v3928
      %v4641 = vsel %vm2085, %v4609, %v3930
      %v4642 = vsel %vm2085, %v4610, %v3932
      %v4643 = vsel %vm2085, %v4611, %v3934
      %v4644 = vsel %vm2085, %v4612, %v3936
      %v4645 = vsel %vm2085, %v4613, %v3938
      %v4646 = vsel %vm2085, %v4614, %v3940
      %v4647 = vsel %vm2085, %v4615, %v3942
      %v4648 = vsel %vm2085, %v4616, %v3944
      %v4649 = vsel %vm2085, %v4617, %v3946
      %v4650 = vsel %vm2085, %v4618, %v3948
      %v4651 = vsel %vm2085, %v4619, %v3950
      %v4652 = vsel %vm2085, %v4620, %v3952
      %vm4653 = vcmask 211968
      %v4654 = vsel %vm4653, %v4621, %v3991
      %v4655 = vsel %vm4653, %v4622, %v3993
      %v4656 = vsel %vm4653, %v4623, %v3995
      %v4657 = vsel %vm4653, %v4624, %v3997
      %v4658 = vsel %vm4653, %v4625, %v3999
      %v4659 = vsel %vm4653, %v4626, %v4001
      %v4660 = vsel %vm4653, %v4627, %v4003
      %v4661 = vsel %vm4653, %v4628, %v4005
      %v4662 = vsel %vm4653, %v4629, %v4007
      %v4663 = vsel %vm4653, %v4630, %v4009
      %v4664 = vsel %vm4653, %v4631, %v4011
      %v4665 = vsel %vm4653, %v4632, %v4013
      %v4666 = vsel %vm4653, %v4633, %v4015
      %v4667 = vsel %vm4653, %v4634, %v4017
      %v4668 = vsel %vm4653, %v4635, %v4019
      %v4669 = vsel %vm4653, %v4636, %v4021
      %v4670 = vsel %vm4653, %v4637, %v4023
      %v4671 = vsel %vm4653, %v4638, %v4025
      %v4672 = vsel %vm4653, %v4639, %v4027
      %v4673 = vsel %vm4653, %v4640, %v4029
      %v4674 = vsel %vm4653, %v4641, %v4031
      %v4675 = vsel %vm4653, %v4642, %v4033
      %v4676 = vsel %vm4653, %v4643, %v4035
      %v4677 = vsel %vm4653, %v4644, %v4037
      %v4678 = vsel %vm4653, %v4645, %v4039
      %v4679 = vsel %vm4653, %v4646, %v4041
      %v4680 = vsel %vm4653, %v4647, %v4043
      %v4681 = vsel %vm4653, %v4648, %v4045
      %v4682 = vsel %vm4653, %v4649, %v4047
      %v4683 = vsel %vm4653, %v4650, %v4049
      %v4684 = vsel %vm4653, %v4651, %v4051
      %v4685 = vsel %vm4653, %v4652, %v4053
      %v4686 = vsel %vm2118, %v4654, %v4092
      %v4687 = vsel %vm2118, %v4655, %v4094
      %v4688 = vsel %vm2118, %v4656, %v4096
      %v4689 = vsel %vm2118, %v4657, %v4098
      %v4690 = vsel %vm2118, %v4658, %v4100
      %v4691 = vsel %vm2118, %v4659, %v4102
      %v4692 = vsel %vm2118, %v4660, %v4104
      %v4693 = vsel %vm2118, %v4661, %v4106
      %v4694 = vsel %vm2118, %v4662, %v4108
      %v4695 = vsel %vm2118, %v4663, %v4110
      %v4696 = vsel %vm2118, %v4664, %v4112
      %v4697 = vsel %vm2118, %v4665, %v4114
      %v4698 = vsel %vm2118, %v4666, %v4116
      %v4699 = vsel %vm2118, %v4667, %v4118
      %v4700 = vsel %vm2118, %v4668, %v4120
      %v4701 = vsel %vm2118, %v4669, %v4122
      %v4702 = vsel %vm2118, %v4670, %v4124
      %v4703 = vsel %vm2118, %v4671, %v4126
      %v4704 = vsel %vm2118, %v4672, %v4128
      %v4705 = vsel %vm2118, %v4673, %v4130
      %v4706 = vsel %vm2118, %v4674, %v4132
      %v4707 = vsel %vm2118, %v4675, %v4134
      %v4708 = vsel %vm2118, %v4676, %v4136
      %v4709 = vsel %vm2118, %v4677, %v4138
      %v4710 = vsel %vm2118, %v4678, %v4140
      %v4711 = vsel %vm2118, %v4679, %v4142
      %v4712 = vsel %vm2118, %v4680, %v4144
      %v4713 = vsel %vm2118, %v4681, %v4146
      %v4714 = vsel %vm2118, %v4682, %v4148
      %v4715 = vsel %vm2118, %v4683, %v4150
      %v4716 = vsel %vm2118, %v4684, %v4152
      %v4717 = vsel %vm2118, %v4685, %v4154
      %vm4718 = vcmask 244736
      %v4719 = vsel %vm4718, %v4686, %v4188
      %v4720 = vsel %vm4718, %v4687, %v4190
      %v4721 = vsel %vm4718, %v4688, %v4192
      %v4722 = vsel %vm4718, %v4689, %v4194
      %v4723 = vsel %vm4718, %v4690, %v4196
      %v4724 = vsel %vm4718, %v4691, %v4198
      %v4725 = vsel %vm4718, %v4692, %v4200
      %v4726 = vsel %vm4718, %v4693, %v4202
      %v4727 = vsel %vm4718, %v4694, %v4204
      %v4728 = vsel %vm4718, %v4695, %v4206
      %v4729 = vsel %vm4718, %v4696, %v4208
      %v4730 = vsel %vm4718, %v4697, %v4210
      %v4731 = vsel %vm4718, %v4698, %v4212
      %v4732 = vsel %vm4718, %v4699, %v4214
      %v4733 = vsel %vm4718, %v4700, %v4216
      %v4734 = vsel %vm4718, %v4701, %v4218
      %v4735 = vsel %vm4718, %v4702, %v4220
      %v4736 = vsel %vm4718, %v4703, %v4222
      %v4737 = vsel %vm4718, %v4704, %v4224
      %v4738 = vsel %vm4718, %v4705, %v4226
      %v4739 = vsel %vm4718, %v4706, %v4228
      %v4740 = vsel %vm4718, %v4707, %v4230
      %v4741 = vsel %vm4718, %v4708, %v4232
      %v4742 = vsel %vm4718, %v4709, %v4234
      %v4743 = vsel %vm4718, %v4710, %v4236
      %v4744 = vsel %vm4718, %v4711, %v4238
      %v4745 = vsel %vm4718, %v4712, %v4240
      %v4746 = vsel %vm4718, %v4713, %v4242
      %v4747 = vsel %vm4718, %v4714, %v4244
      %v4748 = vsel %vm4718, %v4715, %v4246
      %v4749 = vsel %vm4718, %v4716, %v4248
      %v4750 = vsel %vm4718, %v4717, %v4248
      %4751 = vrot.lane.b32.xlu0 %v2572, 2
      %v4752 = vpop.permute.xlu0 %4751
      %4753 = vrot.lane.b32.xlu0 %v2577, 2
      %v4754 = vpop.permute.xlu0 %4753
      %4755 = vrot.lane.b32.xlu0 %v2582, 2
      %v4756 = vpop.permute.xlu0 %4755
      %4757 = vrot.lane.b32.xlu0 %v2587, 2
      %v4758 = vpop.permute.xlu0 %4757
      %4759 = vrot.lane.b32.xlu0 %v2592, 2
      %v4760 = vpop.permute.xlu0 %4759
      %4761 = vrot.lane.b32.xlu0 %v2597, 2
      %v4762 = vpop.permute.xlu0 %4761
      %4763 = vrot.lane.b32.xlu0 %v2602, 2
      %v4764 = vpop.permute.xlu0 %4763
      %4765 = vrot.lane.b32.xlu0 %v2607, 2
      %v4766 = vpop.permute.xlu0 %4765
      %4767 = vrot.lane.b32.xlu0 %v2612, 2
      %v4768 = vpop.permute.xlu0 %4767
      %4769 = vrot.lane.b32.xlu0 %v2617, 2
      %v4770 = vpop.permute.xlu0 %4769
      %4771 = vrot.lane.b32.xlu0 %v2622, 2
      %v4772 = vpop.permute.xlu0 %4771
      %4773 = vrot.lane.b32.xlu0 %v2627, 2
      %v4774 = vpop.permute.xlu0 %4773
      %4775 = vrot.lane.b32.xlu0 %v2632, 2
      %v4776 = vpop.permute.xlu0 %4775
      %4777 = vrot.lane.b32.xlu0 %v3295, 2
      %v4778 = vpop.permute.xlu0 %4777
      %4779 = vrot.lane.b32.xlu0 %v3297, 2
      %v4780 = vpop.permute.xlu0 %4779
      %4781 = vrot.lane.b32.xlu0 %v3296, 2
      %v4782 = vpop.permute.xlu0 %4781
      %4783 = vrot.lane.b32.xlu0 %v3785, 2
      %v4784 = vpop.permute.xlu0 %4783
      %4785 = vrot.lane.b32.xlu0 %v3787, 2
      %v4786 = vpop.permute.xlu0 %4785
      %4787 = vrot.lane.b32.xlu0 %v3786, 2
      %v4788 = vpop.permute.xlu0 %4787
      %4789 = vrot.lane.b32.xlu0 %v1003, 2
      %v4790 = vpop.permute.xlu0 %4789
      %4811 = vrot.lane.b32.xlu0 %v2729, 4
      %v4812 = vpop.permute.xlu0 %4811
      %4813 = vrot.lane.b32.xlu0 %v2734, 4
      %v4814 = vpop.permute.xlu0 %4813
      %4815 = vrot.lane.b32.xlu0 %v2739, 4
      %v4816 = vpop.permute.xlu0 %4815
      %4817 = vrot.lane.b32.xlu0 %v2744, 4
      %v4818 = vpop.permute.xlu0 %4817
      %4819 = vrot.lane.b32.xlu0 %v2749, 4
      %v4820 = vpop.permute.xlu0 %4819
      %4821 = vrot.lane.b32.xlu0 %v2754, 4
      %v4822 = vpop.permute.xlu0 %4821
      %4823 = vrot.lane.b32.xlu0 %v2759, 4
      %v4824 = vpop.permute.xlu0 %4823
      %4825 = vrot.lane.b32.xlu0 %v2764, 4
      %v4826 = vpop.permute.xlu0 %4825
      %4827 = vrot.lane.b32.xlu0 %v2769, 4
      %v4828 = vpop.permute.xlu0 %4827
      %4829 = vrot.lane.b32.xlu0 %v2774, 4
      %v4830 = vpop.permute.xlu0 %4829
      %4831 = vrot.lane.b32.xlu0 %v2779, 4
      %v4832 = vpop.permute.xlu0 %4831
      %4833 = vrot.lane.b32.xlu0 %v2784, 4
      %v4834 = vpop.permute.xlu0 %4833
      %4835 = vrot.lane.b32.xlu0 %v2789, 4
      %v4836 = vpop.permute.xlu0 %4835
      %4837 = vrot.lane.b32.xlu0 %v3393, 4
      %v4838 = vpop.permute.xlu0 %4837
      %4839 = vrot.lane.b32.xlu0 %v3395, 4
      %v4840 = vpop.permute.xlu0 %4839
      %4841 = vrot.lane.b32.xlu0 %v3394, 4
      %v4842 = vpop.permute.xlu0 %4841
      %4843 = vrot.lane.b32.xlu0 %v3886, 4
      %v4844 = vpop.permute.xlu0 %4843
      %4845 = vrot.lane.b32.xlu0 %v3888, 4
      %v4846 = vpop.permute.xlu0 %4845
      %4847 = vrot.lane.b32.xlu0 %v3887, 4
      %v4848 = vpop.permute.xlu0 %4847
      %4849 = vrot.lane.b32.xlu0 %v1174, 4
      %v4850 = vpop.permute.xlu0 %4849
      %4871 = vrot.lane.b32.xlu0 %v2889, 6
      %v4872 = vpop.permute.xlu0 %4871
      %4873 = vrot.lane.b32.xlu0 %v2894, 6
      %v4874 = vpop.permute.xlu0 %4873
      %4875 = vrot.lane.b32.xlu0 %v2899, 6
      %v4876 = vpop.permute.xlu0 %4875
      %4877 = vrot.lane.b32.xlu0 %v2904, 6
      %v4878 = vpop.permute.xlu0 %4877
      %4879 = vrot.lane.b32.xlu0 %v2909, 6
      %v4880 = vpop.permute.xlu0 %4879
      %4881 = vrot.lane.b32.xlu0 %v2914, 6
      %v4882 = vpop.permute.xlu0 %4881
      %4883 = vrot.lane.b32.xlu0 %v2919, 6
      %v4884 = vpop.permute.xlu0 %4883
      %4885 = vrot.lane.b32.xlu0 %v2924, 6
      %v4886 = vpop.permute.xlu0 %4885
      %4887 = vrot.lane.b32.xlu0 %v2929, 6
      %v4888 = vpop.permute.xlu0 %4887
      %4889 = vrot.lane.b32.xlu0 %v2934, 6
      %v4890 = vpop.permute.xlu0 %4889
      %4891 = vrot.lane.b32.xlu0 %v2939, 6
      %v4892 = vpop.permute.xlu0 %4891
      %4893 = vrot.lane.b32.xlu0 %v2944, 6
      %v4894 = vpop.permute.xlu0 %4893
      %4895 = vrot.lane.b32.xlu0 %v2949, 6
      %v4896 = vpop.permute.xlu0 %4895
      %4897 = vrot.lane.b32.xlu0 %v3491, 6
      %v4898 = vpop.permute.xlu0 %4897
      %4899 = vrot.lane.b32.xlu0 %v3493, 6
      %v4900 = vpop.permute.xlu0 %4899
      %4901 = vrot.lane.b32.xlu0 %v3492, 6
      %v4902 = vpop.permute.xlu0 %4901
      %4903 = vrot.lane.b32.xlu0 %v3987, 6
      %v4904 = vpop.permute.xlu0 %4903
      %4905 = vrot.lane.b32.xlu0 %v3989, 6
      %v4906 = vpop.permute.xlu0 %4905
      %4907 = vrot.lane.b32.xlu0 %v3988, 6
      %v4908 = vpop.permute.xlu0 %4907
      %4909 = vrot.lane.b32.xlu0 %v2879, 6
      %v4910 = vpop.permute.xlu0 %4909
      %v4931 = vrot.slane %v2506, 7
      %v4932 = vrot.slane %v2375, 7
      %v4933 = vsel %vm843, %v4931, %v4932
      %v4934 = vrot.slane %v2507, 7
      %v4935 = vrot.slane %v2381, 7
      %v4936 = vsel %vm843, %v4934, %v4935
      %v4937 = vrot.slane %v2508, 7
      %v4938 = vrot.slane %v2387, 7
      %v4939 = vsel %vm843, %v4937, %v4938
      %v4940 = vrot.slane %v2509, 7
      %v4941 = vrot.slane %v2393, 7
      %v4942 = vsel %vm843, %v4940, %v4941
      %v4943 = vrot.slane %v2510, 7
      %v4944 = vrot.slane %v2399, 7
      %v4945 = vsel %vm843, %v4943, %v4944
      %v4946 = vrot.slane %v2511, 7
      %v4947 = vrot.slane %v2405, 7
      %v4948 = vsel %vm843, %v4946, %v4947
      %v4949 = vrot.slane %v2512, 7
      %v4950 = vrot.slane %v2411, 7
      %v4951 = vsel %vm843, %v4949, %v4950
      %v4952 = vrot.slane %v2513, 7
      %v4953 = vrot.slane %v2417, 7
      %v4954 = vsel %vm843, %v4952, %v4953
      %v4955 = vrot.slane %v2514, 7
      %v4956 = vrot.slane %v2423, 7
      %v4957 = vsel %vm843, %v4955, %v4956
      %v4958 = vrot.slane %v2515, 7
      %v4959 = vrot.slane %v2429, 7
      %v4960 = vsel %vm843, %v4958, %v4959
      %v4961 = vrot.slane %v2516, 7
      %v4962 = vrot.slane %v2435, 7
      %v4963 = vsel %vm843, %v4961, %v4962
      %v4964 = vrot.slane %v2517, 7
      %v4965 = vrot.slane %v2441, 7
      %v4966 = vsel %vm843, %v4964, %v4965
      %v4967 = vrot.slane %v2518, 7
      %v4968 = vrot.slane %v2447, 7
      %v4969 = vsel %vm843, %v4967, %v4968
      %v4970 = vrot.slane %v2519, 7
      %v4971 = vrot.slane %v2453, 7
      %v4972 = vsel %vm843, %v4970, %v4971
      %v4973 = vrot.slane 0.0, 7
      %v4974 = vsel %vm843, %v4973, %v4973
      %4975 = vrot.lane.b32.xlu0 %v4931, 8
      %v4976 = vpop.permute.xlu0 %4975
      %4977 = vrot.lane.b32.xlu0 %v4933, 8
      %v4978 = vpop.permute.xlu0 %4977
      %4979 = vrot.lane.b32.xlu0 %v4932, 8
      %v4980 = vpop.permute.xlu0 %4979
      %4981 = vrot.lane.b32.xlu0 %v4934, 8
      %v4982 = vpop.permute.xlu0 %4981
      %4983 = vrot.lane.b32.xlu0 %v4936, 8
      %v4984 = vpop.permute.xlu0 %4983
      %4985 = vrot.lane.b32.xlu0 %v4935, 8
      %v4986 = vpop.permute.xlu0 %4985
      %4987 = vrot.lane.b32.xlu0 %v4937, 8
      %v4988 = vpop.permute.xlu0 %4987
      %4989 = vrot.lane.b32.xlu0 %v4939, 8
      %v4990 = vpop.permute.xlu0 %4989
      %4991 = vrot.lane.b32.xlu0 %v4938, 8
      %v4992 = vpop.permute.xlu0 %4991
      %4993 = vrot.lane.b32.xlu0 %v4940, 8
      %v4994 = vpop.permute.xlu0 %4993
      %4995 = vrot.lane.b32.xlu0 %v4942, 8
      %v4996 = vpop.permute.xlu0 %4995
      %4997 = vrot.lane.b32.xlu0 %v4941, 8
      %v4998 = vpop.permute.xlu0 %4997
      %4999 = vrot.lane.b32.xlu0 %v4943, 8
      %v5000 = vpop.permute.xlu0 %4999
      %5001 = vrot.lane.b32.xlu0 %v4945, 8
      %v5002 = vpop.permute.xlu0 %5001
      %5003 = vrot.lane.b32.xlu0 %v4944, 8
      %v5004 = vpop.permute.xlu0 %5003
      %5005 = vrot.lane.b32.xlu0 %v4946, 8
      %v5006 = vpop.permute.xlu0 %5005
      %5007 = vrot.lane.b32.xlu0 %v4948, 8
      %v5008 = vpop.permute.xlu0 %5007
      %5009 = vrot.lane.b32.xlu0 %v4947, 8
      %v5010 = vpop.permute.xlu0 %5009
      %5011 = vrot.lane.b32.xlu0 %v4949, 8
      %v5012 = vpop.permute.xlu0 %5011
      %5013 = vrot.lane.b32.xlu0 %v4951, 8
      %v5014 = vpop.permute.xlu0 %5013
      %5015 = vrot.lane.b32.xlu0 %v4950, 8
      %v5016 = vpop.permute.xlu0 %5015
      %5017 = vrot.lane.b32.xlu0 %v4952, 8
      %v5018 = vpop.permute.xlu0 %5017
      %5019 = vrot.lane.b32.xlu0 %v4954, 8
      %v5020 = vpop.permute.xlu0 %5019
      %5021 = vrot.lane.b32.xlu0 %v4953, 8
      %v5022 = vpop.permute.xlu0 %5021
      %5023 = vrot.lane.b32.xlu0 %v4955, 8
      %v5024 = vpop.permute.xlu0 %5023
      %5025 = vrot.lane.b32.xlu0 %v4957, 8
      %v5026 = vpop.permute.xlu0 %5025
      %5027 = vrot.lane.b32.xlu0 %v4956, 8
      %v5028 = vpop.permute.xlu0 %5027
      %5029 = vrot.lane.b32.xlu0 %v4958, 8
      %v5030 = vpop.permute.xlu0 %5029
      %5031 = vrot.lane.b32.xlu0 %v4960, 8
      %v5032 = vpop.permute.xlu0 %5031
      %5033 = vrot.lane.b32.xlu0 %v4959, 8
      %v5034 = vpop.permute.xlu0 %5033
      %5035 = vrot.lane.b32.xlu0 %v4961, 8
      %v5036 = vpop.permute.xlu0 %5035
      %5037 = vrot.lane.b32.xlu0 %v4963, 8
      %v5038 = vpop.permute.xlu0 %5037
      %5039 = vrot.lane.b32.xlu0 %v4962, 8
      %v5040 = vpop.permute.xlu0 %5039
      %5041 = vrot.lane.b32.xlu0 %v4964, 8
      %v5042 = vpop.permute.xlu0 %5041
      %5043 = vrot.lane.b32.xlu0 %v4966, 8
      %v5044 = vpop.permute.xlu0 %5043
      %5045 = vrot.lane.b32.xlu0 %v4965, 8
      %v5046 = vpop.permute.xlu0 %5045
      %5047 = vrot.lane.b32.xlu0 %v4967, 8
      %v5048 = vpop.permute.xlu0 %5047
      %5049 = vrot.lane.b32.xlu0 %v4969, 8
      %v5050 = vpop.permute.xlu0 %5049
      %5051 = vrot.lane.b32.xlu0 %v4968, 8
      %v5052 = vpop.permute.xlu0 %5051
      %5053 = vrot.lane.b32.xlu0 %v4970, 8
      %v5054 = vpop.permute.xlu0 %5053
      %5055 = vrot.lane.b32.xlu0 %v4972, 8
      %v5056 = vpop.permute.xlu0 %5055
      %5057 = vrot.lane.b32.xlu0 %v4971, 8
      %v5058 = vpop.permute.xlu0 %5057
      %5059 = vrot.lane.b32.xlu0 %v4973, 8
      %v5060 = vpop.permute.xlu0 %5059
      %5061 = vrot.lane.b32.xlu0 %v4974, 8
      %v5062 = vpop.permute.xlu0 %5061
      %5107 = vrot.lane.b32.xlu0 %v2522, 10
      %v5108 = vpop.permute.xlu0 %5107
      %5109 = vrot.lane.b32.xlu0 %v2523, 10
      %v5110 = vpop.permute.xlu0 %5109
      %5111 = vrot.lane.b32.xlu0 %v2524, 10
      %v5112 = vpop.permute.xlu0 %5111
      %5113 = vrot.lane.b32.xlu0 %v2525, 10
      %v5114 = vpop.permute.xlu0 %5113
      %5115 = vrot.lane.b32.xlu0 %v2526, 10
      %v5116 = vpop.permute.xlu0 %5115
      %5117 = vrot.lane.b32.xlu0 %v2527, 10
      %v5118 = vpop.permute.xlu0 %5117
      %5119 = vrot.lane.b32.xlu0 %v2528, 10
      %v5120 = vpop.permute.xlu0 %5119
      %5121 = vrot.lane.b32.xlu0 %v2529, 10
      %v5122 = vpop.permute.xlu0 %5121
      %5123 = vrot.lane.b32.xlu0 %v2530, 10
      %v5124 = vpop.permute.xlu0 %5123
      %5125 = vrot.lane.b32.xlu0 %v2531, 10
      %v5126 = vpop.permute.xlu0 %5125
      %5127 = vrot.lane.b32.xlu0 %v2532, 10
      %v5128 = vpop.permute.xlu0 %5127
      %5129 = vrot.lane.b32.xlu0 %v2533, 10
      %v5130 = vpop.permute.xlu0 %5129
      %5131 = vrot.lane.b32.xlu0 %v2534, 10
      %v5132 = vpop.permute.xlu0 %5131
      %5133 = vrot.lane.b32.xlu0 %v2519, 10
      %v5134 = vpop.permute.xlu0 %5133
      %5135 = vrot.lane.b32.xlu0 %v2453, 10
      %v5136 = vpop.permute.xlu0 %5135
      %5137 = vrot.lane.b32.xlu0 %v2535, 10
      %v5138 = vpop.permute.xlu0 %5137
      %5155 = vrot.lane.b32.xlu0 %v2577, 12
      %v5156 = vpop.permute.xlu0 %5155
      %5157 = vrot.lane.b32.xlu0 %v2582, 12
      %v5158 = vpop.permute.xlu0 %5157
      %5159 = vrot.lane.b32.xlu0 %v2587, 12
      %v5160 = vpop.permute.xlu0 %5159
      %5161 = vrot.lane.b32.xlu0 %v2592, 12
      %v5162 = vpop.permute.xlu0 %5161
      %5163 = vrot.lane.b32.xlu0 %v2597, 12
      %v5164 = vpop.permute.xlu0 %5163
      %5165 = vrot.lane.b32.xlu0 %v2602, 12
      %v5166 = vpop.permute.xlu0 %5165
      %5167 = vrot.lane.b32.xlu0 %v2607, 12
      %v5168 = vpop.permute.xlu0 %5167
      %5169 = vrot.lane.b32.xlu0 %v2612, 12
      %v5170 = vpop.permute.xlu0 %5169
      %5171 = vrot.lane.b32.xlu0 %v2617, 12
      %v5172 = vpop.permute.xlu0 %5171
      %5173 = vrot.lane.b32.xlu0 %v2622, 12
      %v5174 = vpop.permute.xlu0 %5173
      %5175 = vrot.lane.b32.xlu0 %v2627, 12
      %v5176 = vpop.permute.xlu0 %5175
      %5177 = vrot.lane.b32.xlu0 %v2632, 12
      %v5178 = vpop.permute.xlu0 %5177
      %5179 = vrot.lane.b32.xlu0 %v3296, 12
      %v5180 = vpop.permute.xlu0 %5179
      %5181 = vrot.lane.b32.xlu0 %v3785, 12
      %v5182 = vpop.permute.xlu0 %5181
      %5183 = vrot.lane.b32.xlu0 %v3787, 12
      %v5184 = vpop.permute.xlu0 %5183
      %5185 = vrot.lane.b32.xlu0 %v3786, 12
      %v5186 = vpop.permute.xlu0 %5185
      %5187 = vrot.lane.b32.xlu0 %v1003, 12
      %v5188 = vpop.permute.xlu0 %5187
      %5206 = vrot.lane.b32.xlu0 %v2734, 14
      %v5207 = vpop.permute.xlu0 %5206
      %5208 = vrot.lane.b32.xlu0 %v2739, 14
      %v5209 = vpop.permute.xlu0 %5208
      %5210 = vrot.lane.b32.xlu0 %v2744, 14
      %v5211 = vpop.permute.xlu0 %5210
      %5212 = vrot.lane.b32.xlu0 %v2749, 14
      %v5213 = vpop.permute.xlu0 %5212
      %5214 = vrot.lane.b32.xlu0 %v2754, 14
      %v5215 = vpop.permute.xlu0 %5214
      %5216 = vrot.lane.b32.xlu0 %v2759, 14
      %v5217 = vpop.permute.xlu0 %5216
      %5218 = vrot.lane.b32.xlu0 %v2764, 14
      %v5219 = vpop.permute.xlu0 %5218
      %5220 = vrot.lane.b32.xlu0 %v2769, 14
      %v5221 = vpop.permute.xlu0 %5220
      %5222 = vrot.lane.b32.xlu0 %v2774, 14
      %v5223 = vpop.permute.xlu0 %5222
      %5224 = vrot.lane.b32.xlu0 %v2779, 14
      %v5225 = vpop.permute.xlu0 %5224
      %5226 = vrot.lane.b32.xlu0 %v2784, 14
      %v5227 = vpop.permute.xlu0 %5226
      %5228 = vrot.lane.b32.xlu0 %v2789, 14
      %v5229 = vpop.permute.xlu0 %5228
      %5230 = vrot.lane.b32.xlu0 %v3394, 14
      %v5231 = vpop.permute.xlu0 %5230
      %5232 = vrot.lane.b32.xlu0 %v3886, 14
      %v5233 = vpop.permute.xlu0 %5232
      %5234 = vrot.lane.b32.xlu0 %v3888, 14
      %v5235 = vpop.permute.xlu0 %5234
      %5236 = vrot.lane.b32.xlu0 %v3887, 14
      %v5237 = vpop.permute.xlu0 %5236
      %5238 = vrot.lane.b32.xlu0 %v1174, 14
      %v5239 = vpop.permute.xlu0 %5238
      %5257 = vrot.lane.b32.xlu0 %v2894, 16
      %v5258 = vpop.permute.xlu0 %5257
      %5259 = vrot.lane.b32.xlu0 %v2899, 16
      %v5260 = vpop.permute.xlu0 %5259
      %5261 = vrot.lane.b32.xlu0 %v2904, 16
      %v5262 = vpop.permute.xlu0 %5261
      %5263 = vrot.lane.b32.xlu0 %v2909, 16
      %v5264 = vpop.permute.xlu0 %5263
      %5265 = vrot.lane.b32.xlu0 %v2914, 16
      %v5266 = vpop.permute.xlu0 %5265
      %5267 = vrot.lane.b32.xlu0 %v2919, 16
      %v5268 = vpop.permute.xlu0 %5267
      %5269 = vrot.lane.b32.xlu0 %v2924, 16
      %v5270 = vpop.permute.xlu0 %5269
      %5271 = vrot.lane.b32.xlu0 %v2929, 16
      %v5272 = vpop.permute.xlu0 %5271
      %5273 = vrot.lane.b32.xlu0 %v2934, 16
      %v5274 = vpop.permute.xlu0 %5273
      %5275 = vrot.lane.b32.xlu0 %v2939, 16
      %v5276 = vpop.permute.xlu0 %5275
      %5277 = vrot.lane.b32.xlu0 %v2944, 16
      %v5278 = vpop.permute.xlu0 %5277
      %5279 = vrot.lane.b32.xlu0 %v2949, 16
      %v5280 = vpop.permute.xlu0 %5279
      %5281 = vrot.lane.b32.xlu0 %v3492, 16
      %v5282 = vpop.permute.xlu0 %5281
      %5283 = vrot.lane.b32.xlu0 %v3987, 16
      %v5284 = vpop.permute.xlu0 %5283
      %5285 = vrot.lane.b32.xlu0 %v3989, 16
      %v5286 = vpop.permute.xlu0 %5285
      %5287 = vrot.lane.b32.xlu0 %v3988, 16
      %v5288 = vpop.permute.xlu0 %5287
      %5289 = vrot.lane.b32.xlu0 %v2879, 16
      %v5290 = vpop.permute.xlu0 %5289
      %v5308 = vsel %vm4280, %v2521, %v4752
      %v5309 = vsel %vm4280, %v2522, %v4754
      %v5310 = vsel %vm4280, %v2523, %v4756
      %v5311 = vsel %vm4280, %v2524, %v4758
      %v5312 = vsel %vm4280, %v2525, %v4760
      %v5313 = vsel %vm4280, %v2526, %v4762
      %v5314 = vsel %vm4280, %v2527, %v4764
      %v5315 = vsel %vm4280, %v2528, %v4766
      %v5316 = vsel %vm4280, %v2529, %v4768
      %v5317 = vsel %vm4280, %v2530, %v4770
      %v5318 = vsel %vm4280, %v2531, %v4772
      %v5319 = vsel %vm4280, %v2532, %v4774
      %v5320 = vsel %vm4280, %v2533, %v4776
      %v5321 = vsel %vm4280, %v2518, %v4778
      %v5322 = vsel %vm4280, %v2447, %v4780
      %v5323 = vsel %vm4280, %v2534, %v4782
      %v5324 = vsel %vm4280, %v2519, %v4784
      %v5325 = vsel %vm4280, %v2453, %v4786
      %v5326 = vsel %vm4280, %v2535, %v4788
      %v5327 = vsel %vm4280, 0.0, %v4790
      %v5328 = vsel %vm507, %v5308, %v4812
      %v5329 = vsel %vm507, %v5309, %v4814
      %v5330 = vsel %vm507, %v5310, %v4816
      %v5331 = vsel %vm507, %v5311, %v4818
      %v5332 = vsel %vm507, %v5312, %v4820
      %v5333 = vsel %vm507, %v5313, %v4822
      %v5334 = vsel %vm507, %v5314, %v4824
      %v5335 = vsel %vm507, %v5315, %v4826
      %v5336 = vsel %vm507, %v5316, %v4828
      %v5337 = vsel %vm507, %v5317, %v4830
      %v5338 = vsel %vm507, %v5318, %v4832
      %v5339 = vsel %vm507, %v5319, %v4834
      %v5340 = vsel %vm507, %v5320, %v4836
      %v5341 = vsel %vm507, %v5321, %v4838
      %v5342 = vsel %vm507, %v5322, %v4840
      %v5343 = vsel %vm507, %v5323, %v4842
      %v5344 = vsel %vm507, %v5324, %v4844
      %v5345 = vsel %vm507, %v5325, %v4846
      %v5346 = vsel %vm507, %v5326, %v4848
      %v5347 = vsel %vm507, %v5327, %v4850
      %v5348 = vsel %vm4339, %v5328, %v4872
      %v5349 = vsel %vm4339, %v5329, %v4874
      %v5350 = vsel %vm4339, %v5330, %v4876
      %v5351 = vsel %vm4339, %v5331, %v4878
      %v5352 = vsel %vm4339, %v5332, %v4880
      %v5353 = vsel %vm4339, %v5333, %v4882
      %v5354 = vsel %vm4339, %v5334, %v4884
      %v5355 = vsel %vm4339, %v5335, %v4886
      %v5356 = vsel %vm4339, %v5336, %v4888
      %v5357 = vsel %vm4339, %v5337, %v4890
      %v5358 = vsel %vm4339, %v5338, %v4892
      %v5359 = vsel %vm4339, %v5339, %v4894
      %v5360 = vsel %vm4339, %v5340, %v4896
      %v5361 = vsel %vm4339, %v5341, %v4898
      %v5362 = vsel %vm4339, %v5342, %v4900
      %v5363 = vsel %vm4339, %v5343, %v4902
      %v5364 = vsel %vm4339, %v5344, %v4904
      %v5365 = vsel %vm4339, %v5345, %v4906
      %v5366 = vsel %vm4339, %v5346, %v4908
      %v5367 = vsel %vm4339, %v5347, %v4910
      %v5368 = vsel %vm1954, %v4343, %v4976
      %v5369 = vsel %vm1954, %v4344, %v4978
      %v5370 = vsel %vm1954, %v5348, %v4980
      %v5371 = vsel %vm1954, %v4345, %v4982
      %v5372 = vsel %vm1954, %v4346, %v4984
      %v5373 = vsel %vm1954, %v5349, %v4986
      %v5374 = vsel %vm1954, %v4347, %v4988
      %v5375 = vsel %vm1954, %v4348, %v4990
      %v5376 = vsel %vm1954, %v5350, %v4992
      %v5377 = vsel %vm1954, %v4349, %v4994
      %v5378 = vsel %vm1954, %v4350, %v4996
      %v5379 = vsel %vm1954, %v5351, %v4998
      %v5380 = vsel %vm1954, %v4351, %v5000
      %v5381 = vsel %vm1954, %v4352, %v5002
      %v5382 = vsel %vm1954, %v5352, %v5004
      %v5383 = vsel %vm1954, %v4353, %v5006
      %v5384 = vsel %vm1954, %v4354, %v5008
      %v5385 = vsel %vm1954, %v5353, %v5010
      %v5386 = vsel %vm1954, %v4355, %v5012
      %v5387 = vsel %vm1954, %v4356, %v5014
      %v5388 = vsel %vm1954, %v5354, %v5016
      %v5389 = vsel %vm1954, %v4357, %v5018
      %v5390 = vsel %vm1954, %v4358, %v5020
      %v5391 = vsel %vm1954, %v5355, %v5022
      %v5392 = vsel %vm1954, %v4359, %v5024
      %v5393 = vsel %vm1954, %v4360, %v5026
      %v5394 = vsel %vm1954, %v5356, %v5028
      %v5395 = vsel %vm1954, %v4361, %v5030
      %v5396 = vsel %vm1954, %v4362, %v5032
      %v5397 = vsel %vm1954, %v5357, %v5034
      %v5398 = vsel %vm1954, %v4363, %v5036
      %v5399 = vsel %vm1954, %v4364, %v5038
      %v5400 = vsel %vm1954, %v5358, %v5040
      %v5401 = vsel %vm1954, %v4365, %v5042
      %v5402 = vsel %vm1954, %v4366, %v5044
      %v5403 = vsel %vm1954, %v5359, %v5046
      %v5404 = vsel %vm1954, %v4367, %v5048
      %v5405 = vsel %vm1954, %v4368, %v5050
      %v5406 = vsel %vm1954, %v5360, %v5052
      %v5407 = vsel %vm1954, %v5361, %v5054
      %v5408 = vsel %vm1954, %v5362, %v5056
      %v5409 = vsel %vm1954, %v5363, %v5058
      %v5410 = vsel %vm1954, %v5364, %v5060
      %v5411 = vsel %vm1954, %v5365, %v5062
      %v5412 = vsel %vm1954, %v5366, %v5060
      %v5413 = vsel %vm1954, %v4340, %v5060
      %v5414 = vsel %vm1954, %v4340, %v5062
      %v5415 = vsel %vm1954, %v5367, %v5060
      %v5416 = vsel %vm4398, %v5368, %v3210
      %v5417 = vsel %vm4398, %v5369, %v3212
      %v5418 = vsel %vm4398, %v5370, %v5108
      %v5419 = vsel %vm4398, %v5371, %v3214
      %v5420 = vsel %vm4398, %v5372, %v3216
      %v5421 = vsel %vm4398, %v5373, %v5110
      %v5422 = vsel %vm4398, %v5374, %v3218
      %v5423 = vsel %vm4398, %v5375, %v3220
      %v5424 = vsel %vm4398, %v5376, %v5112
      %v5425 = vsel %vm4398, %v5377, %v3222
      %v5426 = vsel %vm4398, %v5378, %v3224
      %v5427 = vsel %vm4398, %v5379, %v5114
      %v5428 = vsel %vm4398, %v5380, %v3226
      %v5429 = vsel %vm4398, %v5381, %v3228
      %v5430 = vsel %vm4398, %v5382, %v5116
      %v5431 = vsel %vm4398, %v5383, %v3230
      %v5432 = vsel %vm4398, %v5384, %v3232
      %v5433 = vsel %vm4398, %v5385, %v5118
      %v5434 = vsel %vm4398, %v5386, %v3234
      %v5435 = vsel %vm4398, %v5387, %v3236
      %v5436 = vsel %vm4398, %v5388, %v5120
      %v5437 = vsel %vm4398, %v5389, %v3238
      %v5438 = vsel %vm4398, %v5390, %v3240
      %v5439 = vsel %vm4398, %v5391, %v5122
      %v5440 = vsel %vm4398, %v5392, %v3242
      %v5441 = vsel %vm4398, %v5393, %v3244
      %v5442 = vsel %vm4398, %v5394, %v5124
      %v5443 = vsel %vm4398, %v5395, %v3246
      %v5444 = vsel %vm4398, %v5396, %v3248
      %v5445 = vsel %vm4398, %v5397, %v5126
      %v5446 = vsel %vm4398, %v5398, %v3250
      %v5447 = vsel %vm4398, %v5399, %v3252
      %v5448 = vsel %vm4398, %v5400, %v5128
      %v5449 = vsel %vm4398, %v5401, %v3254
      %v5450 = vsel %vm4398, %v5402, %v3256
      %v5451 = vsel %vm4398, %v5403, %v5130
      %v5452 = vsel %vm4398, %v5404, %v3258
      %v5453 = vsel %vm4398, %v5405, %v3260
      %v5454 = vsel %vm4398, %v5406, %v5132
      %v5455 = vsel %vm4398, %v5407, %v5134
      %v5456 = vsel %vm4398, %v5408, %v5136
      %v5457 = vsel %vm4398, %v5409, %v5138
      %v5458 = vsel %vm4398, %v5410, %v3200
      %v5459 = vsel %vm4398, %v5411, %v3200
      %v5460 = vsel %vm4398, %v5412, %v3200
      %v5461 = vsel %vm4398, %v5413, %v3200
      %v5462 = vsel %vm4398, %v5414, %v3200
      %v5463 = vsel %vm4398, %v5415, %v3200
      %v5464 = vsel %vm1986, %v5416, %v3309
      %v5465 = vsel %vm1986, %v5417, %v3311
      %v5466 = vsel %vm1986, %v5418, %v5156
      %v5467 = vsel %vm1986, %v5419, %v3313
      %v5468 = vsel %vm1986, %v5420, %v3315
      %v5469 = vsel %vm1986, %v5421, %v5158
      %v5470 = vsel %vm1986, %v5422, %v3317
      %v5471 = vsel %vm1986, %v5423, %v3319
      %v5472 = vsel %vm1986, %v5424, %v5160
      %v5473 = vsel %vm1986, %v5425, %v3321
      %v5474 = vsel %vm1986, %v5426, %v3323
      %v5475 = vsel %vm1986, %v5427, %v5162
      %v5476 = vsel %vm1986, %v5428, %v3325
      %v5477 = vsel %vm1986, %v5429, %v3327
      %v5478 = vsel %vm1986, %v5430, %v5164
      %v5479 = vsel %vm1986, %v5431, %v3329
      %v5480 = vsel %vm1986, %v5432, %v3331
      %v5481 = vsel %vm1986, %v5433, %v5166
      %v5482 = vsel %vm1986, %v5434, %v3333
      %v5483 = vsel %vm1986, %v5435, %v3335
      %v5484 = vsel %vm1986, %v5436, %v5168
      %v5485 = vsel %vm1986, %v5437, %v3337
      %v5486 = vsel %vm1986, %v5438, %v3339
      %v5487 = vsel %vm1986, %v5439, %v5170
      %v5488 = vsel %vm1986, %v5440, %v3341
      %v5489 = vsel %vm1986, %v5441, %v3343
      %v5490 = vsel %vm1986, %v5442, %v5172
      %v5491 = vsel %vm1986, %v5443, %v3345
      %v5492 = vsel %vm1986, %v5444, %v3347
      %v5493 = vsel %vm1986, %v5445, %v5174
      %v5494 = vsel %vm1986, %v5446, %v3349
      %v5495 = vsel %vm1986, %v5447, %v3351
      %v5496 = vsel %vm1986, %v5448, %v5176
      %v5497 = vsel %vm1986, %v5449, %v3353
      %v5498 = vsel %vm1986, %v5450, %v3355
      %v5499 = vsel %vm1986, %v5451, %v5178
      %v5500 = vsel %vm1986, %v5452, %v3357
      %v5501 = vsel %vm1986, %v5453, %v3359
      %v5502 = vsel %vm1986, %v5454, %v5180
      %v5503 = vsel %vm1986, %v5455, %v5182
      %v5504 = vsel %vm1986, %v5456, %v5184
      %v5505 = vsel %vm1986, %v5457, %v5186
      %v5506 = vsel %vm1986, %v5458, %v3299
      %v5507 = vsel %vm1986, %v5459, %v3299
      %v5508 = vsel %vm1986, %v5460, %v5188
      %v5509 = vsel %vm1986, %v5461, %v3299
      %v5510 = vsel %vm1986, %v5462, %v3299
      %v5511 = vsel %vm1986, %v5463, %v5188
      %v5512 = vsel %vm4461, %v5464, %v3407
      %v5513 = vsel %vm4461, %v5465, %v3409
      %v5514 = vsel %vm4461, %v5466, %v5207
      %v5515 = vsel %vm4461, %v5467, %v3411
      %v5516 = vsel %vm4461, %v5468, %v3413
      %v5517 = vsel %vm4461, %v5469, %v5209
      %v5518 = vsel %vm4461, %v5470, %v3415
      %v5519 = vsel %vm4461, %v5471, %v3417
      %v5520 = vsel %vm4461, %v5472, %v5211
      %v5521 = vsel %vm4461, %v5473, %v3419
      %v5522 = vsel %vm4461, %v5474, %v3421
      %v5523 = vsel %vm4461, %v5475, %v5213
      %v5524 = vsel %vm4461, %v5476, %v3423
      %v5525 = vsel %vm4461, %v5477, %v3425
      %v5526 = vsel %vm4461, %v5478, %v5215
      %v5527 = vsel %vm4461, %v5479, %v3427
      %v5528 = vsel %vm4461, %v5480, %v3429
      %v5529 = vsel %vm4461, %v5481, %v5217
      %v5530 = vsel %vm4461, %v5482, %v3431
      %v5531 = vsel %vm4461, %v5483, %v3433
      %v5532 = vsel %vm4461, %v5484, %v5219
      %v5533 = vsel %vm4461, %v5485, %v3435
      %v5534 = vsel %vm4461, %v5486, %v3437
      %v5535 = vsel %vm4461, %v5487, %v5221
      %v5536 = vsel %vm4461, %v5488, %v3439
      %v5537 = vsel %vm4461, %v5489, %v3441
      %v5538 = vsel %vm4461, %v5490, %v5223
      %v5539 = vsel %vm4461, %v5491, %v3443
      %v5540 = vsel %vm4461, %v5492, %v3445
      %v5541 = vsel %vm4461, %v5493, %v5225
      %v5542 = vsel %vm4461, %v5494, %v3447
      %v5543 = vsel %vm4461, %v5495, %v3449
      %v5544 = vsel %vm4461, %v5496, %v5227
      %v5545 = vsel %vm4461, %v5497, %v3451
      %v5546 = vsel %vm4461, %v5498, %v3453
      %v5547 = vsel %vm4461, %v5499, %v5229
      %v5548 = vsel %vm4461, %v5500, %v3455
      %v5549 = vsel %vm4461, %v5501, %v3457
      %v5550 = vsel %vm4461, %v5502, %v5231
      %v5551 = vsel %vm4461, %v5503, %v5233
      %v5552 = vsel %vm4461, %v5504, %v5235
      %v5553 = vsel %vm4461, %v5505, %v5237
      %v5554 = vsel %vm4461, %v5506, %v3397
      %v5555 = vsel %vm4461, %v5507, %v3397
      %v5556 = vsel %vm4461, %v5508, %v5239
      %v5557 = vsel %vm4461, %v5509, %v3397
      %v5558 = vsel %vm4461, %v5510, %v3397
      %v5559 = vsel %vm4461, %v5511, %v5239
      %v5560 = vsel %vm2019, %v5512, %v3505
      %v5561 = vsel %vm2019, %v5513, %v3507
      %v5562 = vsel %vm2019, %v5514, %v5258
      %v5563 = vsel %vm2019, %v5515, %v3509
      %v5564 = vsel %vm2019, %v5516, %v3511
      %v5565 = vsel %vm2019, %v5517, %v5260
      %v5566 = vsel %vm2019, %v5518, %v3513
      %v5567 = vsel %vm2019, %v5519, %v3515
      %v5568 = vsel %vm2019, %v5520, %v5262
      %v5569 = vsel %vm2019, %v5521, %v3517
      %v5570 = vsel %vm2019, %v5522, %v3519
      %v5571 = vsel %vm2019, %v5523, %v5264
      %v5572 = vsel %vm2019, %v5524, %v3521
      %v5573 = vsel %vm2019, %v5525, %v3523
      %v5574 = vsel %vm2019, %v5526, %v5266
      %v5575 = vsel %vm2019, %v5527, %v3525
      %v5576 = vsel %vm2019, %v5528, %v3527
      %v5577 = vsel %vm2019, %v5529, %v5268
      %v5578 = vsel %vm2019, %v5530, %v3529
      %v5579 = vsel %vm2019, %v5531, %v3531
      %v5580 = vsel %vm2019, %v5532, %v5270
      %v5581 = vsel %vm2019, %v5533, %v3533
      %v5582 = vsel %vm2019, %v5534, %v3535
      %v5583 = vsel %vm2019, %v5535, %v5272
      %v5584 = vsel %vm2019, %v5536, %v3537
      %v5585 = vsel %vm2019, %v5537, %v3539
      %v5586 = vsel %vm2019, %v5538, %v5274
      %v5587 = vsel %vm2019, %v5539, %v3541
      %v5588 = vsel %vm2019, %v5540, %v3543
      %v5589 = vsel %vm2019, %v5541, %v5276
      %v5590 = vsel %vm2019, %v5542, %v3545
      %v5591 = vsel %vm2019, %v5543, %v3547
      %v5592 = vsel %vm2019, %v5544, %v5278
      %v5593 = vsel %vm2019, %v5545, %v3549
      %v5594 = vsel %vm2019, %v5546, %v3551
      %v5595 = vsel %vm2019, %v5547, %v5280
      %v5596 = vsel %vm2019, %v5548, %v3553
      %v5597 = vsel %vm2019, %v5549, %v3555
      %v5598 = vsel %vm2019, %v5550, %v5282
      %v5599 = vsel %vm2019, %v5551, %v5284
      %v5600 = vsel %vm2019, %v5552, %v5286
      %v5601 = vsel %vm2019, %v5553, %v5288
      %v5602 = vsel %vm2019, %v5554, %v3495
      %v5603 = vsel %vm2019, %v5555, %v3495
      %v5604 = vsel %vm2019, %v5556, %v5290
      %v5605 = vsel %vm2019, %v5557, %v3495
      %v5606 = vsel %vm2019, %v5558, %v3495
      %v5607 = vsel %vm2019, %v5559, %v5290
      %v5656 = vrot.slane %v5560, 1
      %v5657 = vrot.slane %v5561, 1
      %v5658 = vsel %vm1002, %v5656, %v5657
      %v5659 = vrot.slane %v5562, 1
      %v5660 = vsel %vm1002, %v5657, %v5659
      %v5661 = vrot.slane %v5563, 1
      %v5662 = vrot.slane %v5564, 1
      %v5663 = vsel %vm1002, %v5661, %v5662
      %v5664 = vrot.slane %v5565, 1
      %v5665 = vsel %vm1002, %v5662, %v5664
      %v5666 = vrot.slane %v5566, 1
      %v5667 = vrot.slane %v5567, 1
      %v5668 = vsel %vm1002, %v5666, %v5667
      %v5669 = vrot.slane %v5568, 1
      %v5670 = vsel %vm1002, %v5667, %v5669
      %v5671 = vrot.slane %v5569, 1
      %v5672 = vrot.slane %v5570, 1
      %v5673 = vsel %vm1002, %v5671, %v5672
      %v5674 = vrot.slane %v5571, 1
      %v5675 = vsel %vm1002, %v5672, %v5674
      %v5676 = vrot.slane %v5572, 1
      %v5677 = vrot.slane %v5573, 1
      %v5678 = vsel %vm1002, %v5676, %v5677
      %v5679 = vrot.slane %v5574, 1
      %v5680 = vsel %vm1002, %v5677, %v5679
      %v5681 = vrot.slane %v5575, 1
      %v5682 = vrot.slane %v5576, 1
      %v5683 = vsel %vm1002, %v5681, %v5682
      %v5684 = vrot.slane %v5577, 1
      %v5685 = vsel %vm1002, %v5682, %v5684
      %v5686 = vrot.slane %v5578, 1
      %v5687 = vrot.slane %v5579, 1
      %v5688 = vsel %vm1002, %v5686, %v5687
      %v5689 = vrot.slane %v5580, 1
      %v5690 = vsel %vm1002, %v5687, %v5689
      %v5691 = vrot.slane %v5581, 1
      %v5692 = vrot.slane %v5582, 1
      %v5693 = vsel %vm1002, %v5691, %v5692
      %v5694 = vrot.slane %v5583, 1
      %v5695 = vsel %vm1002, %v5692, %v5694
      %v5696 = vrot.slane %v5584, 1
      %v5697 = vrot.slane %v5585, 1
      %v5698 = vsel %vm1002, %v5696, %v5697
      %v5699 = vrot.slane %v5586, 1
      %v5700 = vsel %vm1002, %v5697, %v5699
      %v5701 = vrot.slane %v5587, 1
      %v5702 = vrot.slane %v5588, 1
      %v5703 = vsel %vm1002, %v5701, %v5702
      %v5704 = vrot.slane %v5589, 1
      %v5705 = vsel %vm1002, %v5702, %v5704
      %v5706 = vrot.slane %v5590, 1
      %v5707 = vrot.slane %v5591, 1
      %v5708 = vsel %vm1002, %v5706, %v5707
      %v5709 = vrot.slane %v5592, 1
      %v5710 = vsel %vm1002, %v5707, %v5709
      %v5711 = vrot.slane %v5593, 1
      %v5712 = vrot.slane %v5594, 1
      %v5713 = vsel %vm1002, %v5711, %v5712
      %v5714 = vrot.slane %v5595, 1
      %v5715 = vsel %vm1002, %v5712, %v5714
      %v5716 = vrot.slane %v5596, 1
      %v5717 = vrot.slane %v5597, 1
      %v5718 = vsel %vm1002, %v5716, %v5717
      %v5719 = vrot.slane %v5598, 1
      %v5720 = vsel %vm1002, %v5717, %v5719
      %v5721 = vrot.slane %v5599, 1
      %v5722 = vrot.slane %v5600, 1
      %v5723 = vsel %vm1002, %v5721, %v5722
      %v5724 = vrot.slane %v5601, 1
      %v5725 = vsel %vm1002, %v5722, %v5724
      %v5726 = vrot.slane %v5602, 1
      %v5727 = vrot.slane %v5603, 1
      %v5728 = vsel %vm1002, %v5726, %v5727
      %v5729 = vrot.slane %v5604, 1
      %v5730 = vsel %vm1002, %v5727, %v5729
      %v5731 = vrot.slane %v5605, 1
      %v5732 = vrot.slane %v5606, 1
      %v5733 = vsel %vm1002, %v5731, %v5732
      %v5734 = vrot.slane %v5607, 1
      %v5735 = vsel %vm1002, %v5732, %v5734
      %5736 = vrot.lane.b32.xlu0 %v5658, 32
      %v5737 = vpop.permute.xlu0 %5736
      %5738 = vrot.lane.b32.xlu0 %v5660, 32
      %v5739 = vpop.permute.xlu0 %5738
      %5740 = vrot.lane.b32.xlu0 %v5663, 32
      %v5741 = vpop.permute.xlu0 %5740
      %5742 = vrot.lane.b32.xlu0 %v5665, 32
      %v5743 = vpop.permute.xlu0 %5742
      %5744 = vrot.lane.b32.xlu0 %v5668, 32
      %v5745 = vpop.permute.xlu0 %5744
      %5746 = vrot.lane.b32.xlu0 %v5670, 32
      %v5747 = vpop.permute.xlu0 %5746
      %5748 = vrot.lane.b32.xlu0 %v5673, 32
      %v5749 = vpop.permute.xlu0 %5748
      %5750 = vrot.lane.b32.xlu0 %v5675, 32
      %v5751 = vpop.permute.xlu0 %5750
      %5752 = vrot.lane.b32.xlu0 %v5678, 32
      %v5753 = vpop.permute.xlu0 %5752
      %5754 = vrot.lane.b32.xlu0 %v5680, 32
      %v5755 = vpop.permute.xlu0 %5754
      %5756 = vrot.lane.b32.xlu0 %v5683, 32
      %v5757 = vpop.permute.xlu0 %5756
      %5758 = vrot.lane.b32.xlu0 %v5685, 32
      %v5759 = vpop.permute.xlu0 %5758
      %5760 = vrot.lane.b32.xlu0 %v5688, 32
      %v5761 = vpop.permute.xlu0 %5760
      %5762 = vrot.lane.b32.xlu0 %v5690, 32
      %v5763 = vpop.permute.xlu0 %5762
      %5764 = vrot.lane.b32.xlu0 %v5693, 32
      %v5765 = vpop.permute.xlu0 %5764
      %5766 = vrot.lane.b32.xlu0 %v5695, 32
      %v5767 = vpop.permute.xlu0 %5766
      %5768 = vrot.lane.b32.xlu0 %v5698, 32
      %v5769 = vpop.permute.xlu0 %5768
      %5770 = vrot.lane.b32.xlu0 %v5700, 32
      %v5771 = vpop.permute.xlu0 %5770
      %5772 = vrot.lane.b32.xlu0 %v5703, 32
      %v5773 = vpop.permute.xlu0 %5772
      %5774 = vrot.lane.b32.xlu0 %v5705, 32
      %v5775 = vpop.permute.xlu0 %5774
      %5776 = vrot.lane.b32.xlu0 %v5708, 32
      %v5777 = vpop.permute.xlu0 %5776
      %5778 = vrot.lane.b32.xlu0 %v5710, 32
      %v5779 = vpop.permute.xlu0 %5778
      %5780 = vrot.lane.b32.xlu0 %v5713, 32
      %v5781 = vpop.permute.xlu0 %5780
      %5782 = vrot.lane.b32.xlu0 %v5715, 32
      %v5783 = vpop.permute.xlu0 %5782
      %5784 = vrot.lane.b32.xlu0 %v5718, 32
      %v5785 = vpop.permute.xlu0 %5784
      %5786 = vrot.lane.b32.xlu0 %v5720, 32
      %v5787 = vpop.permute.xlu0 %5786
      %5788 = vrot.lane.b32.xlu0 %v5723, 32
      %v5789 = vpop.permute.xlu0 %5788
      %5790 = vrot.lane.b32.xlu0 %v5725, 32
      %v5791 = vpop.permute.xlu0 %5790
      %5792 = vrot.lane.b32.xlu0 %v5728, 32
      %v5793 = vpop.permute.xlu0 %5792
      %5794 = vrot.lane.b32.xlu0 %v5730, 32
      %v5795 = vpop.permute.xlu0 %5794
      %5796 = vrot.lane.b32.xlu0 %v5733, 32
      %v5797 = vpop.permute.xlu0 %5796
      %5798 = vrot.lane.b32.xlu0 %v5735, 32
      %v5799 = vpop.permute.xlu0 %5798
      %v5832 = vsel %vm2151, %v4719, %v5737
      %v5833 = vsel %vm2151, %v4720, %v5739
      %v5834 = vsel %vm2151, %v4721, %v5741
      %v5835 = vsel %vm2151, %v4722, %v5743
      %v5836 = vsel %vm2151, %v4723, %v5745
      %v5837 = vsel %vm2151, %v4724, %v5747
      %v5838 = vsel %vm2151, %v4725, %v5749
      %v5839 = vsel %vm2151, %v4726, %v5751
      %v5840 = vsel %vm2151, %v4727, %v5753
      %v5841 = vsel %vm2151, %v4728, %v5755
      %v5842 = vsel %vm2151, %v4729, %v5757
      %v5843 = vsel %vm2151, %v4730, %v5759
      %v5844 = vsel %vm2151, %v4731, %v5761
      %v5845 = vsel %vm2151, %v4732, %v5763
      %v5846 = vsel %vm2151, %v4733, %v5765
      %v5847 = vsel %vm2151, %v4734, %v5767
      %v5848 = vsel %vm2151, %v4735, %v5769
      %v5849 = vsel %vm2151, %v4736, %v5771
      %v5850 = vsel %vm2151, %v4737, %v5773
      %v5851 = vsel %vm2151, %v4738, %v5775
      %v5852 = vsel %vm2151, %v4739, %v5777
      %v5853 = vsel %vm2151, %v4740, %v5779
      %v5854 = vsel %vm2151, %v4741, %v5781
      %v5855 = vsel %vm2151, %v4742, %v5783
      %v5856 = vsel %vm2151, %v4743, %v5785
      %v5857 = vsel %vm2151, %v4744, %v5787
      %v5858 = vsel %vm2151, %v4745, %v5789
      %v5859 = vsel %vm2151, %v4746, %v5791
      %v5860 = vsel %vm2151, %v4747, %v5793
      %v5861 = vsel %vm2151, %v4748, %v5795
      %v5862 = vsel %vm2151, %v4749, %v5797
      %v5863 = vsel %vm2151, %v4750, %v5799
      %v5864 = vpack.c.bf16 %v5833, %v5832
      %v5865 = vpack.c.bf16 %v5835, %v5834
      %v5866 = vpack.c.bf16 %v5837, %v5836
      %v5867 = vpack.c.bf16 %v5839, %v5838
      %v5868 = vpack.c.bf16 %v5841, %v5840
      %v5869 = vpack.c.bf16 %v5843, %v5842
      %v5870 = vpack.c.bf16 %v5845, %v5844
      %v5871 = vpack.c.bf16 %v5847, %v5846
      %v5872 = vpack.c.bf16 %v5849, %v5848
      %v5873 = vpack.c.bf16 %v5851, %v5850
      %v5874 = vpack.c.bf16 %v5853, %v5852
      %v5875 = vpack.c.bf16 %v5855, %v5854
      %v5876 = vpack.c.bf16 %v5857, %v5856
      %v5877 = vpack.c.bf16 %v5859, %v5858
      %v5878 = vpack.c.bf16 %v5861, %v5860
      %v5879 = vpack.c.bf16 %v5863, %v5862
      %5881 = vset.pattern.permute.xlu0 0
      %5882 = vperm.xlu0 %5881, %v2311
      %v5883 = vpop.permute.xlu0 %5882
      %vm5885 = vcmask 408576
      %v5887 = vsel %vm5885, %v2310, 0
      %v5890 = vsel %vm5885, %v5864, 0
      %v5893 = vsel %vm5885, %v5865, 0
      %v5896 = vsel %vm5885, %v5866, 0
      %v5899 = vsel %vm5885, %v5867, 0
      %v5902 = vsel %vm5885, %v5868, 0
      %v5905 = vsel %vm5885, %v5869, 0
      %v5908 = vsel %vm5885, %v5870, 0
      %v5911 = vsel %vm5885, %v5871, 0
      %v5914 = vsel %vm5885, %v5872, 0
      %v5917 = vsel %vm5885, %v5873, 0
      %v5920 = vsel %vm5885, %v5874, 0
      %v5923 = vsel %vm5885, %v5875, 0
      %v5926 = vsel %vm5885, %v5876, 0
      %v5929 = vsel %vm5885, %v5877, 0
      %v5932 = vsel %vm5885, %v5878, 0
      %v5935 = vsel %vm5885, %v5879, 0
      %5937 = vmatprep.subr.bf16.mxu0 0
      %5938 = vmatpush1.bf16.xpose.msra.mxu0 %v5890
      %5939 = vmatprep.subr.bf16.mxu0 0
      %5940 = vmatpush1.bf16.xpose.msra.mxu0 %v5893
      %5941 = vmatprep.subr.bf16.mxu0 0
      %5942 = vmatpush1.bf16.xpose.msra.mxu0 %v5896
      %5943 = vmatprep.subr.bf16.mxu0 0
      %5944 = vmatpush1.bf16.xpose.msra.mxu0 %v5899
      %5945 = vmatprep.subr.bf16.mxu0 0
      %5946 = vmatpush1.bf16.xpose.msra.mxu0 %v5902
      %5947 = vmatprep.subr.bf16.mxu0 0
      %5948 = vmatpush1.bf16.xpose.msra.mxu0 %v5905
      %5949 = vmatprep.subr.bf16.mxu0 0
      %5950 = vmatpush1.bf16.xpose.msra.mxu0 %v5908
      %5951 = vmatprep.subr.bf16.mxu0 0
      %5952 = vmatpush1.bf16.xpose.msra.mxu0 %v5911
      %5953 = vmatprep.subr.bf16.mxu0 0
      %5954 = vmatpush1.bf16.xpose.msra.mxu0 %v5914
      %5955 = vmatprep.subr.bf16.mxu0 0
      %5956 = vmatpush1.bf16.xpose.msra.mxu0 %v5917
      %5957 = vmatprep.subr.bf16.mxu0 0
      %5958 = vmatpush1.bf16.xpose.msra.mxu0 %v5920
      %5959 = vmatprep.subr.bf16.mxu0 0
      %5960 = vmatpush1.bf16.xpose.msra.mxu0 %v5923
      %5961 = vmatprep.subr.bf16.mxu0 0
      %5962 = vmatpush1.bf16.xpose.msra.mxu0 %v5926
      %5963 = vmatprep.subr.bf16.mxu0 0
      %5964 = vmatpush1.bf16.xpose.msra.mxu0 %v5929
      %5965 = vmatprep.subr.bf16.mxu0 0
      %5966 = vmatpush1.bf16.xpose.msra.mxu0 %v5932
      %5967 = vmatprep.subr.bf16.mxu0 0
      %5968 = vmatpush1.bf16.xpose.msra.mxu0 %v5935
      %5969 = vmatprep.mubr.bf16.mxu0 0
      %5970 = vmatmul.mubr.bf16.gmra.mrb[0].mxu0 %v5887
      %v5971 = vpop.f32.mrb[0].mxu0
      %v5972 = vadd.f32 %v5883, %v5971
      %v5973 = vpop.f32.mrb[0].mxu0
      %v5974 = vadd.f32 %v5883, %v5973
      %v5975 = vpop.f32.mrb[0].mxu0
      %v5976 = vpop.f32.mrb[0].mxu0
      %5977 = vdwg.mxu0
      %v5978 = vmax.f32 %v5972, 0.0
      %v5979 = vmax.f32 %v5974, 0.0
      %v5982 = vrot.slane %v5978, 4
      %v5983 = vrot.slane %v5979, 4
      %5986 = vst [vmem:[%s386 + $0x10] sm:$0xf0] %v5982
      %5987 = vst [vmem:[%s386 + $0x18] sm:$0xf0] %v5983
      %v5988 = vunpack.c.l.bf16 %v388
      %v5989 = vunpack.c.l.bf16 %v389
      %v5990 = vunpack.c.l.bf16 %v390
      %v5991 = vunpack.c.l.bf16 %v391
      %v5992 = vunpack.c.l.bf16 %v392
      %v5993 = vunpack.c.l.bf16 %v393
      %v5994 = vunpack.c.l.bf16 %v394
      %v5995 = vunpack.c.l.bf16 %v395
      %v5996 = vunpack.c.l.bf16 %v396
      %v5997 = vunpack.c.l.bf16 %v397
      %v5998 = vunpack.c.l.bf16 %v398
      %v5999 = vunpack.c.l.bf16 %v399
      %v6000 = vunpack.c.l.bf16 %v400
      %v6001 = vunpack.c.l.bf16 %v401
      %v6002 = vunpack.c.l.bf16 %v402
      %v6003 = vunpack.c.l.bf16 %v403
      %v6004 = vunpack.c.l.bf16 %v404
      %v6005 = vunpack.c.l.bf16 %v405
      %v6006 = vunpack.c.l.bf16 %v406
      %v6007 = vunpack.c.l.bf16 %v407
      %v6008 = vunpack.c.l.bf16 %v408
      %v6009 = vunpack.c.l.bf16 %v409
      %v6010 = vunpack.c.l.bf16 %v410
      %v6011 = vunpack.c.l.bf16 %v411
      %v6012 = vunpack.c.l.bf16 %v412
      %v6013 = vunpack.c.l.bf16 %v413
      %v6014 = vunpack.c.l.bf16 %v414
      %v6015 = vunpack.c.l.bf16 %v415
      %v6016 = vunpack.c.l.bf16 %v416
      %v6017 = vunpack.c.l.bf16 %v417
      %v6018 = vunpack.c.l.bf16 %v418
      %v6019 = vunpack.c.l.bf16 %v419
      %v6052 = vrot.slane %v5988, 7
      %v6053 = vrot.slane %v5989, 7
      %v6054 = vsel %vm843, %v6052, %v6053
      %v6055 = vrot.slane %v5990, 7
      %v6056 = vrot.slane %v5991, 7
      %v6057 = vsel %vm843, %v6055, %v6056
      %v6058 = vrot.slane %v5992, 7
      %v6059 = vrot.slane %v5993, 7
      %v6060 = vsel %vm843, %v6058, %v6059
      %v6061 = vrot.slane %v5994, 7
      %v6062 = vrot.slane %v5995, 7
      %v6063 = vsel %vm843, %v6061, %v6062
      %v6064 = vrot.slane %v5996, 7
      %v6065 = vrot.slane %v5997, 7
      %v6066 = vsel %vm843, %v6064, %v6065
      %v6067 = vrot.slane %v5998, 7
      %v6068 = vrot.slane %v5999, 7
      %v6069 = vsel %vm843, %v6067, %v6068
      %v6070 = vrot.slane %v6000, 7
      %v6071 = vrot.slane %v6001, 7
      %v6072 = vsel %vm843, %v6070, %v6071
      %v6073 = vrot.slane %v6002, 7
      %v6074 = vrot.slane %v6003, 7
      %v6075 = vsel %vm843, %v6073, %v6074
      %v6076 = vrot.slane %v6004, 7
      %v6077 = vrot.slane %v6005, 7
      %v6078 = vsel %vm843, %v6076, %v6077
      %v6079 = vrot.slane %v6006, 7
      %v6080 = vrot.slane %v6007, 7
      %v6081 = vsel %vm843, %v6079, %v6080
      %v6082 = vrot.slane %v6008, 7
      %v6083 = vrot.slane %v6009, 7
      %v6084 = vsel %vm843, %v6082, %v6083
      %v6085 = vrot.slane %v6010, 7
      %v6086 = vrot.slane %v6011, 7
      %v6087 = vsel %vm843, %v6085, %v6086
      %v6088 = vrot.slane %v6012, 7
      %v6089 = vrot.slane %v6013, 7
      %v6090 = vsel %vm843, %v6088, %v6089
      %v6091 = vrot.slane %v6014, 7
      %v6092 = vrot.slane %v6015, 7
      %v6093 = vsel %vm843, %v6091, %v6092
      %v6094 = vrot.slane %v6016, 7
      %v6095 = vrot.slane %v6017, 7
      %v6096 = vsel %vm843, %v6094, %v6095
      %v6097 = vrot.slane %v6018, 7
      %v6098 = vrot.slane %v6019, 7
      %v6099 = vsel %vm843, %v6097, %v6098
      %v6148 = vsel %vm843, -inf, %v6052
      %v6149 = vsel %vm843, -inf, %v6055
      %v6150 = vsel %vm843, -inf, %v6058
      %v6151 = vsel %vm843, -inf, %v6061
      %v6152 = vsel %vm843, -inf, %v6064
      %v6153 = vsel %vm843, -inf, %v6067
      %v6154 = vsel %vm843, -inf, %v6070
      %v6155 = vsel %vm843, -inf, %v6073
      %v6156 = vsel %vm843, -inf, %v6076
      %v6157 = vsel %vm843, -inf, %v6079
      %v6158 = vsel %vm843, -inf, %v6082
      %v6159 = vsel %vm843, -inf, %v6085
      %v6160 = vsel %vm843, -inf, %v6088
      %v6161 = vsel %vm843, -inf, %v6091
      %v6162 = vsel %vm843, -inf, %v6094
      %v6163 = vsel %vm843, -inf, %v6097
      %v6164 = vsel %vm843, %v6053, -inf
      %v6165 = vsel %vm843, %v6056, -inf
      %v6166 = vsel %vm843, %v6059, -inf
      %v6167 = vsel %vm843, %v6062, -inf
      %v6168 = vsel %vm843, %v6065, -inf
      %v6169 = vsel %vm843, %v6068, -inf
      %v6170 = vsel %vm843, %v6071, -inf
      %v6171 = vsel %vm843, %v6074, -inf
      %v6172 = vsel %vm843, %v6077, -inf
      %v6173 = vsel %vm843, %v6080, -inf
      %v6174 = vsel %vm843, %v6083, -inf
      %v6175 = vsel %vm843, %v6086, -inf
      %v6176 = vsel %vm843, %v6089, -inf
      %v6177 = vsel %vm843, %v6092, -inf
      %v6178 = vsel %vm843, %v6095, -inf
      %v6179 = vsel %vm843, %v6098, -inf
      %v6211 = vrot.slane -inf, 1
      %v6212 = vsel %vm1002, %v6211, %v6211
      %v6213 = vrot.slane %v6148, 1
      %v6214 = vrot.slane %v6054, 1
      %v6215 = vsel %vm1002, %v6213, %v6214
      %v6216 = vrot.slane %v6164, 1
      %v6217 = vsel %vm1002, %v6214, %v6216
      %v6218 = vrot.slane %v6149, 1
      %v6219 = vrot.slane %v6057, 1
      %v6220 = vsel %vm1002, %v6218, %v6219
      %v6221 = vrot.slane %v6165, 1
      %v6222 = vsel %vm1002, %v6219, %v6221
      %v6223 = vrot.slane %v6150, 1
      %v6224 = vrot.slane %v6060, 1
      %v6225 = vsel %vm1002, %v6223, %v6224
      %v6226 = vrot.slane %v6166, 1
      %v6227 = vsel %vm1002, %v6224, %v6226
      %v6228 = vrot.slane %v6151, 1
      %v6229 = vrot.slane %v6063, 1
      %v6230 = vsel %vm1002, %v6228, %v6229
      %v6231 = vrot.slane %v6167, 1
      %v6232 = vsel %vm1002, %v6229, %v6231
      %v6233 = vrot.slane %v6152, 1
      %v6234 = vrot.slane %v6066, 1
      %v6235 = vsel %vm1002, %v6233, %v6234
      %v6236 = vrot.slane %v6168, 1
      %v6237 = vsel %vm1002, %v6234, %v6236
      %v6238 = vrot.slane %v6153, 1
      %v6239 = vrot.slane %v6069, 1
      %v6240 = vsel %vm1002, %v6238, %v6239
      %v6241 = vrot.slane %v6169, 1
      %v6242 = vsel %vm1002, %v6239, %v6241
      %v6243 = vrot.slane %v6154, 1
      %v6244 = vrot.slane %v6072, 1
      %v6245 = vsel %vm1002, %v6243, %v6244
      %v6246 = vrot.slane %v6170, 1
      %v6247 = vsel %vm1002, %v6244, %v6246
      %v6248 = vrot.slane %v6155, 1
      %v6249 = vrot.slane %v6075, 1
      %v6250 = vsel %vm1002, %v6248, %v6249
      %v6251 = vrot.slane %v6171, 1
      %v6252 = vsel %vm1002, %v6249, %v6251
      %v6253 = vrot.slane %v6156, 1
      %v6254 = vrot.slane %v6078, 1
      %v6255 = vsel %vm1002, %v6253, %v6254
      %v6256 = vrot.slane %v6172, 1
      %v6257 = vsel %vm1002, %v6254, %v6256
      %v6258 = vrot.slane %v6157, 1
      %v6259 = vrot.slane %v6081, 1
      %v6260 = vsel %vm1002, %v6258, %v6259
      %v6261 = vrot.slane %v6173, 1
      %v6262 = vsel %vm1002, %v6259, %v6261
      %v6263 = vrot.slane %v6158, 1
      %v6264 = vrot.slane %v6084, 1
      %v6265 = vsel %vm1002, %v6263, %v6264
      %v6266 = vrot.slane %v6174, 1
      %v6267 = vsel %vm1002, %v6264, %v6266
      %v6268 = vrot.slane %v6159, 1
      %v6269 = vrot.slane %v6087, 1
      %v6270 = vsel %vm1002, %v6268, %v6269
      %v6271 = vrot.slane %v6175, 1
      %v6272 = vsel %vm1002, %v6269, %v6271
      %v6273 = vrot.slane %v6160, 1
      %v6274 = vrot.slane %v6090, 1
      %v6275 = vsel %vm1002, %v6273, %v6274
      %v6276 = vrot.slane %v6176, 1
      %v6277 = vsel %vm1002, %v6274, %v6276
      %v6278 = vrot.slane %v6161, 1
      %v6279 = vrot.slane %v6093, 1
      %v6280 = vsel %vm1002, %v6278, %v6279
      %v6281 = vrot.slane %v6177, 1
      %v6282 = vsel %vm1002, %v6279, %v6281
      %v6283 = vrot.slane %v6162, 1
      %v6284 = vrot.slane %v6096, 1
      %v6285 = vsel %vm1002, %v6283, %v6284
      %v6286 = vrot.slane %v6178, 1
      %v6287 = vsel %vm1002, %v6284, %v6286
      %v6319 = vmax.f32 %v6148, %v6215
      %v6320 = vmax.f32 %v6054, %v6217
      %v6321 = vmax.f32 %v6149, %v6220
      %v6322 = vmax.f32 %v6057, %v6222
      %v6323 = vmax.f32 %v6150, %v6225
      %v6324 = vmax.f32 %v6060, %v6227
      %v6325 = vmax.f32 %v6151, %v6230
      %v6326 = vmax.f32 %v6063, %v6232
      %v6327 = vmax.f32 %v6152, %v6235
      %v6328 = vmax.f32 %v6066, %v6237
      %v6329 = vmax.f32 %v6153, %v6240
      %v6330 = vmax.f32 %v6069, %v6242
      %v6331 = vmax.f32 %v6154, %v6245
      %v6332 = vmax.f32 %v6072, %v6247
      %v6333 = vmax.f32 %v6155, %v6250
      %v6334 = vmax.f32 %v6075, %v6252
      %v6335 = vmax.f32 %v6156, %v6255
      %v6336 = vmax.f32 %v6078, %v6257
      %v6337 = vmax.f32 %v6157, %v6260
      %v6338 = vmax.f32 %v6081, %v6262
      %v6339 = vmax.f32 %v6158, %v6265
      %v6340 = vmax.f32 %v6084, %v6267
      %v6341 = vmax.f32 %v6159, %v6270
      %v6342 = vmax.f32 %v6087, %v6272
      %v6343 = vmax.f32 %v6160, %v6275
      %v6344 = vmax.f32 %v6090, %v6277
      %v6345 = vmax.f32 %v6161, %v6280
      %v6346 = vmax.f32 %v6093, %v6282
      %v6347 = vmax.f32 %v6162, %v6285
      %v6348 = vmax.f32 %v6096, %v6287
      %v6349 = vrot.slane -inf, 2
      %v6350 = vsel %vm1173, %v6349, %v6349
      %v6351 = vrot.slane %v6148, 2
      %v6352 = vrot.slane %v6054, 2
      %v6353 = vsel %vm1173, %v6351, %v6352
      %v6354 = vrot.slane %v6164, 2
      %v6355 = vsel %vm1173, %v6352, %v6354
      %v6356 = vrot.slane %v6149, 2
      %v6357 = vrot.slane %v6057, 2
      %v6358 = vsel %vm1173, %v6356, %v6357
      %v6359 = vrot.slane %v6165, 2
      %v6360 = vsel %vm1173, %v6357, %v6359
      %v6361 = vrot.slane %v6150, 2
      %v6362 = vrot.slane %v6060, 2
      %v6363 = vsel %vm1173, %v6361, %v6362
      %v6364 = vrot.slane %v6166, 2
      %v6365 = vsel %vm1173, %v6362, %v6364
      %v6366 = vrot.slane %v6151, 2
      %v6367 = vrot.slane %v6063, 2
      %v6368 = vsel %vm1173, %v6366, %v6367
      %v6369 = vrot.slane %v6167, 2
      %v6370 = vsel %vm1173, %v6367, %v6369
      %v6371 = vrot.slane %v6152, 2
      %v6372 = vrot.slane %v6066, 2
      %v6373 = vsel %vm1173, %v6371, %v6372
      %v6374 = vrot.slane %v6168, 2
      %v6375 = vsel %vm1173, %v6372, %v6374
      %v6376 = vrot.slane %v6153, 2
      %v6377 = vrot.slane %v6069, 2
      %v6378 = vsel %vm1173, %v6376, %v6377
      %v6379 = vrot.slane %v6169, 2
      %v6380 = vsel %vm1173, %v6377, %v6379
      %v6381 = vrot.slane %v6154, 2
      %v6382 = vrot.slane %v6072, 2
      %v6383 = vsel %vm1173, %v6381, %v6382
      %v6384 = vrot.slane %v6170, 2
      %v6385 = vsel %vm1173, %v6382, %v6384
      %v6386 = vrot.slane %v6155, 2
      %v6387 = vrot.slane %v6075, 2
      %v6388 = vsel %vm1173, %v6386, %v6387
      %v6389 = vrot.slane %v6171, 2
      %v6390 = vsel %vm1173, %v6387, %v6389
      %v6391 = vrot.slane %v6156, 2
      %v6392 = vrot.slane %v6078, 2
      %v6393 = vsel %vm1173, %v6391, %v6392
      %v6394 = vrot.slane %v6172, 2
      %v6395 = vsel %vm1173, %v6392, %v6394
      %v6396 = vrot.slane %v6157, 2
      %v6397 = vrot.slane %v6081, 2
      %v6398 = vsel %vm1173, %v6396, %v6397
      %v6399 = vrot.slane %v6173, 2
      %v6400 = vsel %vm1173, %v6397, %v6399
      %v6401 = vrot.slane %v6158, 2
      %v6402 = vrot.slane %v6084, 2
      %v6403 = vsel %vm1173, %v6401, %v6402
      %v6404 = vrot.slane %v6174, 2
      %v6405 = vsel %vm1173, %v6402, %v6404
      %v6406 = vrot.slane %v6159, 2
      %v6407 = vrot.slane %v6087, 2
      %v6408 = vsel %vm1173, %v6406, %v6407
      %v6409 = vrot.slane %v6175, 2
      %v6410 = vsel %vm1173, %v6407, %v6409
      %v6411 = vrot.slane %v6160, 2
      %v6412 = vrot.slane %v6090, 2
      %v6413 = vsel %vm1173, %v6411, %v6412
      %v6414 = vrot.slane %v6176, 2
      %v6415 = vsel %vm1173, %v6412, %v6414
      %v6416 = vrot.slane %v6161, 2
      %v6417 = vrot.slane %v6093, 2
      %v6418 = vsel %vm1173, %v6416, %v6417
      %v6419 = vrot.slane %v6177, 2
      %v6420 = vsel %vm1173, %v6417, %v6419
      %v6421 = vrot.slane %v6162, 2
      %v6422 = vrot.slane %v6096, 2
      %v6423 = vsel %vm1173, %v6421, %v6422
      %v6424 = vrot.slane %v6178, 2
      %v6425 = vsel %vm1173, %v6422, %v6424
      %v6457 = vmax.f32 %v6212, %v6350
      %v6458 = vmax.f32 %v6319, %v6353
      %v6459 = vmax.f32 %v6320, %v6355
      %v6460 = vmax.f32 %v6321, %v6358
      %v6461 = vmax.f32 %v6322, %v6360
      %v6462 = vmax.f32 %v6323, %v6363
      %v6463 = vmax.f32 %v6324, %v6365
      %v6464 = vmax.f32 %v6325, %v6368
      %v6465 = vmax.f32 %v6326, %v6370
      %v6466 = vmax.f32 %v6327, %v6373
      %v6467 = vmax.f32 %v6328, %v6375
      %v6468 = vmax.f32 %v6329, %v6378
      %v6469 = vmax.f32 %v6330, %v6380
      %v6470 = vmax.f32 %v6331, %v6383
      %v6471 = vmax.f32 %v6332, %v6385
      %v6472 = vmax.f32 %v6333, %v6388
      %v6473 = vmax.f32 %v6334, %v6390
      %v6474 = vmax.f32 %v6335, %v6393
      %v6475 = vmax.f32 %v6336, %v6395
      %v6476 = vmax.f32 %v6337, %v6398
      %v6477 = vmax.f32 %v6338, %v6400
      %v6478 = vmax.f32 %v6339, %v6403
      %v6479 = vmax.f32 %v6340, %v6405
      %v6480 = vmax.f32 %v6341, %v6408
      %v6481 = vmax.f32 %v6342, %v6410
      %v6482 = vmax.f32 %v6343, %v6413
      %v6483 = vmax.f32 %v6344, %v6415
      %v6484 = vmax.f32 %v6345, %v6418
      %v6485 = vmax.f32 %v6346, %v6420
      %v6486 = vmax.f32 %v6347, %v6423
      %v6487 = vmax.f32 %v6348, %v6425
      %v6488 = vmax.f32 %v6457, %v6148
      %v6489 = vmax.f32 %v6457, %v6054
      %v6490 = vmax.f32 %v6458, %v6149
      %v6491 = vmax.f32 %v6459, %v6057
      %v6492 = vmax.f32 %v6460, %v6150
      %v6493 = vmax.f32 %v6461, %v6060
      %v6494 = vmax.f32 %v6462, %v6151
      %v6495 = vmax.f32 %v6463, %v6063
      %v6496 = vmax.f32 %v6464, %v6152
      %v6497 = vmax.f32 %v6465, %v6066
      %v6498 = vmax.f32 %v6466, %v6153
      %v6499 = vmax.f32 %v6467, %v6069
      %v6500 = vmax.f32 %v6468, %v6154
      %v6501 = vmax.f32 %v6469, %v6072
      %v6502 = vmax.f32 %v6470, %v6155
      %v6503 = vmax.f32 %v6471, %v6075
      %v6504 = vmax.f32 %v6472, %v6156
      %v6505 = vmax.f32 %v6473, %v6078
      %v6506 = vmax.f32 %v6474, %v6157
      %v6507 = vmax.f32 %v6475, %v6081
      %v6508 = vmax.f32 %v6476, %v6158
      %v6509 = vmax.f32 %v6477, %v6084
      %v6510 = vmax.f32 %v6478, %v6159
      %v6511 = vmax.f32 %v6479, %v6087
      %v6512 = vmax.f32 %v6480, %v6160
      %v6513 = vmax.f32 %v6481, %v6090
      %v6514 = vmax.f32 %v6482, %v6161
      %v6515 = vmax.f32 %v6483, %v6093
      %v6516 = vmax.f32 %v6484, %v6162
      %v6517 = vmax.f32 %v6485, %v6096
      %v6518 = vmax.f32 %v6486, %v6163
      %v6519 = vmax.f32 %v6487, %v6099
      %v6522 = vrot.slane %v6163, 1
      %v6523 = vrot.slane %v6099, 1
      %v6524 = vsel %vm1002, %v6522, %v6523
      %v6525 = vrot.slane %v6179, 1
      %v6526 = vsel %vm1002, %v6523, %v6525
      %v6529 = vmax.f32 %v6488, %v6215
      %v6530 = vmax.f32 %v6489, %v6217
      %v6531 = vmax.f32 %v6490, %v6220
      %v6532 = vmax.f32 %v6491, %v6222
      %v6533 = vmax.f32 %v6492, %v6225
      %v6534 = vmax.f32 %v6493, %v6227
      %v6535 = vmax.f32 %v6494, %v6230
      %v6536 = vmax.f32 %v6495, %v6232
      %v6537 = vmax.f32 %v6496, %v6235
      %v6538 = vmax.f32 %v6497, %v6237
      %v6539 = vmax.f32 %v6498, %v6240
      %v6540 = vmax.f32 %v6499, %v6242
      %v6541 = vmax.f32 %v6500, %v6245
      %v6542 = vmax.f32 %v6501, %v6247
      %v6543 = vmax.f32 %v6502, %v6250
      %v6544 = vmax.f32 %v6503, %v6252
      %v6545 = vmax.f32 %v6504, %v6255
      %v6546 = vmax.f32 %v6505, %v6257
      %v6547 = vmax.f32 %v6506, %v6260
      %v6548 = vmax.f32 %v6507, %v6262
      %v6549 = vmax.f32 %v6508, %v6265
      %v6550 = vmax.f32 %v6509, %v6267
      %v6551 = vmax.f32 %v6510, %v6270
      %v6552 = vmax.f32 %v6511, %v6272
      %v6553 = vmax.f32 %v6512, %v6275
      %v6554 = vmax.f32 %v6513, %v6277
      %v6555 = vmax.f32 %v6514, %v6280
      %v6556 = vmax.f32 %v6515, %v6282
      %v6557 = vmax.f32 %v6516, %v6285
      %v6558 = vmax.f32 %v6517, %v6287
      %v6559 = vmax.f32 %v6518, %v6524
      %v6560 = vmax.f32 %v6519, %v6526
      %v6561 = vrot.slane %v6163, 2
      %v6562 = vrot.slane %v6099, 2
      %v6563 = vsel %vm1173, %v6561, %v6562
      %v6564 = vrot.slane %v6179, 2
      %v6565 = vsel %vm1173, %v6562, %v6564
      %v6568 = vmax.f32 %v6529, %v6353
      %v6569 = vmax.f32 %v6530, %v6355
      %v6570 = vmax.f32 %v6531, %v6358
      %v6571 = vmax.f32 %v6532, %v6360
      %v6572 = vmax.f32 %v6533, %v6363
      %v6573 = vmax.f32 %v6534, %v6365
      %v6574 = vmax.f32 %v6535, %v6368
      %v6575 = vmax.f32 %v6536, %v6370
      %v6576 = vmax.f32 %v6537, %v6373
      %v6577 = vmax.f32 %v6538, %v6375
      %v6578 = vmax.f32 %v6539, %v6378
      %v6579 = vmax.f32 %v6540, %v6380
      %v6580 = vmax.f32 %v6541, %v6383
      %v6581 = vmax.f32 %v6542, %v6385
      %v6582 = vmax.f32 %v6543, %v6388
      %v6583 = vmax.f32 %v6544, %v6390
      %v6584 = vmax.f32 %v6545, %v6393
      %v6585 = vmax.f32 %v6546, %v6395
      %v6586 = vmax.f32 %v6547, %v6398
      %v6587 = vmax.f32 %v6548, %v6400
      %v6588 = vmax.f32 %v6549, %v6403
      %v6589 = vmax.f32 %v6550, %v6405
      %v6590 = vmax.f32 %v6551, %v6408
      %v6591 = vmax.f32 %v6552, %v6410
      %v6592 = vmax.f32 %v6553, %v6413
      %v6593 = vmax.f32 %v6554, %v6415
      %v6594 = vmax.f32 %v6555, %v6418
      %v6595 = vmax.f32 %v6556, %v6420
      %v6596 = vmax.f32 %v6557, %v6423
      %v6597 = vmax.f32 %v6558, %v6425
      %v6598 = vmax.f32 %v6559, %v6563
      %v6599 = vmax.f32 %v6560, %v6565
      %v6600 = vmax.f32 %v6568, %v6149
      %v6601 = vmax.f32 %v6569, %v6057
      %v6602 = vmax.f32 %v6570, %v6150
      %v6603 = vmax.f32 %v6571, %v6060
      %v6604 = vmax.f32 %v6572, %v6151
      %v6605 = vmax.f32 %v6573, %v6063
      %v6606 = vmax.f32 %v6574, %v6152
      %v6607 = vmax.f32 %v6575, %v6066
      %v6608 = vmax.f32 %v6576, %v6153
      %v6609 = vmax.f32 %v6577, %v6069
      %v6610 = vmax.f32 %v6578, %v6154
      %v6611 = vmax.f32 %v6579, %v6072
      %v6612 = vmax.f32 %v6580, %v6155
      %v6613 = vmax.f32 %v6581, %v6075
      %v6614 = vmax.f32 %v6582, %v6156
      %v6615 = vmax.f32 %v6583, %v6078
      %v6616 = vmax.f32 %v6584, %v6157
      %v6617 = vmax.f32 %v6585, %v6081
      %v6618 = vmax.f32 %v6586, %v6158
      %v6619 = vmax.f32 %v6587, %v6084
      %v6620 = vmax.f32 %v6588, %v6159
      %v6621 = vmax.f32 %v6589, %v6087
      %v6622 = vmax.f32 %v6590, %v6160
      %v6623 = vmax.f32 %v6591, %v6090
      %v6624 = vmax.f32 %v6592, %v6161
      %v6625 = vmax.f32 %v6593, %v6093
      %v6626 = vmax.f32 %v6594, %v6162
      %v6627 = vmax.f32 %v6595, %v6096
      %v6628 = vmax.f32 %v6596, %v6163
      %v6629 = vmax.f32 %v6597, %v6099
      %v6630 = vmax.f32 %v6600, %v6220
      %v6631 = vmax.f32 %v6601, %v6222
      %v6632 = vmax.f32 %v6602, %v6225
      %v6633 = vmax.f32 %v6603, %v6227
      %v6634 = vmax.f32 %v6604, %v6230
      %v6635 = vmax.f32 %v6605, %v6232
      %v6636 = vmax.f32 %v6606, %v6235
      %v6637 = vmax.f32 %v6607, %v6237
      %v6638 = vmax.f32 %v6608, %v6240
      %v6639 = vmax.f32 %v6609, %v6242
      %v6640 = vmax.f32 %v6610, %v6245
      %v6641 = vmax.f32 %v6611, %v6247
      %v6642 = vmax.f32 %v6612, %v6250
      %v6643 = vmax.f32 %v6613, %v6252
      %v6644 = vmax.f32 %v6614, %v6255
      %v6645 = vmax.f32 %v6615, %v6257
      %v6646 = vmax.f32 %v6616, %v6260
      %v6647 = vmax.f32 %v6617, %v6262
      %v6648 = vmax.f32 %v6618, %v6265
      %v6649 = vmax.f32 %v6619, %v6267
      %v6650 = vmax.f32 %v6620, %v6270
      %v6651 = vmax.f32 %v6621, %v6272
      %v6652 = vmax.f32 %v6622, %v6275
      %v6653 = vmax.f32 %v6623, %v6277
      %v6654 = vmax.f32 %v6624, %v6280
      %v6655 = vmax.f32 %v6625, %v6282
      %v6656 = vmax.f32 %v6626, %v6285
      %v6657 = vmax.f32 %v6627, %v6287
      %v6658 = vmax.f32 %v6628, %v6524
      %v6659 = vmax.f32 %v6629, %v6526
      %v6660 = vmax.f32 %v6598, %v6212
      %v6661 = vmax.f32 %v6599, %v6212
      %v6662 = vmax.f32 %v6630, %v6358
      %v6663 = vmax.f32 %v6631, %v6360
      %v6664 = vmax.f32 %v6632, %v6363
      %v6665 = vmax.f32 %v6633, %v6365
      %v6666 = vmax.f32 %v6634, %v6368
      %v6667 = vmax.f32 %v6635, %v6370
      %v6668 = vmax.f32 %v6636, %v6373
      %v6669 = vmax.f32 %v6637, %v6375
      %v6670 = vmax.f32 %v6638, %v6378
      %v6671 = vmax.f32 %v6639, %v6380
      %v6672 = vmax.f32 %v6640, %v6383
      %v6673 = vmax.f32 %v6641, %v6385
      %v6674 = vmax.f32 %v6642, %v6388
      %v6675 = vmax.f32 %v6643, %v6390
      %v6676 = vmax.f32 %v6644, %v6393
      %v6677 = vmax.f32 %v6645, %v6395
      %v6678 = vmax.f32 %v6646, %v6398
      %v6679 = vmax.f32 %v6647, %v6400
      %v6680 = vmax.f32 %v6648, %v6403
      %v6681 = vmax.f32 %v6649, %v6405
      %v6682 = vmax.f32 %v6650, %v6408
      %v6683 = vmax.f32 %v6651, %v6410
      %v6684 = vmax.f32 %v6652, %v6413
      %v6685 = vmax.f32 %v6653, %v6415
      %v6686 = vmax.f32 %v6654, %v6418
      %v6687 = vmax.f32 %v6655, %v6420
      %v6688 = vmax.f32 %v6656, %v6423
      %v6689 = vmax.f32 %v6657, %v6425
      %v6690 = vmax.f32 %v6658, %v6563
      %v6691 = vmax.f32 %v6659, %v6565
      %v6692 = vmax.f32 %v6660, %v6350
      %v6693 = vmax.f32 %v6661, %v6350
      %v6694 = vpack.c.bf16 %v6663, %v6662
      %v6695 = vpack.c.bf16 %v6665, %v6664
      %v6696 = vpack.c.bf16 %v6667, %v6666
      %v6697 = vpack.c.bf16 %v6669, %v6668
      %v6698 = vpack.c.bf16 %v6671, %v6670
      %v6699 = vpack.c.bf16 %v6673, %v6672
      %v6700 = vpack.c.bf16 %v6675, %v6674
      %v6701 = vpack.c.bf16 %v6677, %v6676
      %v6702 = vpack.c.bf16 %v6679, %v6678
      %v6703 = vpack.c.bf16 %v6681, %v6680
      %v6704 = vpack.c.bf16 %v6683, %v6682
      %v6705 = vpack.c.bf16 %v6685, %v6684
      %v6706 = vpack.c.bf16 %v6687, %v6686
      %v6707 = vpack.c.bf16 %v6689, %v6688
      %v6708 = vpack.c.bf16 %v6691, %v6690
      %v6709 = vpack.c.bf16 %v6693, %v6692
      %v6710 = vld [vmem:[%s9] sm:$0x3]
      %v6711 = vld [vmem:[%s10] sm:$0xf]
      %6713 = vset.pattern.permute.xlu0 0
      %6714 = vperm.xlu0 %6713, %v6711
      %v6715 = vpop.permute.xlu0 %6714
      %v6718 = vsel %vm507, %v6710, 0
      %v6721 = vsel %vm507, %v6694, 0
      %v6724 = vsel %vm507, %v6695, 0
      %v6727 = vsel %vm507, %v6696, 0
      %v6730 = vsel %vm507, %v6697, 0
      %v6733 = vsel %vm507, %v6698, 0
      %v6736 = vsel %vm507, %v6699, 0
      %v6739 = vsel %vm507, %v6700, 0
      %v6742 = vsel %vm507, %v6701, 0
      %v6745 = vsel %vm507, %v6702, 0
      %v6748 = vsel %vm507, %v6703, 0
      %v6751 = vsel %vm507, %v6704, 0
      %v6754 = vsel %vm507, %v6705, 0
      %v6757 = vsel %vm507, %v6706, 0
      %v6760 = vsel %vm507, %v6707, 0
      %v6763 = vsel %vm507, %v6708, 0
      %v6766 = vsel %vm507, %v6709, 0
      %6768 = vmatprep.subr.bf16.mxu0 0
      %6769 = vmatpush1.bf16.xpose.msra.mxu0 %v6721
      %6770 = vmatprep.subr.bf16.mxu0 0
      %6771 = vmatpush1.bf16.xpose.msra.mxu0 %v6724
      %6772 = vmatprep.subr.bf16.mxu0 0
      %6773 = vmatpush1.bf16.xpose.msra.mxu0 %v6727
      %6774 = vmatprep.subr.bf16.mxu0 0
      %6775 = vmatpush1.bf16.xpose.msra.mxu0 %v6730
      %6776 = vmatprep.subr.bf16.mxu0 0
      %6777 = vmatpush1.bf16.xpose.msra.mxu0 %v6733
      %6778 = vmatprep.subr.bf16.mxu0 0
      %6779 = vmatpush1.bf16.xpose.msra.mxu0 %v6736
      %6780 = vmatprep.subr.bf16.mxu0 0
      %6781 = vmatpush1.bf16.xpose.msra.mxu0 %v6739
      %6782 = vmatprep.subr.bf16.mxu0 0
      %6783 = vmatpush1.bf16.xpose.msra.mxu0 %v6742
      %6784 = vmatprep.subr.bf16.mxu0 0
      %6785 = vmatpush1.bf16.xpose.msra.mxu0 %v6745
      %6786 = vmatprep.subr.bf16.mxu0 0
      %6787 = vmatpush1.bf16.xpose.msra.mxu0 %v6748
      %6788 = vmatprep.subr.bf16.mxu0 0
      %6789 = vmatpush1.bf16.xpose.msra.mxu0 %v6751
      %6790 = vmatprep.subr.bf16.mxu0 0
      %6791 = vmatpush1.bf16.xpose.msra.mxu0 %v6754
      %6792 = vmatprep.subr.bf16.mxu0 0
      %6793 = vmatpush1.bf16.xpose.msra.mxu0 %v6757
      %6794 = vmatprep.subr.bf16.mxu0 0
      %6795 = vmatpush1.bf16.xpose.msra.mxu0 %v6760
      %6796 = vmatprep.subr.bf16.mxu0 0
      %6797 = vmatpush1.bf16.xpose.msra.mxu0 %v6763
      %6798 = vmatprep.subr.bf16.mxu0 0
      %6799 = vmatpush1.bf16.xpose.msra.mxu0 %v6766
      %6800 = vmatprep.mubr.bf16.mxu0 0
      %6801 = vmatmul.mubr.bf16.gmra.mrb[0].mxu0 %v6718
      %v6802 = vpop.f32.mrb[0].mxu0
      %v6803 = vadd.f32 %v6715, %v6802
      %v6804 = vpop.f32.mrb[0].mxu0
      %v6805 = vadd.f32 %v6715, %v6804
      %v6806 = vpop.f32.mrb[0].mxu0
      %v6807 = vpop.f32.mrb[0].mxu0
      %6808 = vdwg.mxu0
      %v6809 = vmax.f32 %v6803, 0.0
      %v6810 = vmax.f32 %v6805, 0.0
      %6811 = vst [vmem:[%s386 + $0x20] sm:$0xf] %v6809
      %6812 = vst [vmem:[%s386 + $0x28] sm:$0xf] %v6810
      %p6813 = scmp.lt.s32.totalorder %s22, 1
      %s6814 = scalar_select %p6813, %s22, 1
      %s6815 = smul.addr %s6814, 6
      %s6816 = smul.addr %s6815, 8
      %s6817 = scalar_lea.vmem %s11, %s6816
      // Predicated region
      $region65: #{tpu_custom_call.1} parent=63 // pred_check
        %p6818 = pneg %p276
      $region66: #{tpu_custom_call.1} parent=63 // pred_check_branch
        %6820 = sbr.rel (%p6818) target = $region68
      $region67: #{tpu_custom_call.1} parent=63 // pred_region
        _
      $region68: #{tpu_custom_call.1} parent=63 // pred_fallthru
        _
    $region64: #{tpu_custom_call.1} parent=5 // pred_fallthru
      _
    %p6821 = scmp.le.s32.totalorder 2, %s17
    // Predicated region
    $region69: #{tpu_custom_call.1} parent=5 // pred_check
      %p6822 = pneg %p6821
    $region70: #{tpu_custom_call.1} parent=5 // pred_check_branch
      %6824 = sbr.rel (%p6822) target = $region72
    $region71: #{tpu_custom_call.1} parent=5 // pred_region
      %s6825 = ssub.s32 %s17, 2
      // Predicated region
      $region73: #{tpu_custom_call.1} parent=71 // pred_check
        %p6826 = pneg %p282
      $region74: #{tpu_custom_call.1} parent=71 // pred_check_branch
        %6828 = sbr.rel (%p6826) target = $region76
      $region75: #{tpu_custom_call.1} parent=71 // pred_region
        %p6829 = scmp.lt.s32.totalorder %s23, 1
        %s6830 = scalar_select %p6829, %s23, 1
        %s6831 = smul.addr %s6830, 6
        %s6832 = smul.addr %s6831, 8
        %s6833 = scalar_lea.vmem %s11, %s6832
      $region76: #{tpu_custom_call.1} parent=71 // pred_fallthru
        _
    $region72: #{tpu_custom_call.1} parent=5 // pred_fallthru
      _
  $region6: #{tpu_custom_call.1} parent=0 // loop_footer
    %s21 = sadd.s32 1, %s17
  $region7: #{tpu_custom_call.1} parent=0 // loop_footer_branch
    %16 = sbr.rel target = $region3
  $region8: #{tpu_custom_call.1} parent=0 // loop_exit
    _

</llo_original>
